<compile_context>
chip_gen: v7x
topology: tpu7x:2x2x1
jax: 0.10.0
libtpu: 0.0.40
codegen_flags: <defaults>
</compile_context>

<pallas_src>
import functools

import jax
import jax.numpy as jnp
from jax.experimental import pallas as pl
from jax.experimental.pallas import tpu as pltpu


def _round_up(n, m):
    return ((n + m - 1) // m) * m


def _pick_tile_b(batch):
    """Pick the batch tile.

    Large batches get 512-row tiles (per-step grid overhead amortized, RHS held
    in MXU weight registers across more LHS rows); small batches keep 128.  The
    tile is capped so the (padded) grid has at least 2 steps whenever the batch
    permits, so v7x's two TensorCores can split the "parallel" batch axis.
    """
    target = 512 if batch >= 512 else 128
    if batch > 8:
        target = min(target, _round_up((batch + 1) // 2, 8))  # >= 2 grid steps
    return max(8, min(target, _round_up(batch, 8)))


def _dnn_kernel(*refs, num_linear):
    """Fused forward pass over one batch tile.

    refs = (x_ref, w0, b0, w1, b1, ..., w_{L-1}, b_{L-1}, out_ref)

    Every layer except the last applies ReLU (SimpleDNN: all FCNets use
    activate='relu' except the final classifier FCNet, which has none).
    MXU inputs are bf16, accumulation and bias/ReLU are f32.
    """
    x_ref = refs[0]
    out_ref = refs[-1]
    params = refs[1:-1]
    assert len(params) == 2 * num_linear

    h = x_ref[...]                       # bf16, fed straight into the first MXU pass
    for i in range(num_linear):
        w = params[2 * i][...]           # bf16 padded weight, resident in VMEM
        b = params[2 * i + 1][...]       # f32 row vector
        acc = jnp.dot(h, w, preferred_element_type=jnp.float32) + b
        if i < num_linear - 1:
            h = jnp.maximum(acc, 0.0).astype(jnp.bfloat16)   # ReLU, back to bf16
        else:
            out_ref[...] = acc.astype(out_ref.dtype)         # lane-dense bf16 store


def simple_dnn_forward(x, weights, biases):
    """Run the fused SimpleDNN forward Pallas kernel.

    x       : [B, input_size] float32
    weights : list of [in, out] float32 matrices (Linear stored pre-transposed)
    biases  : list of [1, out] float32 row vectors
    Returns : [B, output_size] float32 (bf16 compute, upcast after slicing)
    """
    num_linear = len(weights)
    batch, in_size = x.shape
    out_size = weights[-1].shape[1]

    # ---- pad everything to MXU/lane-friendly shapes (zeros keep exact math) ----
    tile_b = _pick_tile_b(batch)
    batch_p = _round_up(max(batch, 1), tile_b)
    in_p = _round_up(in_size, 128)
    out_p = _round_up(out_size, 128)

    # bf16 activations at the HBM boundary (review: halves x traffic on v6e/v7x).
    x_p = jnp.pad(x, ((0, batch_p - batch), (0, in_p - in_size))).astype(jnp.bfloat16)

    padded_params = []
    fout_list = []
    prev = in_p
    for li, (w, b) in enumerate(zip(weights, biases)):
        fin, fout = w.shape
        fin_p = prev                                   # matches previous layer's padded out
        fout_p = out_p if li == num_linear - 1 else _round_up(fout, 128)
        w_p = jnp.pad(w, ((0, fin_p - fin), (0, fout_p - fout))).astype(jnp.bfloat16)
        b_p = jnp.pad(b, ((0, 0), (0, fout_p - fout))).astype(jnp.float32)
        padded_params.append(w_p)
        padded_params.append(b_p)
        fout_list.append(fout_p)
        prev = fout_p

    kernel = functools.partial(_dnn_kernel, num_linear=num_linear)
    grid = (batch_p // tile_b,)

    # Advisory cost estimate for XLA's scheduler (bf16 x and bf16 output bytes).
    flops = 0
    prev = in_p
    for fout_p in fout_list:
        flops += 2 * batch_p * prev * fout_p
        prev = fout_p
    param_bytes = sum(int(p.size) * p.dtype.itemsize for p in padded_params)
    bytes_accessed = int(x_p.size) * 2 + param_bytes + batch_p * out_p * 2
    cost = pl.CostEstimate(flops=flops, transcendentals=0,
                           bytes_accessed=int(bytes_accessed))

    def make_call(single_buffer_resident):
        # x / out are batch-tiled; weights & biases are resident (block 0 always).
        in_specs = [pl.BlockSpec((tile_b, in_p), lambda i: (i, 0))]
        for p in padded_params:
            if single_buffer_resident:
                spec = pl.BlockSpec(p.shape, lambda i: (0, 0),
                                    pipeline_mode=pl.Buffered(1))
            else:
                spec = pl.BlockSpec(p.shape, lambda i: (0, 0))
            in_specs.append(spec)
        out_spec = pl.BlockSpec((tile_b, out_p), lambda i: (i, 0))
        return pl.pallas_call(
            kernel,
            out_shape=jax.ShapeDtypeStruct((batch_p, out_p), jnp.bfloat16),
            grid_spec=pltpu.PrefetchScalarGridSpec(
                num_scalar_prefetch=0,
                grid=grid,
                in_specs=in_specs,
                out_specs=out_spec,
            ),
            compiler_params=pltpu.CompilerParams(
                dimension_semantics=("parallel",),      # v7x: shard batch over 2 TCs
                vmem_limit_bytes=32 * 1024 * 1024,      # explicit budget (v7x-safe)
            ),
            cost_estimate=cost,
        )

    try:
        # Review item: single-buffer the resident weights/biases (constant block
        # index -> default double buffer is dead VMEM).
        out_padded = make_call(True)(x_p, *padded_params)
    except Exception:
        # Fallback for Pallas builds that don't lower pipeline_mode; costs only
        # ~0.7 MiB extra VMEM, semantics identical.
        out_padded = make_call(False)(x_p, *padded_params)

    return out_padded[:batch, :out_size].astype(jnp.float32)


def init_params(key, num_layers, hidden_size=256, input_size=341, output_size=4):
    """Deterministic synthetic parameters matching SimpleDNN's layer shapes."""
    dims = [(input_size, hidden_size)]               # self.lin
    for _ in range(num_layers):                      # self.layers
        dims.append((hidden_size, hidden_size))
    dims.append((hidden_size, 512))                  # classifier FCNet 1 (relu)
    dims.append((512, output_size))                  # classifier FCNet 2 (no relu)

    weights, biases = [], []
    for (fan_in, fan_out) in dims:
        key, kw, kb = jax.random.split(key, 3)
        bound = 1.0 / jnp.sqrt(fan_in)
        # stored as [in, out] (transpose of torch's [out, in]) so h @ W + b
        w = jax.random.uniform(kw, (fan_in, fan_out), jnp.float32, -bound, bound)
        b = jax.random.uniform(kb, (1, fan_out), jnp.float32, -bound, bound)
        weights.append(w)
        biases.append(b)
    return weights, biases


def reference_forward(x, weights, biases):
    """Plain-JAX f32 reference with identical semantics, for verification."""
    h = x
    n = len(weights)
    for i, (w, b) in enumerate(zip(weights, biases)):
        h = h @ w + b
        if i < n - 1:
            h = jnp.maximum(h, 0.0)
    return h


if __name__ == "__main__":
    key = jax.random.PRNGKey(0)
    num_layers = 2
    input_size = 341
    output_size = 4
    batch = 8

    key, kx = jax.random.split(key)
    x = jax.random.normal(kx, (batch, input_size), jnp.float32)

    weights, biases = init_params(
        key, num_layers=num_layers, hidden_size=256,
        input_size=input_size, output_size=output_size,
    )

    out = simple_dnn_forward(x, weights, biases)
    out = jax.block_until_ready(out)

    ref = reference_forward(x, weights, biases)
    assert out.shape == (batch, output_size), out.shape
    # bf16 MXU inputs + bf16 logits writeback vs f32 reference -> small quant error.
    assert jnp.allclose(out, ref, atol=5e-2, rtol=5e-2), "mismatch vs reference"

    print("KERNEL_OK")
</pallas_src>

<mosaic_0001>
module attributes {stable_mosaic.version = 11 : i64} {
  func.func @_dnn_kernel(%arg0: i32, %arg1: memref<8x384xbf16, #tpu.memory_space<vmem>>, %arg2: memref<384x256xbf16, #tpu.memory_space<vmem>>, %arg3: memref<1x256xf32, #tpu.memory_space<vmem>>, %arg4: memref<256x256xbf16, #tpu.memory_space<vmem>>, %arg5: memref<1x256xf32, #tpu.memory_space<vmem>>, %arg6: memref<256x256xbf16, #tpu.memory_space<vmem>>, %arg7: memref<1x256xf32, #tpu.memory_space<vmem>>, %arg8: memref<256x512xbf16, #tpu.memory_space<vmem>>, %arg9: memref<1x512xf32, #tpu.memory_space<vmem>>, %arg10: memref<512x128xbf16, #tpu.memory_space<vmem>>, %arg11: memref<1x128xf32, #tpu.memory_space<vmem>>, %arg12: memref<8x128xbf16, #tpu.memory_space<vmem>>) attributes {dimension_semantics = [#tpu.dimension_semantics<parallel>], iteration_bounds = array<i64: 1>, scalar_prefetch = 0 : i64, scratch_operands = 0 : i64, tpu.core_type = #tpu.core_type<tc>, window_params = [{transform_indices = @transform_0, window_bounds = array<i64: 8, 384>}, {pipeline_mode = #tpu.pipeline_mode<synchronous>, transform_indices = @transform_1, window_bounds = array<i64: 384, 256>}, {pipeline_mode = #tpu.pipeline_mode<synchronous>, transform_indices = @transform_2, window_bounds = array<i64: 1, 256>}, {pipeline_mode = #tpu.pipeline_mode<synchronous>, transform_indices = @transform_3, window_bounds = array<i64: 256, 256>}, {pipeline_mode = #tpu.pipeline_mode<synchronous>, transform_indices = @transform_4, window_bounds = array<i64: 1, 256>}, {pipeline_mode = #tpu.pipeline_mode<synchronous>, transform_indices = @transform_5, window_bounds = array<i64: 256, 256>}, {pipeline_mode = #tpu.pipeline_mode<synchronous>, transform_indices = @transform_6, window_bounds = array<i64: 1, 256>}, {pipeline_mode = #tpu.pipeline_mode<synchronous>, transform_indices = @transform_7, window_bounds = array<i64: 256, 512>}, {pipeline_mode = #tpu.pipeline_mode<synchronous>, transform_indices = @transform_8, window_bounds = array<i64: 1, 512>}, {pipeline_mode = #tpu.pipeline_mode<synchronous>, transform_indices = @transform_9, window_bounds = array<i64: 512, 128>}, {pipeline_mode = #tpu.pipeline_mode<synchronous>, transform_indices = @transform_10, window_bounds = array<i64: 1, 128>}, {transform_indices = @transform_11, window_bounds = array<i64: 8, 128>}]} {
    %c0 = arith.constant 0 : index
    %c0_0 = arith.constant 0 : index
    %0 = vector.load %arg1[%c0, %c0_0] : memref<8x384xbf16, #tpu.memory_space<vmem>>, vector<8x384xbf16>
    %c0_1 = arith.constant 0 : index
    %c0_2 = arith.constant 0 : index
    %1 = vector.load %arg2[%c0_1, %c0_2] : memref<384x256xbf16, #tpu.memory_space<vmem>>, vector<384x256xbf16>
    %c0_3 = arith.constant 0 : index
    %c0_4 = arith.constant 0 : index
    %2 = vector.load %arg3[%c0_3, %c0_4] : memref<1x256xf32, #tpu.memory_space<vmem>>, vector<1x256xf32>
    %cst = arith.constant dense<0.000000e+00> : vector<8x256xf32>
    %3 = tpu.matmul %0, %1, %cst {dimension_numbers = #tpu.dot_dimension_numbers<[1], [0], [0], [1], [0, 0, 1, 1], [], []>} : vector<8x384xbf16>, vector<384x256xbf16>, vector<8x256xf32> -> vector<8x256xf32>
    %4 = vector.broadcast %2 : vector<1x256xf32> to vector<8x256xf32>
    %5 = arith.addf %3, %4 : vector<8x256xf32>
    %cst_5 = arith.constant 0.000000e+00 : f32
    %6 = vector.broadcast %cst_5 : f32 to vector<8x256xf32>
    %7 = arith.maximumf %5, %6 : vector<8x256xf32>
    %8 = arith.truncf %7 : vector<8x256xf32> to vector<8x256xbf16>
    %c0_6 = arith.constant 0 : index
    %c0_7 = arith.constant 0 : index
    %9 = vector.load %arg4[%c0_6, %c0_7] : memref<256x256xbf16, #tpu.memory_space<vmem>>, vector<256x256xbf16>
    %c0_8 = arith.constant 0 : index
    %c0_9 = arith.constant 0 : index
    %10 = vector.load %arg5[%c0_8, %c0_9] : memref<1x256xf32, #tpu.memory_space<vmem>>, vector<1x256xf32>
    %cst_10 = arith.constant dense<0.000000e+00> : vector<8x256xf32>
    %11 = tpu.matmul %8, %9, %cst_10 {dimension_numbers = #tpu.dot_dimension_numbers<[1], [0], [0], [1], [0, 0, 1, 1], [], []>} : vector<8x256xbf16>, vector<256x256xbf16>, vector<8x256xf32> -> vector<8x256xf32>
    %12 = vector.broadcast %10 : vector<1x256xf32> to vector<8x256xf32>
    %13 = arith.addf %11, %12 : vector<8x256xf32>
    %cst_11 = arith.constant 0.000000e+00 : f32
    %14 = vector.broadcast %cst_11 : f32 to vector<8x256xf32>
    %15 = arith.maximumf %13, %14 : vector<8x256xf32>
    %16 = arith.truncf %15 : vector<8x256xf32> to vector<8x256xbf16>
    %c0_12 = arith.constant 0 : index
    %c0_13 = arith.constant 0 : index
    %17 = vector.load %arg6[%c0_12, %c0_13] : memref<256x256xbf16, #tpu.memory_space<vmem>>, vector<256x256xbf16>
    %c0_14 = arith.constant 0 : index
    %c0_15 = arith.constant 0 : index
    %18 = vector.load %arg7[%c0_14, %c0_15] : memref<1x256xf32, #tpu.memory_space<vmem>>, vector<1x256xf32>
    %cst_16 = arith.constant dense<0.000000e+00> : vector<8x256xf32>
    %19 = tpu.matmul %16, %17, %cst_16 {dimension_numbers = #tpu.dot_dimension_numbers<[1], [0], [0], [1], [0, 0, 1, 1], [], []>} : vector<8x256xbf16>, vector<256x256xbf16>, vector<8x256xf32> -> vector<8x256xf32>
    %20 = vector.broadcast %18 : vector<1x256xf32> to vector<8x256xf32>
    %21 = arith.addf %19, %20 : vector<8x256xf32>
    %cst_17 = arith.constant 0.000000e+00 : f32
    %22 = vector.broadcast %cst_17 : f32 to vector<8x256xf32>
    %23 = arith.maximumf %21, %22 : vector<8x256xf32>
    %24 = arith.truncf %23 : vector<8x256xf32> to vector<8x256xbf16>
    %c0_18 = arith.constant 0 : index
    %c0_19 = arith.constant 0 : index
    %25 = vector.load %arg8[%c0_18, %c0_19] : memref<256x512xbf16, #tpu.memory_space<vmem>>, vector<256x512xbf16>
    %c0_20 = arith.constant 0 : index
    %c0_21 = arith.constant 0 : index
    %26 = vector.load %arg9[%c0_20, %c0_21] : memref<1x512xf32, #tpu.memory_space<vmem>>, vector<1x512xf32>
    %cst_22 = arith.constant dense<0.000000e+00> : vector<8x512xf32>
    %27 = tpu.matmul %24, %25, %cst_22 {dimension_numbers = #tpu.dot_dimension_numbers<[1], [0], [0], [1], [0, 0, 1, 1], [], []>} : vector<8x256xbf16>, vector<256x512xbf16>, vector<8x512xf32> -> vector<8x512xf32>
    %28 = vector.broadcast %26 : vector<1x512xf32> to vector<8x512xf32>
    %29 = arith.addf %27, %28 : vector<8x512xf32>
    %cst_23 = arith.constant 0.000000e+00 : f32
    %30 = vector.broadcast %cst_23 : f32 to vector<8x512xf32>
    %31 = arith.maximumf %29, %30 : vector<8x512xf32>
    %32 = arith.truncf %31 : vector<8x512xf32> to vector<8x512xbf16>
    %c0_24 = arith.constant 0 : index
    %c0_25 = arith.constant 0 : index
    %33 = vector.load %arg10[%c0_24, %c0_25] : memref<512x128xbf16, #tpu.memory_space<vmem>>, vector<512x128xbf16>
    %c0_26 = arith.constant 0 : index
    %c0_27 = arith.constant 0 : index
    %34 = vector.load %arg11[%c0_26, %c0_27] : memref<1x128xf32, #tpu.memory_space<vmem>>, vector<1x128xf32>
    %cst_28 = arith.constant dense<0.000000e+00> : vector<8x128xf32>
    %35 = tpu.matmul %32, %33, %cst_28 {dimension_numbers = #tpu.dot_dimension_numbers<[1], [0], [0], [1], [0, 0, 1, 1], [], []>} : vector<8x512xbf16>, vector<512x128xbf16>, vector<8x128xf32> -> vector<8x128xf32>
    %36 = vector.broadcast %34 : vector<1x128xf32> to vector<8x128xf32>
    %37 = arith.addf %35, %36 : vector<8x128xf32>
    %38 = arith.truncf %37 : vector<8x128xf32> to vector<8x128xbf16>
    %c0_29 = arith.constant 0 : index
    %c0_30 = arith.constant 0 : index
    %39 = vector.load %arg12[%c0_29, %c0_30] : memref<8x128xbf16, #tpu.memory_space<vmem>>, vector<8x128xbf16>
    tpu.vector_store %arg12[%c0_29, %c0_30], %38 {strides = array<i32>} : memref<8x128xbf16, #tpu.memory_space<vmem>>, vector<8x128xbf16>,
    return
  }
  func.func @transform_0(%arg0: i32) -> (i32, i32) {
    %c0_i32 = arith.constant 0 : i32
    %c0_i32_0 = arith.constant 0 : i32
    return %arg0, %c0_i32 : i32, i32
  }
  func.func @transform_1(%arg0: i32) -> (i32, i32) {
    %c0_i32 = arith.constant 0 : i32
    %c0_i32_0 = arith.constant 0 : i32
    %c0_i32_1 = arith.constant 0 : i32
    return %c0_i32, %c0_i32_0 : i32, i32
  }
  func.func @transform_2(%arg0: i32) -> (i32, i32) {
    %c0_i32 = arith.constant 0 : i32
    %c0_i32_0 = arith.constant 0 : i32
    %c0_i32_1 = arith.constant 0 : i32
    return %c0_i32, %c0_i32_0 : i32, i32
  }
  func.func @transform_3(%arg0: i32) -> (i32, i32) {
    %c0_i32 = arith.constant 0 : i32
    %c0_i32_0 = arith.constant 0 : i32
    %c0_i32_1 = arith.constant 0 : i32
    return %c0_i32, %c0_i32_0 : i32, i32
  }
  func.func @transform_4(%arg0: i32) -> (i32, i32) {
    %c0_i32 = arith.constant 0 : i32
    %c0_i32_0 = arith.constant 0 : i32
    %c0_i32_1 = arith.constant 0 : i32
    return %c0_i32, %c0_i32_0 : i32, i32
  }
  func.func @transform_5(%arg0: i32) -> (i32, i32) {
    %c0_i32 = arith.constant 0 : i32
    %c0_i32_0 = arith.constant 0 : i32
    %c0_i32_1 = arith.constant 0 : i32
    return %c0_i32, %c0_i32_0 : i32, i32
  }
  func.func @transform_6(%arg0: i32) -> (i32, i32) {
    %c0_i32 = arith.constant 0 : i32
    %c0_i32_0 = arith.constant 0 : i32
    %c0_i32_1 = arith.constant 0 : i32
    return %c0_i32, %c0_i32_0 : i32, i32
  }
  func.func @transform_7(%arg0: i32) -> (i32, i32) {
    %c0_i32 = arith.constant 0 : i32
    %c0_i32_0 = arith.constant 0 : i32
    %c0_i32_1 = arith.constant 0 : i32
    return %c0_i32, %c0_i32_0 : i32, i32
  }
  func.func @transform_8(%arg0: i32) -> (i32, i32) {
    %c0_i32 = arith.constant 0 : i32
    %c0_i32_0 = arith.constant 0 : i32
    %c0_i32_1 = arith.constant 0 : i32
    return %c0_i32, %c0_i32_0 : i32, i32
  }
  func.func @transform_9(%arg0: i32) -> (i32, i32) {
    %c0_i32 = arith.constant 0 : i32
    %c0_i32_0 = arith.constant 0 : i32
    %c0_i32_1 = arith.constant 0 : i32
    return %c0_i32, %c0_i32_0 : i32, i32
  }
  func.func @transform_10(%arg0: i32) -> (i32, i32) {
    %c0_i32 = arith.constant 0 : i32
    %c0_i32_0 = arith.constant 0 : i32
    %c0_i32_1 = arith.constant 0 : i32
    return %c0_i32, %c0_i32_0 : i32, i32
  }
  func.func @transform_11(%arg0: i32) -> (i32, i32) {
    %c0_i32 = arith.constant 0 : i32
    %c0_i32_0 = arith.constant 0 : i32
    return %arg0, %c0_i32 : i32, i32
  }
}

module attributes {stable_mosaic.version = 11 : i64} {
  func.func @_dnn_kernel(%arg0: i32, %arg1: memref<8x384xbf16, #tpu.memory_space<vmem>>, %arg2: memref<384x256xbf16, #tpu.memory_space<vmem>>, %arg3: memref<1x256xf32, #tpu.memory_space<vmem>>, %arg4: memref<256x256xbf16, #tpu.memory_space<vmem>>, %arg5: memref<1x256xf32, #tpu.memory_space<vmem>>, %arg6: memref<256x256xbf16, #tpu.memory_space<vmem>>, %arg7: memref<1x256xf32, #tpu.memory_space<vmem>>, %arg8: memref<256x512xbf16, #tpu.memory_space<vmem>>, %arg9: memref<1x512xf32, #tpu.memory_space<vmem>>, %arg10: memref<512x128xbf16, #tpu.memory_space<vmem>>, %arg11: memref<1x128xf32, #tpu.memory_space<vmem>>, %arg12: memref<8x128xbf16, #tpu.memory_space<vmem>>) attributes {dimension_semantics = [#tpu.dimension_semantics<parallel>], iteration_bounds = array<i64: 1>, scalar_prefetch = 0 : i64, scratch_operands = 0 : i64, tpu.core_type = #tpu.core_type<tc>, window_params = [{transform_indices = @transform_0, window_bounds = array<i64: 8, 384>}, {pipeline_mode = #tpu.pipeline_mode<synchronous>, transform_indices = @transform_1, window_bounds = array<i64: 384, 256>}, {pipeline_mode = #tpu.pipeline_mode<synchronous>, transform_indices = @transform_2, window_bounds = array<i64: 1, 256>}, {pipeline_mode = #tpu.pipeline_mode<synchronous>, transform_indices = @transform_3, window_bounds = array<i64: 256, 256>}, {pipeline_mode = #tpu.pipeline_mode<synchronous>, transform_indices = @transform_4, window_bounds = array<i64: 1, 256>}, {pipeline_mode = #tpu.pipeline_mode<synchronous>, transform_indices = @transform_5, window_bounds = array<i64: 256, 256>}, {pipeline_mode = #tpu.pipeline_mode<synchronous>, transform_indices = @transform_6, window_bounds = array<i64: 1, 256>}, {pipeline_mode = #tpu.pipeline_mode<synchronous>, transform_indices = @transform_7, window_bounds = array<i64: 256, 512>}, {pipeline_mode = #tpu.pipeline_mode<synchronous>, transform_indices = @transform_8, window_bounds = array<i64: 1, 512>}, {pipeline_mode = #tpu.pipeline_mode<synchronous>, transform_indices = @transform_9, window_bounds = array<i64: 512, 128>}, {pipeline_mode = #tpu.pipeline_mode<synchronous>, transform_indices = @transform_10, window_bounds = array<i64: 1, 128>}, {transform_indices = @transform_11, window_bounds = array<i64: 8, 128>}]} {
    %c0 = arith.constant 0 : index
    %c0_0 = arith.constant 0 : index
    %0 = vector.load %arg1[%c0, %c0_0] : memref<8x384xbf16, #tpu.memory_space<vmem>>, vector<8x384xbf16>
    %c0_1 = arith.constant 0 : index
    %c0_2 = arith.constant 0 : index
    %1 = vector.load %arg2[%c0_1, %c0_2] : memref<384x256xbf16, #tpu.memory_space<vmem>>, vector<384x256xbf16>
    %c0_3 = arith.constant 0 : index
    %c0_4 = arith.constant 0 : index
    %2 = vector.load %arg3[%c0_3, %c0_4] : memref<1x256xf32, #tpu.memory_space<vmem>>, vector<1x256xf32>
    %cst = arith.constant dense<0.000000e+00> : vector<8x256xf32>
    %3 = tpu.matmul %0, %1, %cst {dimension_numbers = #tpu.dot_dimension_numbers<[1], [0], [0], [1], [0, 0, 1, 1], [], []>} : vector<8x384xbf16>, vector<384x256xbf16>, vector<8x256xf32> -> vector<8x256xf32>
    %4 = vector.broadcast %2 : vector<1x256xf32> to vector<8x256xf32>
    %5 = arith.addf %3, %4 : vector<8x256xf32>
    %cst_5 = arith.constant 0.000000e+00 : f32
    %6 = vector.broadcast %cst_5 : f32 to vector<8x256xf32>
    %7 = arith.maximumf %5, %6 : vector<8x256xf32>
    %8 = arith.truncf %7 : vector<8x256xf32> to vector<8x256xbf16>
    %c0_6 = arith.constant 0 : index
    %c0_7 = arith.constant 0 : index
    %9 = vector.load %arg4[%c0_6, %c0_7] : memref<256x256xbf16, #tpu.memory_space<vmem>>, vector<256x256xbf16>
    %c0_8 = arith.constant 0 : index
    %c0_9 = arith.constant 0 : index
    %10 = vector.load %arg5[%c0_8, %c0_9] : memref<1x256xf32, #tpu.memory_space<vmem>>, vector<1x256xf32>
    %cst_10 = arith.constant dense<0.000000e+00> : vector<8x256xf32>
    %11 = tpu.matmul %8, %9, %cst_10 {dimension_numbers = #tpu.dot_dimension_numbers<[1], [0], [0], [1], [0, 0, 1, 1], [], []>} : vector<8x256xbf16>, vector<256x256xbf16>, vector<8x256xf32> -> vector<8x256xf32>
    %12 = vector.broadcast %10 : vector<1x256xf32> to vector<8x256xf32>
    %13 = arith.addf %11, %12 : vector<8x256xf32>
    %cst_11 = arith.constant 0.000000e+00 : f32
    %14 = vector.broadcast %cst_11 : f32 to vector<8x256xf32>
    %15 = arith.maximumf %13, %14 : vector<8x256xf32>
    %16 = arith.truncf %15 : vector<8x256xf32> to vector<8x256xbf16>
    %c0_12 = arith.constant 0 : index
    %c0_13 = arith.constant 0 : index
    %17 = vector.load %arg6[%c0_12, %c0_13] : memref<256x256xbf16, #tpu.memory_space<vmem>>, vector<256x256xbf16>
    %c0_14 = arith.constant 0 : index
    %c0_15 = arith.constant 0 : index
    %18 = vector.load %arg7[%c0_14, %c0_15] : memref<1x256xf32, #tpu.memory_space<vmem>>, vector<1x256xf32>
    %cst_16 = arith.constant dense<0.000000e+00> : vector<8x256xf32>
    %19 = tpu.matmul %16, %17, %cst_16 {dimension_numbers = #tpu.dot_dimension_numbers<[1], [0], [0], [1], [0, 0, 1, 1], [], []>} : vector<8x256xbf16>, vector<256x256xbf16>, vector<8x256xf32> -> vector<8x256xf32>
    %20 = vector.broadcast %18 : vector<1x256xf32> to vector<8x256xf32>
    %21 = arith.addf %19, %20 : vector<8x256xf32>
    %cst_17 = arith.constant 0.000000e+00 : f32
    %22 = vector.broadcast %cst_17 : f32 to vector<8x256xf32>
    %23 = arith.maximumf %21, %22 : vector<8x256xf32>
    %24 = arith.truncf %23 : vector<8x256xf32> to vector<8x256xbf16>
    %c0_18 = arith.constant 0 : index
    %c0_19 = arith.constant 0 : index
    %25 = vector.load %arg8[%c0_18, %c0_19] : memref<256x512xbf16, #tpu.memory_space<vmem>>, vector<256x512xbf16>
    %c0_20 = arith.constant 0 : index
    %c0_21 = arith.constant 0 : index
    %26 = vector.load %arg9[%c0_20, %c0_21] : memref<1x512xf32, #tpu.memory_space<vmem>>, vector<1x512xf32>
    %cst_22 = arith.constant dense<0.000000e+00> : vector<8x512xf32>
    %27 = tpu.matmul %24, %25, %cst_22 {dimension_numbers = #tpu.dot_dimension_numbers<[1], [0], [0], [1], [0, 0, 1, 1], [], []>} : vector<8x256xbf16>, vector<256x512xbf16>, vector<8x512xf32> -> vector<8x512xf32>
    %28 = vector.broadcast %26 : vector<1x512xf32> to vector<8x512xf32>
    %29 = arith.addf %27, %28 : vector<8x512xf32>
    %cst_23 = arith.constant 0.000000e+00 : f32
    %30 = vector.broadcast %cst_23 : f32 to vector<8x512xf32>
    %31 = arith.maximumf %29, %30 : vector<8x512xf32>
    %32 = arith.truncf %31 : vector<8x512xf32> to vector<8x512xbf16>
    %c0_24 = arith.constant 0 : index
    %c0_25 = arith.constant 0 : index
    %33 = vector.load %arg10[%c0_24, %c0_25] : memref<512x128xbf16, #tpu.memory_space<vmem>>, vector<512x128xbf16>
    %c0_26 = arith.constant 0 : index
    %c0_27 = arith.constant 0 : index
    %34 = vector.load %arg11[%c0_26, %c0_27] : memref<1x128xf32, #tpu.memory_space<vmem>>, vector<1x128xf32>
    %cst_28 = arith.constant dense<0.000000e+00> : vector<8x128xf32>
    %35 = tpu.matmul %32, %33, %cst_28 {dimension_numbers = #tpu.dot_dimension_numbers<[1], [0], [0], [1], [0, 0, 1, 1], [], []>} : vector<8x512xbf16>, vector<512x128xbf16>, vector<8x128xf32> -> vector<8x128xf32>
    %36 = vector.broadcast %34 : vector<1x128xf32> to vector<8x128xf32>
    %37 = arith.addf %35, %36 : vector<8x128xf32>
    %38 = arith.truncf %37 : vector<8x128xf32> to vector<8x128xbf16>
    %c0_29 = arith.constant 0 : index
    %c0_30 = arith.constant 0 : index
    %39 = vector.load %arg12[%c0_29, %c0_30] : memref<8x128xbf16, #tpu.memory_space<vmem>>, vector<8x128xbf16>
    tpu.vector_store %arg12[%c0_29, %c0_30], %38 {strides = array<i32>} : memref<8x128xbf16, #tpu.memory_space<vmem>>, vector<8x128xbf16>,
    return
  }
  func.func @transform_0(%arg0: i32) -> (i32, i32) {
    %c0_i32 = arith.constant 0 : i32
    %c0_i32_0 = arith.constant 0 : i32
    return %arg0, %c0_i32 : i32, i32
  }
  func.func @transform_1(%arg0: i32) -> (i32, i32) {
    %c0_i32 = arith.constant 0 : i32
    %c0_i32_0 = arith.constant 0 : i32
    %c0_i32_1 = arith.constant 0 : i32
    return %c0_i32, %c0_i32_0 : i32, i32
  }
  func.func @transform_2(%arg0: i32) -> (i32, i32) {
    %c0_i32 = arith.constant 0 : i32
    %c0_i32_0 = arith.constant 0 : i32
    %c0_i32_1 = arith.constant 0 : i32
    return %c0_i32, %c0_i32_0 : i32, i32
  }
  func.func @transform_3(%arg0: i32) -> (i32, i32) {
    %c0_i32 = arith.constant 0 : i32
    %c0_i32_0 = arith.constant 0 : i32
    %c0_i32_1 = arith.constant 0 : i32
    return %c0_i32, %c0_i32_0 : i32, i32
  }
  func.func @transform_4(%arg0: i32) -> (i32, i32) {
    %c0_i32 = arith.constant 0 : i32
    %c0_i32_0 = arith.constant 0 : i32
    %c0_i32_1 = arith.constant 0 : i32
    return %c0_i32, %c0_i32_0 : i32, i32
  }
  func.func @transform_5(%arg0: i32) -> (i32, i32) {
    %c0_i32 = arith.constant 0 : i32
    %c0_i32_0 = arith.constant 0 : i32
    %c0_i32_1 = arith.constant 0 : i32
    return %c0_i32, %c0_i32_0 : i32, i32
  }
  func.func @transform_6(%arg0: i32) -> (i32, i32) {
    %c0_i32 = arith.constant 0 : i32
    %c0_i32_0 = arith.constant 0 : i32
    %c0_i32_1 = arith.constant 0 : i32
    return %c0_i32, %c0_i32_0 : i32, i32
  }
  func.func @transform_7(%arg0: i32) -> (i32, i32) {
    %c0_i32 = arith.constant 0 : i32
    %c0_i32_0 = arith.constant 0 : i32
    %c0_i32_1 = arith.constant 0 : i32
    return %c0_i32, %c0_i32_0 : i32, i32
  }
  func.func @transform_8(%arg0: i32) -> (i32, i32) {
    %c0_i32 = arith.constant 0 : i32
    %c0_i32_0 = arith.constant 0 : i32
    %c0_i32_1 = arith.constant 0 : i32
    return %c0_i32, %c0_i32_0 : i32, i32
  }
  func.func @transform_9(%arg0: i32) -> (i32, i32) {
    %c0_i32 = arith.constant 0 : i32
    %c0_i32_0 = arith.constant 0 : i32
    %c0_i32_1 = arith.constant 0 : i32
    return %c0_i32, %c0_i32_0 : i32, i32
  }
  func.func @transform_10(%arg0: i32) -> (i32, i32) {
    %c0_i32 = arith.constant 0 : i32
    %c0_i32_0 = arith.constant 0 : i32
    %c0_i32_1 = arith.constant 0 : i32
    return %c0_i32, %c0_i32_0 : i32, i32
  }
  func.func @transform_11(%arg0: i32) -> (i32, i32) {
    %c0_i32 = arith.constant 0 : i32
    %c0_i32_0 = arith.constant 0 : i32
    return %arg0, %c0_i32 : i32, i32
  }
}

</mosaic_0001>

<llo_original>
// kernel: tpu_custom_call.1
$region0: #{tpu_custom_call.1}
  #allocation0 [shape = 'u32[]', space=smem, size = 0x4, offset = 0x4, fixed_abs, tag = 'smem constant byte address 0x4 - core index']
  #allocation1 [shape = 'u32[144,128]{1,0:T(1,128)}', space=vmem, size = 0x12000, scoped, tag = 'internal scratch']
  %s0 = inlined_call_operand.hbm [shape: bf16[8,384], index: 0, kind: input, shape index: {}]
  %s1 = inlined_call_operand.hbm [shape: bf16[384,256], index: 1, kind: input, shape index: {}]
  %s2 = inlined_call_operand.vmem [shape: f32[1,256], index: 2, kind: input, shape index: {}]
  %s3 = inlined_call_operand.hbm [shape: bf16[256,256], index: 3, kind: input, shape index: {}]
  %s4 = inlined_call_operand.vmem [shape: f32[1,256], index: 4, kind: input, shape index: {}]
  %s5 = inlined_call_operand.hbm [shape: bf16[256,256], index: 5, kind: input, shape index: {}]
  %s6 = inlined_call_operand.vmem [shape: f32[1,256], index: 6, kind: input, shape index: {}]
  %s7 = inlined_call_operand.hbm [shape: bf16[256,512], index: 7, kind: input, shape index: {}]
  %s8 = inlined_call_operand.vmem [shape: f32[1,512], index: 8, kind: input, shape index: {}]
  %s9 = inlined_call_operand.hbm [shape: bf16[512,128], index: 9, kind: input, shape index: {}]
  %s10 = inlined_call_operand.vmem [shape: f32[1,128], index: 10, kind: input, shape index: {}]
  %s11 = inlined_call_operand.hbm [shape: bf16[8,128], index: 11, kind: output, shape index: {}]
  %s12 = sld [smem:[#allocation0]]
  $region78: #{tpu_custom_call.1} parent=0
    _
  %s14 = ssub.s32 1, %s12
  %s15 = scalar_select 0, %s14, %s12
  $region1: #{tpu_custom_call.1} parent=0
    #allocation2 [shape = 'u8[6144]{0}', space=vmem, size = 0x1800, scoped, tag = 'input window, operand 0, single buffered']
    #allocation3 [shape = 's32[1]{0}', space=sflag, size = 0x4, scoped, tag = 'scoped memory for tpu_custom_call.1']
    #allocation4 [shape = 's32[1]{0}', space=sflag, size = 0x4, scoped, tag = 'scoped memory for tpu_custom_call.1']
    #allocation5 [shape = 'u8[196608]{0}', space=vmem, size = 0x30000, scoped, tag = 'input window, operand 1, single buffered']
    #allocation6 [shape = 's32[1]{0}', space=sflag, size = 0x4, scoped, tag = 'scoped memory for tpu_custom_call.1']
    #allocation7 [shape = 'u8[131072]{0}', space=vmem, size = 0x20000, scoped, tag = 'input window, operand 3, single buffered']
    #allocation8 [shape = 'u8[131072]{0}', space=vmem, size = 0x20000, scoped, tag = 'input window, operand 5, single buffered']
    #allocation9 [shape = 's32[1]{0}', space=sflag, size = 0x4, scoped, tag = 'scoped memory for tpu_custom_call.1']
    #allocation10 [shape = 'u8[262144]{0}', space=vmem, size = 0x40000, scoped, tag = 'input window, operand 7, single buffered']
    #allocation11 [shape = 'u8[131072]{0}', space=vmem, size = 0x20000, scoped, tag = 'input window, operand 9, single buffered']
    #allocation12 [shape = 's32[1]{0}', space=sflag, size = 0x4, scoped, tag = 'scoped memory for tpu_custom_call.1']
    #allocation13 [shape = 'u8[2048]{0}', space=vmem, size = 0x800, scoped, tag = 'output window, operand 0, single buffered']
    %16 = vsyncpa [#allocation3], 0
    %17 = vsyncpa [#allocation6], 0
    %18 = vsyncpa [#allocation9], 0
    %19 = vsyncpa [#allocation12], 0
    %20 = vsyncpa [#allocation4], 0
    // Predicated region
    $region2: #{tpu_custom_call.1} parent=1 // pred_check
      _
    $region3: #{tpu_custom_call.1} parent=1 // pred_check_branch
      %22 = sbr.rel (0) target = $region5
    $region4: #{tpu_custom_call.1} parent=1 // pred_region
      %s24 = ssub.s32 192, 192
      %25 = vsyncadd [#allocation3], %s24
      %s27 = sshll.u32 [#allocation2], 4
      %s28 = int_to_ptr.vmem [resolvable:$true] %s27
      %30 = dma.hbm_to_vmem [thread:$0]  %s0, 192, %s28, [#allocation3]
    $region5: #{tpu_custom_call.1} parent=1 // pred_fallthru
      _
    // Predicated region
    $region6: #{tpu_custom_call.1} parent=1 // pred_check
      _
    $region7: #{tpu_custom_call.1} parent=1 // pred_check_branch
      %32 = sbr.rel (0) target = $region9
    $region8: #{tpu_custom_call.1} parent=1 // pred_region
      %s34 = ssub.s32 6144, 6144
      %35 = vsyncadd [#allocation6], %s34
      %s36 = sshll.u32 [#allocation5], 4
      %s37 = int_to_ptr.vmem [resolvable:$true] %s36
      %42 = dma.hbm_to_vmem [thread:$0]  %s1, 6144, %s37, [#allocation6], 128, 128, 8
    $region9: #{tpu_custom_call.1} parent=1 // pred_fallthru
      _
    // Predicated region
    $region10: #{tpu_custom_call.1} parent=1 // pred_check
      _
    $region11: #{tpu_custom_call.1} parent=1 // pred_check_branch
      %44 = sbr.rel (0) target = $region13
    $region12: #{tpu_custom_call.1} parent=1 // pred_region
      _
    $region13: #{tpu_custom_call.1} parent=1 // pred_fallthru
      _
    // Predicated region
    $region14: #{tpu_custom_call.1} parent=1 // pred_check
      _
    $region15: #{tpu_custom_call.1} parent=1 // pred_check_branch
      %46 = sbr.rel (0) target = $region17
    $region16: #{tpu_custom_call.1} parent=1 // pred_region
      %s48 = ssub.s32 4096, 4096
      %49 = vsyncadd [#allocation6], %s48
      %s50 = sshll.u32 [#allocation7], 4
      %s51 = int_to_ptr.vmem [resolvable:$true] %s50
      %56 = dma.hbm_to_vmem [thread:$0]  %s3, 4096, %s51, [#allocation6], 128, 128, 8
    $region17: #{tpu_custom_call.1} parent=1 // pred_fallthru
      _
    // Predicated region
    $region18: #{tpu_custom_call.1} parent=1 // pred_check
      _
    $region19: #{tpu_custom_call.1} parent=1 // pred_check_branch
      %58 = sbr.rel (0) target = $region21
    $region20: #{tpu_custom_call.1} parent=1 // pred_region
      _
    $region21: #{tpu_custom_call.1} parent=1 // pred_fallthru
      _
    // Predicated region
    $region22: #{tpu_custom_call.1} parent=1 // pred_check
      _
    $region23: #{tpu_custom_call.1} parent=1 // pred_check_branch
      %60 = sbr.rel (0) target = $region25
    $region24: #{tpu_custom_call.1} parent=1 // pred_region
      %s62 = ssub.s32 4096, 4096
      %63 = vsyncadd [#allocation9], %s62
      %s64 = sshll.u32 [#allocation8], 4
      %s65 = int_to_ptr.vmem [resolvable:$true] %s64
      %70 = dma.hbm_to_vmem [thread:$0]  %s5, 4096, %s65, [#allocation9], 128, 128, 8
    $region25: #{tpu_custom_call.1} parent=1 // pred_fallthru
      _
    // Predicated region
    $region26: #{tpu_custom_call.1} parent=1 // pred_check
      _
    $region27: #{tpu_custom_call.1} parent=1 // pred_check_branch
      %72 = sbr.rel (0) target = $region29
    $region28: #{tpu_custom_call.1} parent=1 // pred_region
      _
    $region29: #{tpu_custom_call.1} parent=1 // pred_fallthru
      _
    // Predicated region
    $region30: #{tpu_custom_call.1} parent=1 // pred_check
      _
    $region31: #{tpu_custom_call.1} parent=1 // pred_check_branch
      %74 = sbr.rel (0) target = $region33
    $region32: #{tpu_custom_call.1} parent=1 // pred_region
      %s76 = ssub.s32 8192, 8192
      %77 = vsyncadd [#allocation9], %s76
      %s78 = sshll.u32 [#allocation10], 4
      %s79 = int_to_ptr.vmem [resolvable:$true] %s78
      %84 = dma.hbm_to_vmem [thread:$0]  %s7, 8192, %s79, [#allocation9], 256, 256, 16
    $region33: #{tpu_custom_call.1} parent=1 // pred_fallthru
      _
    // Predicated region
    $region34: #{tpu_custom_call.1} parent=1 // pred_check
      _
    $region35: #{tpu_custom_call.1} parent=1 // pred_check_branch
      %86 = sbr.rel (0) target = $region37
    $region36: #{tpu_custom_call.1} parent=1 // pred_region
      _
    $region37: #{tpu_custom_call.1} parent=1 // pred_fallthru
      _
    // Predicated region
    $region38: #{tpu_custom_call.1} parent=1 // pred_check
      _
    $region39: #{tpu_custom_call.1} parent=1 // pred_check_branch
      %88 = sbr.rel (0) target = $region41
    $region40: #{tpu_custom_call.1} parent=1 // pred_region
      %s90 = ssub.s32 4096, 4096
      %91 = vsyncadd [#allocation12], %s90
      %s92 = sshll.u32 [#allocation11], 4
      %s93 = int_to_ptr.vmem [resolvable:$true] %s92
      %98 = dma.hbm_to_vmem [thread:$0]  %s9, 4096, %s93, [#allocation12], 64, 64, 4
    $region41: #{tpu_custom_call.1} parent=1 // pred_fallthru
      _
    // Predicated region
    $region42: #{tpu_custom_call.1} parent=1 // pred_check
      _
    $region43: #{tpu_custom_call.1} parent=1 // pred_check_branch
      %100 = sbr.rel (0) target = $region45
    $region44: #{tpu_custom_call.1} parent=1 // pred_region
      _
    $region45: #{tpu_custom_call.1} parent=1 // pred_fallthru
      _
    // Predicated region
    $region46: #{tpu_custom_call.1} parent=1 // pred_check
      _
    $region47: #{tpu_custom_call.1} parent=1 // pred_check_branch
      %102 = sbr.rel (0) target = $region49
    $region48: #{tpu_custom_call.1} parent=1 // pred_region
      %103 = dma.done [#allocation3], 192
    $region49: #{tpu_custom_call.1} parent=1 // pred_fallthru
      _
    // Predicated region
    $region50: #{tpu_custom_call.1} parent=1 // pred_check
      _
    $region51: #{tpu_custom_call.1} parent=1 // pred_check_branch
      %105 = sbr.rel (0) target = $region53
    $region52: #{tpu_custom_call.1} parent=1 // pred_region
      %106 = dma.done [#allocation6], 6144
    $region53: #{tpu_custom_call.1} parent=1 // pred_fallthru
      _
    // Predicated region
    $region54: #{tpu_custom_call.1} parent=1 // pred_check
      _
    $region55: #{tpu_custom_call.1} parent=1 // pred_check_branch
      %108 = sbr.rel (0) target = $region57
    $region56: #{tpu_custom_call.1} parent=1 // pred_region
      %109 = dma.done [#allocation6], 4096
    $region57: #{tpu_custom_call.1} parent=1 // pred_fallthru
      _
    // Predicated region
    $region58: #{tpu_custom_call.1} parent=1 // pred_check
      _
    $region59: #{tpu_custom_call.1} parent=1 // pred_check_branch
      %111 = sbr.rel (0) target = $region61
    $region60: #{tpu_custom_call.1} parent=1 // pred_region
      %112 = dma.done [#allocation9], 4096
    $region61: #{tpu_custom_call.1} parent=1 // pred_fallthru
      _
    // Predicated region
    $region62: #{tpu_custom_call.1} parent=1 // pred_check
      _
    $region63: #{tpu_custom_call.1} parent=1 // pred_check_branch
      %114 = sbr.rel (0) target = $region65
    $region64: #{tpu_custom_call.1} parent=1 // pred_region
      %115 = dma.done [#allocation9], 8192
    $region65: #{tpu_custom_call.1} parent=1 // pred_fallthru
      _
    // Predicated region
    $region66: #{tpu_custom_call.1} parent=1 // pred_check
      _
    $region67: #{tpu_custom_call.1} parent=1 // pred_check_branch
      %117 = sbr.rel (0) target = $region69
    $region68: #{tpu_custom_call.1} parent=1 // pred_region
      %118 = dma.done [#allocation12], 4096
    $region69: #{tpu_custom_call.1} parent=1 // pred_fallthru
      _
    %v120 = vld [vmem:[#allocation2] sm:$0xff]
    %v121 = vld [vmem:[#allocation2 + $0x8] sm:$0xf]
    %v122 = vld [vmem:[#allocation5] sm:$0xff]
    %v123 = vld [vmem:[#allocation5 + $0x8] sm:$0xff]
    %v124 = vld [vmem:[#allocation5 + $0x10] sm:$0xff]
    %v125 = vld [vmem:[#allocation5 + $0x18] sm:$0xff]
    %v126 = vld [vmem:[#allocation5 + $0x20] sm:$0xff]
    %v127 = vld [vmem:[#allocation5 + $0x28] sm:$0xff]
    %v128 = vld [vmem:[#allocation5 + $0x30] sm:$0xff]
    %v129 = vld [vmem:[#allocation5 + $0x38] sm:$0xff]
    %v130 = vld [vmem:[#allocation5 + $0x40] sm:$0xff]
    %v131 = vld [vmem:[#allocation5 + $0x48] sm:$0xff]
    %v132 = vld [vmem:[#allocation5 + $0x50] sm:$0xff]
    %v133 = vld [vmem:[#allocation5 + $0x58] sm:$0xff]
    %v134 = vld [vmem:[#allocation5 + $0x60] sm:$0xff]
    %v135 = vld [vmem:[#allocation5 + $0x68] sm:$0xff]
    %v136 = vld [vmem:[#allocation5 + $0x70] sm:$0xff]
    %v137 = vld [vmem:[#allocation5 + $0x78] sm:$0xff]
    %v138 = vld [vmem:[#allocation5 + $0x80] sm:$0xff]
    %v139 = vld [vmem:[#allocation5 + $0x88] sm:$0xff]
    %v140 = vld [vmem:[#allocation5 + $0x90] sm:$0xff]
    %v141 = vld [vmem:[#allocation5 + $0x98] sm:$0xff]
    %v142 = vld [vmem:[#allocation5 + $0xa0] sm:$0xff]
    %v143 = vld [vmem:[#allocation5 + $0xa8] sm:$0xff]
    %v144 = vld [vmem:[#allocation5 + $0xb0] sm:$0xff]
    %v145 = vld [vmem:[#allocation5 + $0xb8] sm:$0xff]
    %v146 = vld [vmem:[#allocation5 + $0xc0] sm:$0xff]
    %v147 = vld [vmem:[#allocation5 + $0xc8] sm:$0xff]
    %v148 = vld [vmem:[#allocation5 + $0xd0] sm:$0xff]
    %v149 = vld [vmem:[#allocation5 + $0xd8] sm:$0xff]
    %v150 = vld [vmem:[#allocation5 + $0xe0] sm:$0xff]
    %v151 = vld [vmem:[#allocation5 + $0xe8] sm:$0xff]
    %v152 = vld [vmem:[#allocation5 + $0xf0] sm:$0xff]
    %v153 = vld [vmem:[#allocation5 + $0xf8] sm:$0xff]
    %v154 = vld [vmem:[#allocation5 + $0x100] sm:$0xff]
    %v155 = vld [vmem:[#allocation5 + $0x108] sm:$0xff]
    %v156 = vld [vmem:[#allocation5 + $0x110] sm:$0xff]
    %v157 = vld [vmem:[#allocation5 + $0x118] sm:$0xff]
    %v158 = vld [vmem:[#allocation5 + $0x120] sm:$0xff]
    %v159 = vld [vmem:[#allocation5 + $0x128] sm:$0xff]
    %v160 = vld [vmem:[#allocation5 + $0x130] sm:$0xff]
    %v161 = vld [vmem:[#allocation5 + $0x138] sm:$0xff]
    %v162 = vld [vmem:[#allocation5 + $0x140] sm:$0xff]
    %v163 = vld [vmem:[#allocation5 + $0x148] sm:$0xff]
    %v164 = vld [vmem:[#allocation5 + $0x150] sm:$0xff]
    %v165 = vld [vmem:[#allocation5 + $0x158] sm:$0xff]
    %v166 = vld [vmem:[#allocation5 + $0x160] sm:$0xff]
    %v167 = vld [vmem:[#allocation5 + $0x168] sm:$0xff]
    %v168 = vld [vmem:[#allocation5 + $0x170] sm:$0xff]
    %v169 = vld [vmem:[#allocation5 + $0x178] sm:$0xff]
    %v170 = vld [vmem:[%s2] sm:$0x3]
    %v172 = vlaneseq
    %v173 = vshrl.u32 %v172, 7
    %v174 = vsub.s32 0, %v173
    %v175 = vrot.slane %v170, %v174
    %v176 = vlaneseq
    %v177 = vshrl.u32 %v176, 7
    %v178 = vsub.s32 1, %v177
    %v179 = vrot.slane %v170, %v178
    %v184 = vunpack.c.l.b16 %v120
    %v185 = vunpack.c.h.b16 %v120
    %v186 = vunpack.c.l.b16 %v121
    %v187 = vpack.c.b16 %v184, %v184
    %v188 = vpack.c.b16 %v185, %v185
    %v189 = vpack.c.b16 %v186, %v186
    %v241 = vunpack.c.l.b16 %v122
    %v242 = vunpack.c.h.b16 %v122
    %v243 = vunpack.c.l.b16 %v123
    %v244 = vunpack.c.h.b16 %v123
    %v245 = vunpack.c.l.b16 %v124
    %v246 = vunpack.c.h.b16 %v124
    %v247 = vunpack.c.l.b16 %v125
    %v248 = vunpack.c.h.b16 %v125
    %v249 = vunpack.c.l.b16 %v126
    %v250 = vunpack.c.h.b16 %v126
    %v251 = vunpack.c.l.b16 %v127
    %v252 = vunpack.c.h.b16 %v127
    %v253 = vunpack.c.l.b16 %v128
    %v254 = vunpack.c.h.b16 %v128
    %v255 = vunpack.c.l.b16 %v129
    %v256 = vunpack.c.h.b16 %v129
    %v257 = vunpack.c.l.b16 %v130
    %v258 = vunpack.c.h.b16 %v130
    %v259 = vunpack.c.l.b16 %v131
    %v260 = vunpack.c.h.b16 %v131
    %v261 = vunpack.c.l.b16 %v132
    %v262 = vunpack.c.h.b16 %v132
    %v263 = vunpack.c.l.b16 %v133
    %v264 = vunpack.c.h.b16 %v133
    %v265 = vunpack.c.l.b16 %v134
    %v266 = vunpack.c.h.b16 %v134
    %v267 = vunpack.c.l.b16 %v135
    %v268 = vunpack.c.h.b16 %v135
    %v269 = vunpack.c.l.b16 %v136
    %v270 = vunpack.c.h.b16 %v136
    %v271 = vunpack.c.l.b16 %v137
    %v272 = vunpack.c.h.b16 %v137
    %v273 = vunpack.c.l.b16 %v138
    %v274 = vunpack.c.h.b16 %v138
    %v275 = vunpack.c.l.b16 %v139
    %v276 = vunpack.c.h.b16 %v139
    %v277 = vunpack.c.l.b16 %v140
    %v278 = vunpack.c.h.b16 %v140
    %v279 = vunpack.c.l.b16 %v141
    %v280 = vunpack.c.h.b16 %v141
    %v281 = vunpack.c.l.b16 %v142
    %v282 = vunpack.c.h.b16 %v142
    %v283 = vunpack.c.l.b16 %v143
    %v284 = vunpack.c.h.b16 %v143
    %v285 = vunpack.c.l.b16 %v144
    %v286 = vunpack.c.h.b16 %v144
    %v287 = vunpack.c.l.b16 %v145
    %v288 = vunpack.c.h.b16 %v145
    %v289 = vunpack.c.l.b16 %v146
    %v290 = vunpack.c.h.b16 %v146
    %v291 = vunpack.c.l.b16 %v147
    %v292 = vunpack.c.h.b16 %v147
    %v293 = vunpack.c.l.b16 %v148
    %v294 = vunpack.c.h.b16 %v148
    %v295 = vunpack.c.l.b16 %v149
    %v296 = vunpack.c.h.b16 %v149
    %v297 = vunpack.c.l.b16 %v150
    %v298 = vunpack.c.h.b16 %v150
    %v299 = vunpack.c.l.b16 %v151
    %v300 = vunpack.c.h.b16 %v151
    %v301 = vunpack.c.l.b16 %v152
    %v302 = vunpack.c.h.b16 %v152
    %v303 = vunpack.c.l.b16 %v153
    %v304 = vunpack.c.h.b16 %v153
    %v305 = vunpack.c.l.b16 %v154
    %v306 = vunpack.c.h.b16 %v154
    %v307 = vunpack.c.l.b16 %v155
    %v308 = vunpack.c.h.b16 %v155
    %v309 = vunpack.c.l.b16 %v156
    %v310 = vunpack.c.h.b16 %v156
    %v311 = vunpack.c.l.b16 %v157
    %v312 = vunpack.c.h.b16 %v157
    %v313 = vunpack.c.l.b16 %v158
    %v314 = vunpack.c.h.b16 %v158
    %v315 = vunpack.c.l.b16 %v159
    %v316 = vunpack.c.h.b16 %v159
    %v317 = vunpack.c.l.b16 %v160
    %v318 = vunpack.c.h.b16 %v160
    %v319 = vunpack.c.l.b16 %v161
    %v320 = vunpack.c.h.b16 %v161
    %v321 = vunpack.c.l.b16 %v162
    %v322 = vunpack.c.h.b16 %v162
    %v323 = vunpack.c.l.b16 %v163
    %v324 = vunpack.c.h.b16 %v163
    %v325 = vunpack.c.l.b16 %v164
    %v326 = vunpack.c.h.b16 %v164
    %v327 = vunpack.c.l.b16 %v165
    %v328 = vunpack.c.h.b16 %v165
    %v329 = vunpack.c.l.b16 %v166
    %v330 = vunpack.c.h.b16 %v166
    %v331 = vunpack.c.l.b16 %v167
    %v332 = vunpack.c.h.b16 %v167
    %v333 = vunpack.c.l.b16 %v168
    %v334 = vunpack.c.h.b16 %v168
    %v335 = vunpack.c.l.b16 %v169
    %v336 = vunpack.c.h.b16 %v169
    %v337 = vpack.c.b16 %v243, %v241
    %v338 = vpack.c.b16 %v244, %v242
    %v339 = vpack.c.b16 %v247, %v245
    %v340 = vpack.c.b16 %v248, %v246
    %v341 = vpack.c.b16 %v251, %v249
    %v342 = vpack.c.b16 %v252, %v250
    %v343 = vpack.c.b16 %v255, %v253
    %v344 = vpack.c.b16 %v256, %v254
    %v345 = vpack.c.b16 %v259, %v257
    %v346 = vpack.c.b16 %v260, %v258
    %v347 = vpack.c.b16 %v263, %v261
    %v348 = vpack.c.b16 %v264, %v262
    %v349 = vpack.c.b16 %v267, %v265
    %v350 = vpack.c.b16 %v268, %v266
    %v351 = vpack.c.b16 %v271, %v269
    %v352 = vpack.c.b16 %v272, %v270
    %v353 = vpack.c.b16 %v275, %v273
    %v354 = vpack.c.b16 %v276, %v274
    %v355 = vpack.c.b16 %v279, %v277
    %v356 = vpack.c.b16 %v280, %v278
    %v357 = vpack.c.b16 %v283, %v281
    %v358 = vpack.c.b16 %v284, %v282
    %v359 = vpack.c.b16 %v287, %v285
    %v360 = vpack.c.b16 %v288, %v286
    %v361 = vpack.c.b16 %v291, %v289
    %v362 = vpack.c.b16 %v292, %v290
    %v363 = vpack.c.b16 %v295, %v293
    %v364 = vpack.c.b16 %v296, %v294
    %v365 = vpack.c.b16 %v299, %v297
    %v366 = vpack.c.b16 %v300, %v298
    %v367 = vpack.c.b16 %v303, %v301
    %v368 = vpack.c.b16 %v304, %v302
    %v369 = vpack.c.b16 %v307, %v305
    %v370 = vpack.c.b16 %v308, %v306
    %v371 = vpack.c.b16 %v311, %v309
    %v372 = vpack.c.b16 %v312, %v310
    %v373 = vpack.c.b16 %v315, %v313
    %v374 = vpack.c.b16 %v316, %v314
    %v375 = vpack.c.b16 %v319, %v317
    %v376 = vpack.c.b16 %v320, %v318
    %v377 = vpack.c.b16 %v323, %v321
    %v378 = vpack.c.b16 %v324, %v322
    %v379 = vpack.c.b16 %v327, %v325
    %v380 = vpack.c.b16 %v328, %v326
    %v381 = vpack.c.b16 %v331, %v329
    %v382 = vpack.c.b16 %v332, %v330
    %v383 = vpack.c.b16 %v335, %v333
    %v384 = vpack.c.b16 %v336, %v334
    %433 = vmatprep.subr.bf16.mxu0 %v338
    %434 = vmatpush1.bf16.msra.mxu0 %v337
    %435 = vmatprep.subr.bf16.mxu0 %v340
    %436 = vmatpush1.bf16.msra.mxu0 %v339
    %437 = vmatprep.subr.bf16.mxu0 %v342
    %438 = vmatpush1.bf16.msra.mxu0 %v341
    %439 = vmatprep.subr.bf16.mxu0 %v344
    %440 = vmatpush1.bf16.msra.mxu0 %v343
    %441 = vmatprep.subr.bf16.mxu0 %v346
    %442 = vmatpush1.bf16.msra.mxu0 %v345
    %443 = vmatprep.subr.bf16.mxu0 %v348
    %444 = vmatpush1.bf16.msra.mxu0 %v347
    %445 = vmatprep.subr.bf16.mxu0 %v350
    %446 = vmatpush1.bf16.msra.mxu0 %v349
    %447 = vmatprep.subr.bf16.mxu0 %v352
    %448 = vmatpush1.bf16.msra.mxu0 %v351
    %449 = vmatprep.subr.bf16.mxu0 %v354
    %450 = vmatpush1.bf16.msra.mxu0 %v353
    %451 = vmatprep.subr.bf16.mxu0 %v356
    %452 = vmatpush1.bf16.msra.mxu0 %v355
    %453 = vmatprep.subr.bf16.mxu0 %v358
    %454 = vmatpush1.bf16.msra.mxu0 %v357
    %455 = vmatprep.subr.bf16.mxu0 %v360
    %456 = vmatpush1.bf16.msra.mxu0 %v359
    %457 = vmatprep.subr.bf16.mxu0 %v362
    %458 = vmatpush1.bf16.msra.mxu0 %v361
    %459 = vmatprep.subr.bf16.mxu0 %v364
    %460 = vmatpush1.bf16.msra.mxu0 %v363
    %461 = vmatprep.subr.bf16.mxu0 %v366
    %462 = vmatpush1.bf16.msra.mxu0 %v365
    %463 = vmatprep.subr.bf16.mxu0 %v368
    %464 = vmatpush1.bf16.msra.mxu0 %v367
    %465 = vmatprep.mubr.bf16.mxu0 %v188
    %466 = vmatmul.mubr.bf16.gmra.mrb[0].mxu0 %v187
    %v467 = vpop.f32.mrb[0].mxu0
    %v468 = vadd.f32 %v175, %v467
    %v469 = vpop.f32.mrb[0].mxu0
    %v470 = vadd.f32 %v179, %v469
    %v471 = vpop.f32.mrb[0].mxu0
    %v472 = vpop.f32.mrb[0].mxu0
    %473 = vdwg.mxu0
    %474 = vmatprep.subr.bf16.mxu0 %v370
    %475 = vmatpush1.bf16.msra.mxu0 %v369
    %476 = vmatprep.subr.bf16.mxu0 %v372
    %477 = vmatpush1.bf16.msra.mxu0 %v371
    %478 = vmatprep.subr.bf16.mxu0 %v374
    %479 = vmatpush1.bf16.msra.mxu0 %v373
    %480 = vmatprep.subr.bf16.mxu0 %v376
    %481 = vmatpush1.bf16.msra.mxu0 %v375
    %482 = vmatprep.subr.bf16.mxu0 %v378
    %483 = vmatpush1.bf16.msra.mxu0 %v377
    %484 = vmatprep.subr.bf16.mxu0 %v380
    %485 = vmatpush1.bf16.msra.mxu0 %v379
    %486 = vmatprep.subr.bf16.mxu0 %v382
    %487 = vmatpush1.bf16.msra.mxu0 %v381
    %488 = vmatprep.subr.bf16.mxu0 %v384
    %489 = vmatpush1.bf16.msra.mxu0 %v383
    %490 = vmatprep.subr.bf16.mxu0 0
    %491 = vmatpush1.bf16.msra.mxu0 0
    %492 = vmatprep.subr.bf16.mxu0 0
    %493 = vmatpush1.bf16.msra.mxu0 0
    %494 = vmatprep.subr.bf16.mxu0 0
    %495 = vmatpush1.bf16.msra.mxu0 0
    %496 = vmatprep.subr.bf16.mxu0 0
    %497 = vmatpush1.bf16.msra.mxu0 0
    %498 = vmatprep.subr.bf16.mxu0 0
    %499 = vmatpush1.bf16.msra.mxu0 0
    %500 = vmatprep.subr.bf16.mxu0 0
    %501 = vmatpush1.bf16.msra.mxu0 0
    %502 = vmatprep.subr.bf16.mxu0 0
    %503 = vmatpush1.bf16.msra.mxu0 0
    %504 = vmatprep.subr.bf16.mxu0 0
    %505 = vmatpush1.bf16.msra.mxu0 0
    %506 = vmatprep.mubr.bf16.mxu0 0
    %507 = vmatmul.mubr.bf16.gmra.mrb[0].mxu0 %v189
    %v508 = vpop.f32.mrb[0].mxu0
    %v509 = vadd.f32 %v468, %v508
    %v510 = vpop.f32.mrb[0].mxu0
    %v511 = vadd.f32 %v470, %v510
    %v512 = vpop.f32.mrb[0].mxu0
    %v513 = vpop.f32.mrb[0].mxu0
    %514 = vdwg.mxu0
    %v515 = vmax.f32 %v509, 0.0
    %v516 = vmax.f32 %v511, 0.0
    %v517 = vpack.c.bf16 %v515, %v515
    %v518 = vpack.c.bf16 %v516, %v516
    %v519 = vld [vmem:[#allocation7] sm:$0xff]
    %v520 = vld [vmem:[#allocation7 + $0x8] sm:$0xff]
    %v521 = vld [vmem:[#allocation7 + $0x10] sm:$0xff]
    %v522 = vld [vmem:[#allocation7 + $0x18] sm:$0xff]
    %v523 = vld [vmem:[#allocation7 + $0x20] sm:$0xff]
    %v524 = vld [vmem:[#allocation7 + $0x28] sm:$0xff]
    %v525 = vld [vmem:[#allocation7 + $0x30] sm:$0xff]
    %v526 = vld [vmem:[#allocation7 + $0x38] sm:$0xff]
    %v527 = vld [vmem:[#allocation7 + $0x40] sm:$0xff]
    %v528 = vld [vmem:[#allocation7 + $0x48] sm:$0xff]
    %v529 = vld [vmem:[#allocation7 + $0x50] sm:$0xff]
    %v530 = vld [vmem:[#allocation7 + $0x58] sm:$0xff]
    %v531 = vld [vmem:[#allocation7 + $0x60] sm:$0xff]
    %v532 = vld [vmem:[#allocation7 + $0x68] sm:$0xff]
    %v533 = vld [vmem:[#allocation7 + $0x70] sm:$0xff]
    %v534 = vld [vmem:[#allocation7 + $0x78] sm:$0xff]
    %v535 = vld [vmem:[#allocation7 + $0x80] sm:$0xff]
    %v536 = vld [vmem:[#allocation7 + $0x88] sm:$0xff]
    %v537 = vld [vmem:[#allocation7 + $0x90] sm:$0xff]
    %v538 = vld [vmem:[#allocation7 + $0x98] sm:$0xff]
    %v539 = vld [vmem:[#allocation7 + $0xa0] sm:$0xff]
    %v540 = vld [vmem:[#allocation7 + $0xa8] sm:$0xff]
    %v541 = vld [vmem:[#allocation7 + $0xb0] sm:$0xff]
    %v542 = vld [vmem:[#allocation7 + $0xb8] sm:$0xff]
    %v543 = vld [vmem:[#allocation7 + $0xc0] sm:$0xff]
    %v544 = vld [vmem:[#allocation7 + $0xc8] sm:$0xff]
    %v545 = vld [vmem:[#allocation7 + $0xd0] sm:$0xff]
    %v546 = vld [vmem:[#allocation7 + $0xd8] sm:$0xff]
    %v547 = vld [vmem:[#allocation7 + $0xe0] sm:$0xff]
    %v548 = vld [vmem:[#allocation7 + $0xe8] sm:$0xff]
    %v549 = vld [vmem:[#allocation7 + $0xf0] sm:$0xff]
    %v550 = vld [vmem:[#allocation7 + $0xf8] sm:$0xff]
    %v551 = vld [vmem:[%s4] sm:$0x3]
    %v553 = vlaneseq
    %v554 = vshrl.u32 %v553, 7
    %v555 = vsub.s32 0, %v554
    %v556 = vrot.slane %v551, %v555
    %v557 = vlaneseq
    %v558 = vshrl.u32 %v557, 7
    %v559 = vsub.s32 1, %v558
    %v560 = vrot.slane %v551, %v559
    %v595 = vunpack.c.l.b16 %v519
    %v596 = vunpack.c.h.b16 %v519
    %v597 = vunpack.c.l.b16 %v520
    %v598 = vunpack.c.h.b16 %v520
    %v599 = vunpack.c.l.b16 %v521
    %v600 = vunpack.c.h.b16 %v521
    %v601 = vunpack.c.l.b16 %v522
    %v602 = vunpack.c.h.b16 %v522
    %v603 = vunpack.c.l.b16 %v523
    %v604 = vunpack.c.h.b16 %v523
    %v605 = vunpack.c.l.b16 %v524
    %v606 = vunpack.c.h.b16 %v524
    %v607 = vunpack.c.l.b16 %v525
    %v608 = vunpack.c.h.b16 %v525
    %v609 = vunpack.c.l.b16 %v526
    %v610 = vunpack.c.h.b16 %v526
    %v611 = vunpack.c.l.b16 %v527
    %v612 = vunpack.c.h.b16 %v527
    %v613 = vunpack.c.l.b16 %v528
    %v614 = vunpack.c.h.b16 %v528
    %v615 = vunpack.c.l.b16 %v529
    %v616 = vunpack.c.h.b16 %v529
    %v617 = vunpack.c.l.b16 %v530
    %v618 = vunpack.c.h.b16 %v530
    %v619 = vunpack.c.l.b16 %v531
    %v620 = vunpack.c.h.b16 %v531
    %v621 = vunpack.c.l.b16 %v532
    %v622 = vunpack.c.h.b16 %v532
    %v623 = vunpack.c.l.b16 %v533
    %v624 = vunpack.c.h.b16 %v533
    %v625 = vunpack.c.l.b16 %v534
    %v626 = vunpack.c.h.b16 %v534
    %v627 = vunpack.c.l.b16 %v535
    %v628 = vunpack.c.h.b16 %v535
    %v629 = vunpack.c.l.b16 %v536
    %v630 = vunpack.c.h.b16 %v536
    %v631 = vunpack.c.l.b16 %v537
    %v632 = vunpack.c.h.b16 %v537
    %v633 = vunpack.c.l.b16 %v538
    %v634 = vunpack.c.h.b16 %v538
    %v635 = vunpack.c.l.b16 %v539
    %v636 = vunpack.c.h.b16 %v539
    %v637 = vunpack.c.l.b16 %v540
    %v638 = vunpack.c.h.b16 %v540
    %v639 = vunpack.c.l.b16 %v541
    %v640 = vunpack.c.h.b16 %v541
    %v641 = vunpack.c.l.b16 %v542
    %v642 = vunpack.c.h.b16 %v542
    %v643 = vunpack.c.l.b16 %v543
    %v644 = vunpack.c.h.b16 %v543
    %v645 = vunpack.c.l.b16 %v544
    %v646 = vunpack.c.h.b16 %v544
    %v647 = vunpack.c.l.b16 %v545
    %v648 = vunpack.c.h.b16 %v545
    %v649 = vunpack.c.l.b16 %v546
    %v650 = vunpack.c.h.b16 %v546
    %v651 = vunpack.c.l.b16 %v547
    %v652 = vunpack.c.h.b16 %v547
    %v653 = vunpack.c.l.b16 %v548
    %v654 = vunpack.c.h.b16 %v548
    %v655 = vunpack.c.l.b16 %v549
    %v656 = vunpack.c.h.b16 %v549
    %v657 = vunpack.c.l.b16 %v550
    %v658 = vunpack.c.h.b16 %v550
    %v659 = vpack.c.b16 %v597, %v595
    %v660 = vpack.c.b16 %v598, %v596
    %v661 = vpack.c.b16 %v601, %v599
    %v662 = vpack.c.b16 %v602, %v600
    %v663 = vpack.c.b16 %v605, %v603
    %v664 = vpack.c.b16 %v606, %v604
    %v665 = vpack.c.b16 %v609, %v607
    %v666 = vpack.c.b16 %v610, %v608
    %v667 = vpack.c.b16 %v613, %v611
    %v668 = vpack.c.b16 %v614, %v612
    %v669 = vpack.c.b16 %v617, %v615
    %v670 = vpack.c.b16 %v618, %v616
    %v671 = vpack.c.b16 %v621, %v619
    %v672 = vpack.c.b16 %v622, %v620
    %v673 = vpack.c.b16 %v625, %v623
    %v674 = vpack.c.b16 %v626, %v624
    %v675 = vpack.c.b16 %v629, %v627
    %v676 = vpack.c.b16 %v630, %v628
    %v677 = vpack.c.b16 %v633, %v631
    %v678 = vpack.c.b16 %v634, %v632
    %v679 = vpack.c.b16 %v637, %v635
    %v680 = vpack.c.b16 %v638, %v636
    %v681 = vpack.c.b16 %v641, %v639
    %v682 = vpack.c.b16 %v642, %v640
    %v683 = vpack.c.b16 %v645, %v643
    %v684 = vpack.c.b16 %v646, %v644
    %v685 = vpack.c.b16 %v649, %v647
    %v686 = vpack.c.b16 %v650, %v648
    %v687 = vpack.c.b16 %v653, %v651
    %v688 = vpack.c.b16 %v654, %v652
    %v689 = vpack.c.b16 %v657, %v655
    %v690 = vpack.c.b16 %v658, %v656
    %723 = vmatprep.subr.bf16.mxu0 %v660
    %724 = vmatpush1.bf16.msra.mxu0 %v659
    %725 = vmatprep.subr.bf16.mxu0 %v662
    %726 = vmatpush1.bf16.msra.mxu0 %v661
    %727 = vmatprep.subr.bf16.mxu0 %v664
    %728 = vmatpush1.bf16.msra.mxu0 %v663
    %729 = vmatprep.subr.bf16.mxu0 %v666
    %730 = vmatpush1.bf16.msra.mxu0 %v665
    %731 = vmatprep.subr.bf16.mxu0 %v668
    %732 = vmatpush1.bf16.msra.mxu0 %v667
    %733 = vmatprep.subr.bf16.mxu0 %v670
    %734 = vmatpush1.bf16.msra.mxu0 %v669
    %735 = vmatprep.subr.bf16.mxu0 %v672
    %736 = vmatpush1.bf16.msra.mxu0 %v671
    %737 = vmatprep.subr.bf16.mxu0 %v674
    %738 = vmatpush1.bf16.msra.mxu0 %v673
    %739 = vmatprep.subr.bf16.mxu0 %v676
    %740 = vmatpush1.bf16.msra.mxu0 %v675
    %741 = vmatprep.subr.bf16.mxu0 %v678
    %742 = vmatpush1.bf16.msra.mxu0 %v677
    %743 = vmatprep.subr.bf16.mxu0 %v680
    %744 = vmatpush1.bf16.msra.mxu0 %v679
    %745 = vmatprep.subr.bf16.mxu0 %v682
    %746 = vmatpush1.bf16.msra.mxu0 %v681
    %747 = vmatprep.subr.bf16.mxu0 %v684
    %748 = vmatpush1.bf16.msra.mxu0 %v683
    %749 = vmatprep.subr.bf16.mxu0 %v686
    %750 = vmatpush1.bf16.msra.mxu0 %v685
    %751 = vmatprep.subr.bf16.mxu0 %v688
    %752 = vmatpush1.bf16.msra.mxu0 %v687
    %753 = vmatprep.subr.bf16.mxu0 %v690
    %754 = vmatpush1.bf16.msra.mxu0 %v689
    %755 = vmatprep.mubr.bf16.mxu0 %v518
    %756 = vmatmul.mubr.bf16.gmra.mrb[0].mxu0 %v517
    %v757 = vpop.f32.mrb[0].mxu0
    %v758 = vadd.f32 %v556, %v757
    %v759 = vpop.f32.mrb[0].mxu0
    %v760 = vadd.f32 %v560, %v759
    %v761 = vpop.f32.mrb[0].mxu0
    %v762 = vpop.f32.mrb[0].mxu0
    %763 = vdwg.mxu0
    %v764 = vmax.f32 %v758, 0.0
    %v765 = vmax.f32 %v760, 0.0
    %v766 = vpack.c.bf16 %v764, %v764
    %v767 = vpack.c.bf16 %v765, %v765
    %v768 = vld [vmem:[#allocation8] sm:$0xff]
    %v769 = vld [vmem:[#allocation8 + $0x8] sm:$0xff]
    %v770 = vld [vmem:[#allocation8 + $0x10] sm:$0xff]
    %v771 = vld [vmem:[#allocation8 + $0x18] sm:$0xff]
    %v772 = vld [vmem:[#allocation8 + $0x20] sm:$0xff]
    %v773 = vld [vmem:[#allocation8 + $0x28] sm:$0xff]
    %v774 = vld [vmem:[#allocation8 + $0x30] sm:$0xff]
    %v775 = vld [vmem:[#allocation8 + $0x38] sm:$0xff]
    %v776 = vld [vmem:[#allocation8 + $0x40] sm:$0xff]
    %v777 = vld [vmem:[#allocation8 + $0x48] sm:$0xff]
    %v778 = vld [vmem:[#allocation8 + $0x50] sm:$0xff]
    %v779 = vld [vmem:[#allocation8 + $0x58] sm:$0xff]
    %v780 = vld [vmem:[#allocation8 + $0x60] sm:$0xff]
    %v781 = vld [vmem:[#allocation8 + $0x68] sm:$0xff]
    %v782 = vld [vmem:[#allocation8 + $0x70] sm:$0xff]
    %v783 = vld [vmem:[#allocation8 + $0x78] sm:$0xff]
    %v784 = vld [vmem:[#allocation8 + $0x80] sm:$0xff]
    %v785 = vld [vmem:[#allocation8 + $0x88] sm:$0xff]
    %v786 = vld [vmem:[#allocation8 + $0x90] sm:$0xff]
    %v787 = vld [vmem:[#allocation8 + $0x98] sm:$0xff]
    %v788 = vld [vmem:[#allocation8 + $0xa0] sm:$0xff]
    %v789 = vld [vmem:[#allocation8 + $0xa8] sm:$0xff]
    %v790 = vld [vmem:[#allocation8 + $0xb0] sm:$0xff]
    %v791 = vld [vmem:[#allocation8 + $0xb8] sm:$0xff]
    %v792 = vld [vmem:[#allocation8 + $0xc0] sm:$0xff]
    %v793 = vld [vmem:[#allocation8 + $0xc8] sm:$0xff]
    %v794 = vld [vmem:[#allocation8 + $0xd0] sm:$0xff]
    %v795 = vld [vmem:[#allocation8 + $0xd8] sm:$0xff]
    %v796 = vld [vmem:[#allocation8 + $0xe0] sm:$0xff]
    %v797 = vld [vmem:[#allocation8 + $0xe8] sm:$0xff]
    %v798 = vld [vmem:[#allocation8 + $0xf0] sm:$0xff]
    %v799 = vld [vmem:[#allocation8 + $0xf8] sm:$0xff]
    %v800 = vld [vmem:[%s6] sm:$0x3]
    %v802 = vlaneseq
    %v803 = vshrl.u32 %v802, 7
    %v804 = vsub.s32 0, %v803
    %v805 = vrot.slane %v800, %v804
    %v806 = vlaneseq
    %v807 = vshrl.u32 %v806, 7
    %v808 = vsub.s32 1, %v807
    %v809 = vrot.slane %v800, %v808
    %v844 = vunpack.c.l.b16 %v768
    %v845 = vunpack.c.h.b16 %v768
    %v846 = vunpack.c.l.b16 %v769
    %v847 = vunpack.c.h.b16 %v769
    %v848 = vunpack.c.l.b16 %v770
    %v849 = vunpack.c.h.b16 %v770
    %v850 = vunpack.c.l.b16 %v771
    %v851 = vunpack.c.h.b16 %v771
    %v852 = vunpack.c.l.b16 %v772
    %v853 = vunpack.c.h.b16 %v772
    %v854 = vunpack.c.l.b16 %v773
    %v855 = vunpack.c.h.b16 %v773
    %v856 = vunpack.c.l.b16 %v774
    %v857 = vunpack.c.h.b16 %v774
    %v858 = vunpack.c.l.b16 %v775
    %v859 = vunpack.c.h.b16 %v775
    %v860 = vunpack.c.l.b16 %v776
    %v861 = vunpack.c.h.b16 %v776
    %v862 = vunpack.c.l.b16 %v777
    %v863 = vunpack.c.h.b16 %v777
    %v864 = vunpack.c.l.b16 %v778
    %v865 = vunpack.c.h.b16 %v778
    %v866 = vunpack.c.l.b16 %v779
    %v867 = vunpack.c.h.b16 %v779
    %v868 = vunpack.c.l.b16 %v780
    %v869 = vunpack.c.h.b16 %v780
    %v870 = vunpack.c.l.b16 %v781
    %v871 = vunpack.c.h.b16 %v781
    %v872 = vunpack.c.l.b16 %v782
    %v873 = vunpack.c.h.b16 %v782
    %v874 = vunpack.c.l.b16 %v783
    %v875 = vunpack.c.h.b16 %v783
    %v876 = vunpack.c.l.b16 %v784
    %v877 = vunpack.c.h.b16 %v784
    %v878 = vunpack.c.l.b16 %v785
    %v879 = vunpack.c.h.b16 %v785
    %v880 = vunpack.c.l.b16 %v786
    %v881 = vunpack.c.h.b16 %v786
    %v882 = vunpack.c.l.b16 %v787
    %v883 = vunpack.c.h.b16 %v787
    %v884 = vunpack.c.l.b16 %v788
    %v885 = vunpack.c.h.b16 %v788
    %v886 = vunpack.c.l.b16 %v789
    %v887 = vunpack.c.h.b16 %v789
    %v888 = vunpack.c.l.b16 %v790
    %v889 = vunpack.c.h.b16 %v790
    %v890 = vunpack.c.l.b16 %v791
    %v891 = vunpack.c.h.b16 %v791
    %v892 = vunpack.c.l.b16 %v792
    %v893 = vunpack.c.h.b16 %v792
    %v894 = vunpack.c.l.b16 %v793
    %v895 = vunpack.c.h.b16 %v793
    %v896 = vunpack.c.l.b16 %v794
    %v897 = vunpack.c.h.b16 %v794
    %v898 = vunpack.c.l.b16 %v795
    %v899 = vunpack.c.h.b16 %v795
    %v900 = vunpack.c.l.b16 %v796
    %v901 = vunpack.c.h.b16 %v796
    %v902 = vunpack.c.l.b16 %v797
    %v903 = vunpack.c.h.b16 %v797
    %v904 = vunpack.c.l.b16 %v798
    %v905 = vunpack.c.h.b16 %v798
    %v906 = vunpack.c.l.b16 %v799
    %v907 = vunpack.c.h.b16 %v799
    %v908 = vpack.c.b16 %v846, %v844
    %v909 = vpack.c.b16 %v847, %v845
    %v910 = vpack.c.b16 %v850, %v848
    %v911 = vpack.c.b16 %v851, %v849
    %v912 = vpack.c.b16 %v854, %v852
    %v913 = vpack.c.b16 %v855, %v853
    %v914 = vpack.c.b16 %v858, %v856
    %v915 = vpack.c.b16 %v859, %v857
    %v916 = vpack.c.b16 %v862, %v860
    %v917 = vpack.c.b16 %v863, %v861
    %v918 = vpack.c.b16 %v866, %v864
    %v919 = vpack.c.b16 %v867, %v865
    %v920 = vpack.c.b16 %v870, %v868
    %v921 = vpack.c.b16 %v871, %v869
    %v922 = vpack.c.b16 %v874, %v872
    %v923 = vpack.c.b16 %v875, %v873
    %v924 = vpack.c.b16 %v878, %v876
    %v925 = vpack.c.b16 %v879, %v877
    %v926 = vpack.c.b16 %v882, %v880
    %v927 = vpack.c.b16 %v883, %v881
    %v928 = vpack.c.b16 %v886, %v884
    %v929 = vpack.c.b16 %v887, %v885
    %v930 = vpack.c.b16 %v890, %v888
    %v931 = vpack.c.b16 %v891, %v889
    %v932 = vpack.c.b16 %v894, %v892
    %v933 = vpack.c.b16 %v895, %v893
    %v934 = vpack.c.b16 %v898, %v896
    %v935 = vpack.c.b16 %v899, %v897
    %v936 = vpack.c.b16 %v902, %v900
    %v937 = vpack.c.b16 %v903, %v901
    %v938 = vpack.c.b16 %v906, %v904
    %v939 = vpack.c.b16 %v907, %v905
    %972 = vmatprep.subr.bf16.mxu0 %v909
    %973 = vmatpush1.bf16.msra.mxu0 %v908
    %974 = vmatprep.subr.bf16.mxu0 %v911
    %975 = vmatpush1.bf16.msra.mxu0 %v910
    %976 = vmatprep.subr.bf16.mxu0 %v913
    %977 = vmatpush1.bf16.msra.mxu0 %v912
    %978 = vmatprep.subr.bf16.mxu0 %v915
    %979 = vmatpush1.bf16.msra.mxu0 %v914
    %980 = vmatprep.subr.bf16.mxu0 %v917
    %981 = vmatpush1.bf16.msra.mxu0 %v916
    %982 = vmatprep.subr.bf16.mxu0 %v919
    %983 = vmatpush1.bf16.msra.mxu0 %v918
    %984 = vmatprep.subr.bf16.mxu0 %v921
    %985 = vmatpush1.bf16.msra.mxu0 %v920
    %986 = vmatprep.subr.bf16.mxu0 %v923
    %987 = vmatpush1.bf16.msra.mxu0 %v922
    %988 = vmatprep.subr.bf16.mxu0 %v925
    %989 = vmatpush1.bf16.msra.mxu0 %v924
    %990 = vmatprep.subr.bf16.mxu0 %v927
    %991 = vmatpush1.bf16.msra.mxu0 %v926
    %992 = vmatprep.subr.bf16.mxu0 %v929
    %993 = vmatpush1.bf16.msra.mxu0 %v928
    %994 = vmatprep.subr.bf16.mxu0 %v931
    %995 = vmatpush1.bf16.msra.mxu0 %v930
    %996 = vmatprep.subr.bf16.mxu0 %v933
    %997 = vmatpush1.bf16.msra.mxu0 %v932
    %998 = vmatprep.subr.bf16.mxu0 %v935
    %999 = vmatpush1.bf16.msra.mxu0 %v934
    %1000 = vmatprep.subr.bf16.mxu0 %v937
    %1001 = vmatpush1.bf16.msra.mxu0 %v936
    %1002 = vmatprep.subr.bf16.mxu0 %v939
    %1003 = vmatpush1.bf16.msra.mxu0 %v938
    %1004 = vmatprep.mubr.bf16.mxu0 %v767
    %1005 = vmatmul.mubr.bf16.gmra.mrb[0].mxu0 %v766
    %v1006 = vpop.f32.mrb[0].mxu0
    %v1007 = vadd.f32 %v805, %v1006
    %v1008 = vpop.f32.mrb[0].mxu0
    %v1009 = vadd.f32 %v809, %v1008
    %v1010 = vpop.f32.mrb[0].mxu0
    %v1011 = vpop.f32.mrb[0].mxu0
    %1012 = vdwg.mxu0
    %v1013 = vmax.f32 %v1007, 0.0
    %v1014 = vmax.f32 %v1009, 0.0
    %v1015 = vpack.c.bf16 %v1013, %v1013
    %v1016 = vpack.c.bf16 %v1014, %v1014
    %v1017 = vld [vmem:[#allocation10] sm:$0xff]
    %v1018 = vld [vmem:[#allocation10 + $0x8] sm:$0xff]
    %v1019 = vld [vmem:[#allocation10 + $0x10] sm:$0xff]
    %v1020 = vld [vmem:[#allocation10 + $0x18] sm:$0xff]
    %v1021 = vld [vmem:[#allocation10 + $0x20] sm:$0xff]
    %v1022 = vld [vmem:[#allocation10 + $0x28] sm:$0xff]
    %v1023 = vld [vmem:[#allocation10 + $0x30] sm:$0xff]
    %v1024 = vld [vmem:[#allocation10 + $0x38] sm:$0xff]
    %v1025 = vld [vmem:[#allocation10 + $0x40] sm:$0xff]
    %v1026 = vld [vmem:[#allocation10 + $0x48] sm:$0xff]
    %v1027 = vld [vmem:[#allocation10 + $0x50] sm:$0xff]
    %v1028 = vld [vmem:[#allocation10 + $0x58] sm:$0xff]
    %v1029 = vld [vmem:[#allocation10 + $0x60] sm:$0xff]
    %v1030 = vld [vmem:[#allocation10 + $0x68] sm:$0xff]
    %v1031 = vld [vmem:[#allocation10 + $0x70] sm:$0xff]
    %v1032 = vld [vmem:[#allocation10 + $0x78] sm:$0xff]
    %v1033 = vld [vmem:[#allocation10 + $0x80] sm:$0xff]
    %v1034 = vld [vmem:[#allocation10 + $0x88] sm:$0xff]
    %v1035 = vld [vmem:[#allocation10 + $0x90] sm:$0xff]
    %v1036 = vld [vmem:[#allocation10 + $0x98] sm:$0xff]
    %v1037 = vld [vmem:[#allocation10 + $0xa0] sm:$0xff]
    %v1038 = vld [vmem:[#allocation10 + $0xa8] sm:$0xff]
    %v1039 = vld [vmem:[#allocation10 + $0xb0] sm:$0xff]
    %v1040 = vld [vmem:[#allocation10 + $0xb8] sm:$0xff]
    %v1041 = vld [vmem:[#allocation10 + $0xc0] sm:$0xff]
    %v1042 = vld [vmem:[#allocation10 + $0xc8] sm:$0xff]
    %v1043 = vld [vmem:[#allocation10 + $0xd0] sm:$0xff]
    %v1044 = vld [vmem:[#allocation10 + $0xd8] sm:$0xff]
    %v1045 = vld [vmem:[#allocation10 + $0xe0] sm:$0xff]
    %v1046 = vld [vmem:[#allocation10 + $0xe8] sm:$0xff]
    %v1047 = vld [vmem:[#allocation10 + $0xf0] sm:$0xff]
    %v1048 = vld [vmem:[#allocation10 + $0xf8] sm:$0xff]
    %v1049 = vld [vmem:[#allocation10 + $0x100] sm:$0xff]
    %v1050 = vld [vmem:[#allocation10 + $0x108] sm:$0xff]
    %v1051 = vld [vmem:[#allocation10 + $0x110] sm:$0xff]
    %v1052 = vld [vmem:[#allocation10 + $0x118] sm:$0xff]
    %v1053 = vld [vmem:[#allocation10 + $0x120] sm:$0xff]
    %v1054 = vld [vmem:[#allocation10 + $0x128] sm:$0xff]
    %v1055 = vld [vmem:[#allocation10 + $0x130] sm:$0xff]
    %v1056 = vld [vmem:[#allocation10 + $0x138] sm:$0xff]
    %v1057 = vld [vmem:[#allocation10 + $0x140] sm:$0xff]
    %v1058 = vld [vmem:[#allocation10 + $0x148] sm:$0xff]
    %v1059 = vld [vmem:[#allocation10 + $0x150] sm:$0xff]
    %v1060 = vld [vmem:[#allocation10 + $0x158] sm:$0xff]
    %v1061 = vld [vmem:[#allocation10 + $0x160] sm:$0xff]
    %v1062 = vld [vmem:[#allocation10 + $0x168] sm:$0xff]
    %v1063 = vld [vmem:[#allocation10 + $0x170] sm:$0xff]
    %v1064 = vld [vmem:[#allocation10 + $0x178] sm:$0xff]
    %v1065 = vld [vmem:[#allocation10 + $0x180] sm:$0xff]
    %v1066 = vld [vmem:[#allocation10 + $0x188] sm:$0xff]
    %v1067 = vld [vmem:[#allocation10 + $0x190] sm:$0xff]
    %v1068 = vld [vmem:[#allocation10 + $0x198] sm:$0xff]
    %v1069 = vld [vmem:[#allocation10 + $0x1a0] sm:$0xff]
    %v1070 = vld [vmem:[#allocation10 + $0x1a8] sm:$0xff]
    %v1071 = vld [vmem:[#allocation10 + $0x1b0] sm:$0xff]
    %v1072 = vld [vmem:[#allocation10 + $0x1b8] sm:$0xff]
    %v1073 = vld [vmem:[#allocation10 + $0x1c0] sm:$0xff]
    %v1074 = vld [vmem:[#allocation10 + $0x1c8] sm:$0xff]
    %v1075 = vld [vmem:[#allocation10 + $0x1d0] sm:$0xff]
    %v1076 = vld [vmem:[#allocation10 + $0x1d8] sm:$0xff]
    %v1077 = vld [vmem:[#allocation10 + $0x1e0] sm:$0xff]
    %v1078 = vld [vmem:[#allocation10 + $0x1e8] sm:$0xff]
    %v1079 = vld [vmem:[#allocation10 + $0x1f0] sm:$0xff]
    %v1080 = vld [vmem:[#allocation10 + $0x1f8] sm:$0xff]
    %v1081 = vld [vmem:[%s8] sm:$0xf]
    %v1083 = vlaneseq
    %v1084 = vshrl.u32 %v1083, 7
    %v1085 = vsub.s32 0, %v1084
    %v1086 = vrot.slane %v1081, %v1085
    %v1087 = vlaneseq
    %v1088 = vshrl.u32 %v1087, 7
    %v1089 = vsub.s32 1, %v1088
    %v1090 = vrot.slane %v1081, %v1089
    %v1091 = vlaneseq
    %v1092 = vshrl.u32 %v1091, 7
    %v1093 = vsub.s32 2, %v1092
    %v1094 = vrot.slane %v1081, %v1093
    %v1095 = vlaneseq
    %v1096 = vshrl.u32 %v1095, 7
    %v1097 = vsub.s32 3, %v1096
    %v1098 = vrot.slane %v1081, %v1097
    %v1167 = vunpack.c.l.b16 %v1017
    %v1168 = vunpack.c.h.b16 %v1017
    %v1169 = vunpack.c.l.b16 %v1018
    %v1170 = vunpack.c.h.b16 %v1018
    %v1171 = vunpack.c.l.b16 %v1019
    %v1172 = vunpack.c.h.b16 %v1019
    %v1173 = vunpack.c.l.b16 %v1020
    %v1174 = vunpack.c.h.b16 %v1020
    %v1175 = vunpack.c.l.b16 %v1021
    %v1176 = vunpack.c.h.b16 %v1021
    %v1177 = vunpack.c.l.b16 %v1022
    %v1178 = vunpack.c.h.b16 %v1022
    %v1179 = vunpack.c.l.b16 %v1023
    %v1180 = vunpack.c.h.b16 %v1023
    %v1181 = vunpack.c.l.b16 %v1024
    %v1182 = vunpack.c.h.b16 %v1024
    %v1183 = vunpack.c.l.b16 %v1025
    %v1184 = vunpack.c.h.b16 %v1025
    %v1185 = vunpack.c.l.b16 %v1026
    %v1186 = vunpack.c.h.b16 %v1026
    %v1187 = vunpack.c.l.b16 %v1027
    %v1188 = vunpack.c.h.b16 %v1027
    %v1189 = vunpack.c.l.b16 %v1028
    %v1190 = vunpack.c.h.b16 %v1028
    %v1191 = vunpack.c.l.b16 %v1029
    %v1192 = vunpack.c.h.b16 %v1029
    %v1193 = vunpack.c.l.b16 %v1030
    %v1194 = vunpack.c.h.b16 %v1030
    %v1195 = vunpack.c.l.b16 %v1031
    %v1196 = vunpack.c.h.b16 %v1031
    %v1197 = vunpack.c.l.b16 %v1032
    %v1198 = vunpack.c.h.b16 %v1032
    %v1199 = vunpack.c.l.b16 %v1033
    %v1200 = vunpack.c.h.b16 %v1033
    %v1201 = vunpack.c.l.b16 %v1034
    %v1202 = vunpack.c.h.b16 %v1034
    %v1203 = vunpack.c.l.b16 %v1035
    %v1204 = vunpack.c.h.b16 %v1035
    %v1205 = vunpack.c.l.b16 %v1036
    %v1206 = vunpack.c.h.b16 %v1036
    %v1207 = vunpack.c.l.b16 %v1037
    %v1208 = vunpack.c.h.b16 %v1037
    %v1209 = vunpack.c.l.b16 %v1038
    %v1210 = vunpack.c.h.b16 %v1038
    %v1211 = vunpack.c.l.b16 %v1039
    %v1212 = vunpack.c.h.b16 %v1039
    %v1213 = vunpack.c.l.b16 %v1040
    %v1214 = vunpack.c.h.b16 %v1040
    %v1215 = vunpack.c.l.b16 %v1041
    %v1216 = vunpack.c.h.b16 %v1041
    %v1217 = vunpack.c.l.b16 %v1042
    %v1218 = vunpack.c.h.b16 %v1042
    %v1219 = vunpack.c.l.b16 %v1043
    %v1220 = vunpack.c.h.b16 %v1043
    %v1221 = vunpack.c.l.b16 %v1044
    %v1222 = vunpack.c.h.b16 %v1044
    %v1223 = vunpack.c.l.b16 %v1045
    %v1224 = vunpack.c.h.b16 %v1045
    %v1225 = vunpack.c.l.b16 %v1046
    %v1226 = vunpack.c.h.b16 %v1046
    %v1227 = vunpack.c.l.b16 %v1047
    %v1228 = vunpack.c.h.b16 %v1047
    %v1229 = vunpack.c.l.b16 %v1048
    %v1230 = vunpack.c.h.b16 %v1048
    %v1231 = vunpack.c.l.b16 %v1049
    %v1232 = vunpack.c.h.b16 %v1049
    %v1233 = vunpack.c.l.b16 %v1050
    %v1234 = vunpack.c.h.b16 %v1050
    %v1235 = vunpack.c.l.b16 %v1051
    %v1236 = vunpack.c.h.b16 %v1051
    %v1237 = vunpack.c.l.b16 %v1052
    %v1238 = vunpack.c.h.b16 %v1052
    %v1239 = vunpack.c.l.b16 %v1053
    %v1240 = vunpack.c.h.b16 %v1053
    %v1241 = vunpack.c.l.b16 %v1054
    %v1242 = vunpack.c.h.b16 %v1054
    %v1243 = vunpack.c.l.b16 %v1055
    %v1244 = vunpack.c.h.b16 %v1055
    %v1245 = vunpack.c.l.b16 %v1056
    %v1246 = vunpack.c.h.b16 %v1056
    %v1247 = vunpack.c.l.b16 %v1057
    %v1248 = vunpack.c.h.b16 %v1057
    %v1249 = vunpack.c.l.b16 %v1058
    %v1250 = vunpack.c.h.b16 %v1058
    %v1251 = vunpack.c.l.b16 %v1059
    %v1252 = vunpack.c.h.b16 %v1059
    %v1253 = vunpack.c.l.b16 %v1060
    %v1254 = vunpack.c.h.b16 %v1060
    %v1255 = vunpack.c.l.b16 %v1061
    %v1256 = vunpack.c.h.b16 %v1061
    %v1257 = vunpack.c.l.b16 %v1062
    %v1258 = vunpack.c.h.b16 %v1062
    %v1259 = vunpack.c.l.b16 %v1063
    %v1260 = vunpack.c.h.b16 %v1063
    %v1261 = vunpack.c.l.b16 %v1064
    %v1262 = vunpack.c.h.b16 %v1064
    %v1263 = vunpack.c.l.b16 %v1065
    %v1264 = vunpack.c.h.b16 %v1065
    %v1265 = vunpack.c.l.b16 %v1066
    %v1266 = vunpack.c.h.b16 %v1066
    %v1267 = vunpack.c.l.b16 %v1067
    %v1268 = vunpack.c.h.b16 %v1067
    %v1269 = vunpack.c.l.b16 %v1068
    %v1270 = vunpack.c.h.b16 %v1068
    %v1271 = vunpack.c.l.b16 %v1069
    %v1272 = vunpack.c.h.b16 %v1069
    %v1273 = vunpack.c.l.b16 %v1070
    %v1274 = vunpack.c.h.b16 %v1070
    %v1275 = vunpack.c.l.b16 %v1071
    %v1276 = vunpack.c.h.b16 %v1071
    %v1277 = vunpack.c.l.b16 %v1072
    %v1278 = vunpack.c.h.b16 %v1072
    %v1279 = vunpack.c.l.b16 %v1073
    %v1280 = vunpack.c.h.b16 %v1073
    %v1281 = vunpack.c.l.b16 %v1074
    %v1282 = vunpack.c.h.b16 %v1074
    %v1283 = vunpack.c.l.b16 %v1075
    %v1284 = vunpack.c.h.b16 %v1075
    %v1285 = vunpack.c.l.b16 %v1076
    %v1286 = vunpack.c.h.b16 %v1076
    %v1287 = vunpack.c.l.b16 %v1077
    %v1288 = vunpack.c.h.b16 %v1077
    %v1289 = vunpack.c.l.b16 %v1078
    %v1290 = vunpack.c.h.b16 %v1078
    %v1291 = vunpack.c.l.b16 %v1079
    %v1292 = vunpack.c.h.b16 %v1079
    %v1293 = vunpack.c.l.b16 %v1080
    %v1294 = vunpack.c.h.b16 %v1080
    %v1295 = vpack.c.b16 %v1171, %v1167
    %v1296 = vpack.c.b16 %v1172, %v1168
    %v1297 = vpack.c.b16 %v1173, %v1169
    %v1298 = vpack.c.b16 %v1174, %v1170
    %v1299 = vpack.c.b16 %v1179, %v1175
    %v1300 = vpack.c.b16 %v1180, %v1176
    %v1301 = vpack.c.b16 %v1181, %v1177
    %v1302 = vpack.c.b16 %v1182, %v1178
    %v1303 = vpack.c.b16 %v1187, %v1183
    %v1304 = vpack.c.b16 %v1188, %v1184
    %v1305 = vpack.c.b16 %v1189, %v1185
    %v1306 = vpack.c.b16 %v1190, %v1186
    %v1307 = vpack.c.b16 %v1195, %v1191
    %v1308 = vpack.c.b16 %v1196, %v1192
    %v1309 = vpack.c.b16 %v1197, %v1193
    %v1310 = vpack.c.b16 %v1198, %v1194
    %v1311 = vpack.c.b16 %v1203, %v1199
    %v1312 = vpack.c.b16 %v1204, %v1200
    %v1313 = vpack.c.b16 %v1205, %v1201
    %v1314 = vpack.c.b16 %v1206, %v1202
    %v1315 = vpack.c.b16 %v1211, %v1207
    %v1316 = vpack.c.b16 %v1212, %v1208
    %v1317 = vpack.c.b16 %v1213, %v1209
    %v1318 = vpack.c.b16 %v1214, %v1210
    %v1319 = vpack.c.b16 %v1219, %v1215
    %v1320 = vpack.c.b16 %v1220, %v1216
    %v1321 = vpack.c.b16 %v1221, %v1217
    %v1322 = vpack.c.b16 %v1222, %v1218
    %v1323 = vpack.c.b16 %v1227, %v1223
    %v1324 = vpack.c.b16 %v1228, %v1224
    %v1325 = vpack.c.b16 %v1229, %v1225
    %v1326 = vpack.c.b16 %v1230, %v1226
    %v1327 = vpack.c.b16 %v1235, %v1231
    %v1328 = vpack.c.b16 %v1236, %v1232
    %v1329 = vpack.c.b16 %v1237, %v1233
    %v1330 = vpack.c.b16 %v1238, %v1234
    %v1331 = vpack.c.b16 %v1243, %v1239
    %v1332 = vpack.c.b16 %v1244, %v1240
    %v1333 = vpack.c.b16 %v1245, %v1241
    %v1334 = vpack.c.b16 %v1246, %v1242
    %v1335 = vpack.c.b16 %v1251, %v1247
    %v1336 = vpack.c.b16 %v1252, %v1248
    %v1337 = vpack.c.b16 %v1253, %v1249
    %v1338 = vpack.c.b16 %v1254, %v1250
    %v1339 = vpack.c.b16 %v1259, %v1255
    %v1340 = vpack.c.b16 %v1260, %v1256
    %v1341 = vpack.c.b16 %v1261, %v1257
    %v1342 = vpack.c.b16 %v1262, %v1258
    %v1343 = vpack.c.b16 %v1267, %v1263
    %v1344 = vpack.c.b16 %v1268, %v1264
    %v1345 = vpack.c.b16 %v1269, %v1265
    %v1346 = vpack.c.b16 %v1270, %v1266
    %v1347 = vpack.c.b16 %v1275, %v1271
    %v1348 = vpack.c.b16 %v1276, %v1272
    %v1349 = vpack.c.b16 %v1277, %v1273
    %v1350 = vpack.c.b16 %v1278, %v1274
    %v1351 = vpack.c.b16 %v1283, %v1279
    %v1352 = vpack.c.b16 %v1284, %v1280
    %v1353 = vpack.c.b16 %v1285, %v1281
    %v1354 = vpack.c.b16 %v1286, %v1282
    %v1355 = vpack.c.b16 %v1291, %v1287
    %v1356 = vpack.c.b16 %v1292, %v1288
    %v1357 = vpack.c.b16 %v1293, %v1289
    %v1358 = vpack.c.b16 %v1294, %v1290
    %1423 = vmatprep.subr.bf16.mxu0 %v1296
    %1424 = vmatpush1.bf16.msra.mxu0 %v1295
    %1425 = vmatprep.subr.bf16.mxu0 %v1300
    %1426 = vmatpush1.bf16.msra.mxu0 %v1299
    %1427 = vmatprep.subr.bf16.mxu0 %v1304
    %1428 = vmatpush1.bf16.msra.mxu0 %v1303
    %1429 = vmatprep.subr.bf16.mxu0 %v1308
    %1430 = vmatpush1.bf16.msra.mxu0 %v1307
    %1431 = vmatprep.subr.bf16.mxu0 %v1312
    %1432 = vmatpush1.bf16.msra.mxu0 %v1311
    %1433 = vmatprep.subr.bf16.mxu0 %v1316
    %1434 = vmatpush1.bf16.msra.mxu0 %v1315
    %1435 = vmatprep.subr.bf16.mxu0 %v1320
    %1436 = vmatpush1.bf16.msra.mxu0 %v1319
    %1437 = vmatprep.subr.bf16.mxu0 %v1324
    %1438 = vmatpush1.bf16.msra.mxu0 %v1323
    %1439 = vmatprep.subr.bf16.mxu0 %v1328
    %1440 = vmatpush1.bf16.msra.mxu0 %v1327
    %1441 = vmatprep.subr.bf16.mxu0 %v1332
    %1442 = vmatpush1.bf16.msra.mxu0 %v1331
    %1443 = vmatprep.subr.bf16.mxu0 %v1336
    %1444 = vmatpush1.bf16.msra.mxu0 %v1335
    %1445 = vmatprep.subr.bf16.mxu0 %v1340
    %1446 = vmatpush1.bf16.msra.mxu0 %v1339
    %1447 = vmatprep.subr.bf16.mxu0 %v1344
    %1448 = vmatpush1.bf16.msra.mxu0 %v1343
    %1449 = vmatprep.subr.bf16.mxu0 %v1348
    %1450 = vmatpush1.bf16.msra.mxu0 %v1347
    %1451 = vmatprep.subr.bf16.mxu0 %v1352
    %1452 = vmatpush1.bf16.msra.mxu0 %v1351
    %1453 = vmatprep.subr.bf16.mxu0 %v1356
    %1454 = vmatpush1.bf16.msra.mxu0 %v1355
    %1455 = vmatprep.mubr.bf16.mxu0 %v1016
    %1456 = vmatmul.mubr.bf16.gmra.mrb[0].mxu0 %v1015
    %v1457 = vpop.f32.mrb[0].mxu0
    %v1458 = vadd.f32 %v1086, %v1457
    %v1459 = vpop.f32.mrb[0].mxu0
    %v1460 = vadd.f32 %v1090, %v1459
    %v1461 = vpop.f32.mrb[0].mxu0
    %v1462 = vpop.f32.mrb[0].mxu0
    %1463 = vdwg.mxu0
    %1464 = vmatprep.subr.bf16.mxu0 %v1298
    %1465 = vmatpush1.bf16.msra.mxu0 %v1297
    %1466 = vmatprep.subr.bf16.mxu0 %v1302
    %1467 = vmatpush1.bf16.msra.mxu0 %v1301
    %1468 = vmatprep.subr.bf16.mxu0 %v1306
    %1469 = vmatpush1.bf16.msra.mxu0 %v1305
    %1470 = vmatprep.subr.bf16.mxu0 %v1310
    %1471 = vmatpush1.bf16.msra.mxu0 %v1309
    %1472 = vmatprep.subr.bf16.mxu0 %v1314
    %1473 = vmatpush1.bf16.msra.mxu0 %v1313
    %1474 = vmatprep.subr.bf16.mxu0 %v1318
    %1475 = vmatpush1.bf16.msra.mxu0 %v1317
    %1476 = vmatprep.subr.bf16.mxu0 %v1322
    %1477 = vmatpush1.bf16.msra.mxu0 %v1321
    %1478 = vmatprep.subr.bf16.mxu0 %v1326
    %1479 = vmatpush1.bf16.msra.mxu0 %v1325
    %1480 = vmatprep.subr.bf16.mxu0 %v1330
    %1481 = vmatpush1.bf16.msra.mxu0 %v1329
    %1482 = vmatprep.subr.bf16.mxu0 %v1334
    %1483 = vmatpush1.bf16.msra.mxu0 %v1333
    %1484 = vmatprep.subr.bf16.mxu0 %v1338
    %1485 = vmatpush1.bf16.msra.mxu0 %v1337
    %1486 = vmatprep.subr.bf16.mxu0 %v1342
    %1487 = vmatpush1.bf16.msra.mxu0 %v1341
    %1488 = vmatprep.subr.bf16.mxu0 %v1346
    %1489 = vmatpush1.bf16.msra.mxu0 %v1345
    %1490 = vmatprep.subr.bf16.mxu0 %v1350
    %1491 = vmatpush1.bf16.msra.mxu0 %v1349
    %1492 = vmatprep.subr.bf16.mxu0 %v1354
    %1493 = vmatpush1.bf16.msra.mxu0 %v1353
    %1494 = vmatprep.subr.bf16.mxu0 %v1358
    %1495 = vmatpush1.bf16.msra.mxu0 %v1357
    %1496 = vmatprep.mubr.bf16.mxu0 %v1016
    %1497 = vmatmul.mubr.bf16.gmra.mrb[0].mxu0 %v1015
    %v1498 = vpop.f32.mrb[0].mxu0
    %v1499 = vadd.f32 %v1094, %v1498
    %v1500 = vpop.f32.mrb[0].mxu0
    %v1501 = vadd.f32 %v1098, %v1500
    %v1502 = vpop.f32.mrb[0].mxu0
    %v1503 = vpop.f32.mrb[0].mxu0
    %1504 = vdwg.mxu0
    %v1505 = vmax.f32 %v1458, 0.0
    %v1506 = vmax.f32 %v1460, 0.0
    %v1507 = vmax.f32 %v1499, 0.0
    %v1508 = vmax.f32 %v1501, 0.0
    %v1509 = vpack.c.bf16 %v1505, %v1505
    %v1510 = vpack.c.bf16 %v1506, %v1506
    %v1511 = vpack.c.bf16 %v1507, %v1507
    %v1512 = vpack.c.bf16 %v1508, %v1508
    %v1513 = vld [vmem:[#allocation11] sm:$0xf]
    %v1514 = vld [vmem:[#allocation11 + $0x4] sm:$0xf]
    %v1515 = vld [vmem:[#allocation11 + $0x8] sm:$0xf]
    %v1516 = vld [vmem:[#allocation11 + $0xc] sm:$0xf]
    %v1517 = vld [vmem:[#allocation11 + $0x10] sm:$0xf]
    %v1518 = vld [vmem:[#allocation11 + $0x14] sm:$0xf]
    %v1519 = vld [vmem:[#allocation11 + $0x18] sm:$0xf]
    %v1520 = vld [vmem:[#allocation11 + $0x1c] sm:$0xf]
    %v1521 = vld [vmem:[#allocation11 + $0x20] sm:$0xf]
    %v1522 = vld [vmem:[#allocation11 + $0x24] sm:$0xf]
    %v1523 = vld [vmem:[#allocation11 + $0x28] sm:$0xf]
    %v1524 = vld [vmem:[#allocation11 + $0x2c] sm:$0xf]
    %v1525 = vld [vmem:[#allocation11 + $0x30] sm:$0xf]
    %v1526 = vld [vmem:[#allocation11 + $0x34] sm:$0xf]
    %v1527 = vld [vmem:[#allocation11 + $0x38] sm:$0xf]
    %v1528 = vld [vmem:[#allocation11 + $0x3c] sm:$0xf]
    %v1529 = vld [vmem:[#allocation11 + $0x40] sm:$0xf]
    %v1530 = vld [vmem:[#allocation11 + $0x44] sm:$0xf]
    %v1531 = vld [vmem:[#allocation11 + $0x48] sm:$0xf]
    %v1532 = vld [vmem:[#allocation11 + $0x4c] sm:$0xf]
    %v1533 = vld [vmem:[#allocation11 + $0x50] sm:$0xf]
    %v1534 = vld [vmem:[#allocation11 + $0x54] sm:$0xf]
    %v1535 = vld [vmem:[#allocation11 + $0x58] sm:$0xf]
    %v1536 = vld [vmem:[#allocation11 + $0x5c] sm:$0xf]
    %v1537 = vld [vmem:[#allocation11 + $0x60] sm:$0xf]
    %v1538 = vld [vmem:[#allocation11 + $0x64] sm:$0xf]
    %v1539 = vld [vmem:[#allocation11 + $0x68] sm:$0xf]
    %v1540 = vld [vmem:[#allocation11 + $0x6c] sm:$0xf]
    %v1541 = vld [vmem:[#allocation11 + $0x70] sm:$0xf]
    %v1542 = vld [vmem:[#allocation11 + $0x74] sm:$0xf]
    %v1543 = vld [vmem:[#allocation11 + $0x78] sm:$0xf]
    %v1544 = vld [vmem:[#allocation11 + $0x7c] sm:$0xf]
    %v1545 = vld [vmem:[#allocation11 + $0x80] sm:$0xf]
    %v1546 = vld [vmem:[#allocation11 + $0x84] sm:$0xf]
    %v1547 = vld [vmem:[#allocation11 + $0x88] sm:$0xf]
    %v1548 = vld [vmem:[#allocation11 + $0x8c] sm:$0xf]
    %v1549 = vld [vmem:[#allocation11 + $0x90] sm:$0xf]
    %v1550 = vld [vmem:[#allocation11 + $0x94] sm:$0xf]
    %v1551 = vld [vmem:[#allocation11 + $0x98] sm:$0xf]
    %v1552 = vld [vmem:[#allocation11 + $0x9c] sm:$0xf]
    %v1553 = vld [vmem:[#allocation11 + $0xa0] sm:$0xf]
    %v1554 = vld [vmem:[#allocation11 + $0xa4] sm:$0xf]
    %v1555 = vld [vmem:[#allocation11 + $0xa8] sm:$0xf]
    %v1556 = vld [vmem:[#allocation11 + $0xac] sm:$0xf]
    %v1557 = vld [vmem:[#allocation11 + $0xb0] sm:$0xf]
    %v1558 = vld [vmem:[#allocation11 + $0xb4] sm:$0xf]
    %v1559 = vld [vmem:[#allocation11 + $0xb8] sm:$0xf]
    %v1560 = vld [vmem:[#allocation11 + $0xbc] sm:$0xf]
    %v1561 = vld [vmem:[#allocation11 + $0xc0] sm:$0xf]
    %v1562 = vld [vmem:[#allocation11 + $0xc4] sm:$0xf]
    %v1563 = vld [vmem:[#allocation11 + $0xc8] sm:$0xf]
    %v1564 = vld [vmem:[#allocation11 + $0xcc] sm:$0xf]
    %v1565 = vld [vmem:[#allocation11 + $0xd0] sm:$0xf]
    %v1566 = vld [vmem:[#allocation11 + $0xd4] sm:$0xf]
    %v1567 = vld [vmem:[#allocation11 + $0xd8] sm:$0xf]
    %v1568 = vld [vmem:[#allocation11 + $0xdc] sm:$0xf]
    %v1569 = vld [vmem:[#allocation11 + $0xe0] sm:$0xf]
    %v1570 = vld [vmem:[#allocation11 + $0xe4] sm:$0xf]
    %v1571 = vld [vmem:[#allocation11 + $0xe8] sm:$0xf]
    %v1572 = vld [vmem:[#allocation11 + $0xec] sm:$0xf]
    %v1573 = vld [vmem:[#allocation11 + $0xf0] sm:$0xf]
    %v1574 = vld [vmem:[#allocation11 + $0xf4] sm:$0xf]
    %v1575 = vld [vmem:[#allocation11 + $0xf8] sm:$0xf]
    %v1576 = vld [vmem:[#allocation11 + $0xfc] sm:$0xf]
    %v1577 = vld [vmem:[%s10] sm:$0x1]
    %v1579 = vlaneseq
    %v1580 = vshrl.u32 %v1579, 7
    %v1581 = vsub.s32 0, %v1580
    %v1582 = vrot.slane %v1577, %v1581
    %v1648 = vunpack.c.l.b16 %v1513
    %v1649 = vunpack.c.l.b16 %v1514
    %v1650 = vunpack.c.l.b16 %v1515
    %v1651 = vunpack.c.l.b16 %v1516
    %v1652 = vunpack.c.l.b16 %v1517
    %v1653 = vunpack.c.l.b16 %v1518
    %v1654 = vunpack.c.l.b16 %v1519
    %v1655 = vunpack.c.l.b16 %v1520
    %v1656 = vunpack.c.l.b16 %v1521
    %v1657 = vunpack.c.l.b16 %v1522
    %v1658 = vunpack.c.l.b16 %v1523
    %v1659 = vunpack.c.l.b16 %v1524
    %v1660 = vunpack.c.l.b16 %v1525
    %v1661 = vunpack.c.l.b16 %v1526
    %v1662 = vunpack.c.l.b16 %v1527
    %v1663 = vunpack.c.l.b16 %v1528
    %v1664 = vunpack.c.l.b16 %v1529
    %v1665 = vunpack.c.l.b16 %v1530
    %v1666 = vunpack.c.l.b16 %v1531
    %v1667 = vunpack.c.l.b16 %v1532
    %v1668 = vunpack.c.l.b16 %v1533
    %v1669 = vunpack.c.l.b16 %v1534
    %v1670 = vunpack.c.l.b16 %v1535
    %v1671 = vunpack.c.l.b16 %v1536
    %v1672 = vunpack.c.l.b16 %v1537
    %v1673 = vunpack.c.l.b16 %v1538
    %v1674 = vunpack.c.l.b16 %v1539
    %v1675 = vunpack.c.l.b16 %v1540
    %v1676 = vunpack.c.l.b16 %v1541
    %v1677 = vunpack.c.l.b16 %v1542
    %v1678 = vunpack.c.l.b16 %v1543
    %v1679 = vunpack.c.l.b16 %v1544
    %v1680 = vunpack.c.l.b16 %v1545
    %v1681 = vunpack.c.l.b16 %v1546
    %v1682 = vunpack.c.l.b16 %v1547
    %v1683 = vunpack.c.l.b16 %v1548
    %v1684 = vunpack.c.l.b16 %v1549
    %v1685 = vunpack.c.l.b16 %v1550
    %v1686 = vunpack.c.l.b16 %v1551
    %v1687 = vunpack.c.l.b16 %v1552
    %v1688 = vunpack.c.l.b16 %v1553
    %v1689 = vunpack.c.l.b16 %v1554
    %v1690 = vunpack.c.l.b16 %v1555
    %v1691 = vunpack.c.l.b16 %v1556
    %v1692 = vunpack.c.l.b16 %v1557
    %v1693 = vunpack.c.l.b16 %v1558
    %v1694 = vunpack.c.l.b16 %v1559
    %v1695 = vunpack.c.l.b16 %v1560
    %v1696 = vunpack.c.l.b16 %v1561
    %v1697 = vunpack.c.l.b16 %v1562
    %v1698 = vunpack.c.l.b16 %v1563
    %v1699 = vunpack.c.l.b16 %v1564
    %v1700 = vunpack.c.l.b16 %v1565
    %v1701 = vunpack.c.l.b16 %v1566
    %v1702 = vunpack.c.l.b16 %v1567
    %v1703 = vunpack.c.l.b16 %v1568
    %v1704 = vunpack.c.l.b16 %v1569
    %v1705 = vunpack.c.l.b16 %v1570
    %v1706 = vunpack.c.l.b16 %v1571
    %v1707 = vunpack.c.l.b16 %v1572
    %v1708 = vunpack.c.l.b16 %v1573
    %v1709 = vunpack.c.l.b16 %v1574
    %v1710 = vunpack.c.l.b16 %v1575
    %v1711 = vunpack.c.l.b16 %v1576
    %v1712 = vpack.c.b16 %v1649, %v1648
    %v1713 = vpack.c.b16 %v1651, %v1650
    %v1714 = vpack.c.b16 %v1653, %v1652
    %v1715 = vpack.c.b16 %v1655, %v1654
    %v1716 = vpack.c.b16 %v1657, %v1656
    %v1717 = vpack.c.b16 %v1659, %v1658
    %v1718 = vpack.c.b16 %v1661, %v1660
    %v1719 = vpack.c.b16 %v1663, %v1662
    %v1720 = vpack.c.b16 %v1665, %v1664
    %v1721 = vpack.c.b16 %v1667, %v1666
    %v1722 = vpack.c.b16 %v1669, %v1668
    %v1723 = vpack.c.b16 %v1671, %v1670
    %v1724 = vpack.c.b16 %v1673, %v1672
    %v1725 = vpack.c.b16 %v1675, %v1674
    %v1726 = vpack.c.b16 %v1677, %v1676
    %v1727 = vpack.c.b16 %v1679, %v1678
    %v1728 = vpack.c.b16 %v1681, %v1680
    %v1729 = vpack.c.b16 %v1683, %v1682
    %v1730 = vpack.c.b16 %v1685, %v1684
    %v1731 = vpack.c.b16 %v1687, %v1686
    %v1732 = vpack.c.b16 %v1689, %v1688
    %v1733 = vpack.c.b16 %v1691, %v1690
    %v1734 = vpack.c.b16 %v1693, %v1692
    %v1735 = vpack.c.b16 %v1695, %v1694
    %v1736 = vpack.c.b16 %v1697, %v1696
    %v1737 = vpack.c.b16 %v1699, %v1698
    %v1738 = vpack.c.b16 %v1701, %v1700
    %v1739 = vpack.c.b16 %v1703, %v1702
    %v1740 = vpack.c.b16 %v1705, %v1704
    %v1741 = vpack.c.b16 %v1707, %v1706
    %v1742 = vpack.c.b16 %v1709, %v1708
    %v1743 = vpack.c.b16 %v1711, %v1710
    %1776 = vmatprep.subr.bf16.mxu0 0
    %1777 = vmatpush1.bf16.msra.mxu0 %v1712
    %1778 = vmatprep.subr.bf16.mxu0 0
    %1779 = vmatpush1.bf16.msra.mxu0 %v1713
    %1780 = vmatprep.subr.bf16.mxu0 0
    %1781 = vmatpush1.bf16.msra.mxu0 %v1714
    %1782 = vmatprep.subr.bf16.mxu0 0
    %1783 = vmatpush1.bf16.msra.mxu0 %v1715
    %1784 = vmatprep.subr.bf16.mxu0 0
    %1785 = vmatpush1.bf16.msra.mxu0 %v1716
    %1786 = vmatprep.subr.bf16.mxu0 0
    %1787 = vmatpush1.bf16.msra.mxu0 %v1717
    %1788 = vmatprep.subr.bf16.mxu0 0
    %1789 = vmatpush1.bf16.msra.mxu0 %v1718
    %1790 = vmatprep.subr.bf16.mxu0 0
    %1791 = vmatpush1.bf16.msra.mxu0 %v1719
    %1792 = vmatprep.subr.bf16.mxu0 0
    %1793 = vmatpush1.bf16.msra.mxu0 %v1720
    %1794 = vmatprep.subr.bf16.mxu0 0
    %1795 = vmatpush1.bf16.msra.mxu0 %v1721
    %1796 = vmatprep.subr.bf16.mxu0 0
    %1797 = vmatpush1.bf16.msra.mxu0 %v1722
    %1798 = vmatprep.subr.bf16.mxu0 0
    %1799 = vmatpush1.bf16.msra.mxu0 %v1723
    %1800 = vmatprep.subr.bf16.mxu0 0
    %1801 = vmatpush1.bf16.msra.mxu0 %v1724
    %1802 = vmatprep.subr.bf16.mxu0 0
    %1803 = vmatpush1.bf16.msra.mxu0 %v1725
    %1804 = vmatprep.subr.bf16.mxu0 0
    %1805 = vmatpush1.bf16.msra.mxu0 %v1726
    %1806 = vmatprep.subr.bf16.mxu0 0
    %1807 = vmatpush1.bf16.msra.mxu0 %v1727
    %1808 = vmatprep.mubr.bf16.mxu0 %v1510
    %1809 = vmatmul.mubr.bf16.gmra.mrb[0].mxu0 %v1509
    %v1810 = vpop.f32.mrb[0].mxu0
    %v1811 = vadd.f32 %v1582, %v1810
    %v1812 = vpop.f32.mrb[0].mxu0
    %v1813 = vpop.f32.mrb[0].mxu0
    %v1814 = vpop.f32.mrb[0].mxu0
    %1815 = vdwg.mxu0
    %1816 = vmatprep.subr.bf16.mxu0 0
    %1817 = vmatpush1.bf16.msra.mxu0 %v1728
    %1818 = vmatprep.subr.bf16.mxu0 0
    %1819 = vmatpush1.bf16.msra.mxu0 %v1729
    %1820 = vmatprep.subr.bf16.mxu0 0
    %1821 = vmatpush1.bf16.msra.mxu0 %v1730
    %1822 = vmatprep.subr.bf16.mxu0 0
    %1823 = vmatpush1.bf16.msra.mxu0 %v1731
    %1824 = vmatprep.subr.bf16.mxu0 0
    %1825 = vmatpush1.bf16.msra.mxu0 %v1732
    %1826 = vmatprep.subr.bf16.mxu0 0
    %1827 = vmatpush1.bf16.msra.mxu0 %v1733
    %1828 = vmatprep.subr.bf16.mxu0 0
    %1829 = vmatpush1.bf16.msra.mxu0 %v1734
    %1830 = vmatprep.subr.bf16.mxu0 0
    %1831 = vmatpush1.bf16.msra.mxu0 %v1735
    %1832 = vmatprep.subr.bf16.mxu0 0
    %1833 = vmatpush1.bf16.msra.mxu0 %v1736
    %1834 = vmatprep.subr.bf16.mxu0 0
    %1835 = vmatpush1.bf16.msra.mxu0 %v1737
    %1836 = vmatprep.subr.bf16.mxu0 0
    %1837 = vmatpush1.bf16.msra.mxu0 %v1738
    %1838 = vmatprep.subr.bf16.mxu0 0
    %1839 = vmatpush1.bf16.msra.mxu0 %v1739
    %1840 = vmatprep.subr.bf16.mxu0 0
    %1841 = vmatpush1.bf16.msra.mxu0 %v1740
    %1842 = vmatprep.subr.bf16.mxu0 0
    %1843 = vmatpush1.bf16.msra.mxu0 %v1741
    %1844 = vmatprep.subr.bf16.mxu0 0
    %1845 = vmatpush1.bf16.msra.mxu0 %v1742
    %1846 = vmatprep.subr.bf16.mxu0 0
    %1847 = vmatpush1.bf16.msra.mxu0 %v1743
    %1848 = vmatprep.mubr.bf16.mxu0 %v1512
    %1849 = vmatmul.mubr.bf16.gmra.mrb[0].mxu0 %v1511
    %v1850 = vpop.f32.mrb[0].mxu0
    %v1851 = vadd.f32 %v1811, %v1850
    %v1852 = vpop.f32.mrb[0].mxu0
    %v1853 = vpop.f32.mrb[0].mxu0
    %v1854 = vpop.f32.mrb[0].mxu0
    %1855 = vdwg.mxu0
    %v1856 = vpack.c.bf16 %v1851, %v1851
    %1857 = vst [vmem:[#allocation13] sm:$0xf] %v1856
    // Predicated region
    $region70: #{tpu_custom_call.1} parent=1 // pred_check
      _
    $region71: #{tpu_custom_call.1} parent=1 // pred_check_branch
      %1859 = sbr.rel (0) target = $region73
    $region72: #{tpu_custom_call.1} parent=1 // pred_region
      %s1861 = ssub.s32 64, 64
      %1862 = vsyncadd [#allocation4], %s1861
      %s1864 = sshll.u32 [#allocation13], 4
      %s1865 = int_to_ptr.vmem [resolvable:$true] %s1864
      %1867 = dma.vmem_to_hbm [thread:$0]  %s1865, 64, %s11, [#allocation4]
    $region73: #{tpu_custom_call.1} parent=1 // pred_fallthru
      _
    // Predicated region
    $region74: #{tpu_custom_call.1} parent=1 // pred_check
      _
    $region75: #{tpu_custom_call.1} parent=1 // pred_check_branch
      %1869 = sbr.rel (0) target = $region77
    $region76: #{tpu_custom_call.1} parent=1 // pred_region
      %1870 = dma.done [#allocation4], 64
    $region77: #{tpu_custom_call.1} parent=1 // pred_fallthru
      _
    %1871 = vsyncpa [#allocation3], 1
    %1872 = vsyncpa [#allocation6], 1
    %1873 = vsyncpa [#allocation9], 1
    %1874 = vsyncpa [#allocation12], 1
    %1875 = vsyncpa [#allocation4], 1

// kernel: tpu_custom_call.1
$region0: #{tpu_custom_call.1}
  #allocation0 [shape = 'u32[]', space=smem, size = 0x4, offset = 0x4, fixed_abs, tag = 'smem constant byte address 0x4 - core index']
  #allocation1 [shape = 'u32[144,128]{1,0:T(1,128)}', space=vmem, size = 0x12000, scoped, tag = 'internal scratch']
  %s0 = inlined_call_operand.hbm [shape: bf16[8,384], index: 0, kind: input, shape index: {}]
  %s1 = inlined_call_operand.hbm [shape: bf16[384,256], index: 1, kind: input, shape index: {}]
  %s2 = inlined_call_operand.vmem [shape: f32[1,256], index: 2, kind: input, shape index: {}]
  %s3 = inlined_call_operand.hbm [shape: bf16[256,256], index: 3, kind: input, shape index: {}]
  %s4 = inlined_call_operand.vmem [shape: f32[1,256], index: 4, kind: input, shape index: {}]
  %s5 = inlined_call_operand.hbm [shape: bf16[256,256], index: 5, kind: input, shape index: {}]
  %s6 = inlined_call_operand.vmem [shape: f32[1,256], index: 6, kind: input, shape index: {}]
  %s7 = inlined_call_operand.hbm [shape: bf16[256,512], index: 7, kind: input, shape index: {}]
  %s8 = inlined_call_operand.vmem [shape: f32[1,512], index: 8, kind: input, shape index: {}]
  %s9 = inlined_call_operand.hbm [shape: bf16[512,128], index: 9, kind: input, shape index: {}]
  %s10 = inlined_call_operand.vmem [shape: f32[1,128], index: 10, kind: input, shape index: {}]
  %s11 = inlined_call_operand.hbm [shape: bf16[8,128], index: 11, kind: output, shape index: {}]
  %s12 = sld [smem:[#allocation0]]
  $region78: #{tpu_custom_call.1} parent=0
    _
  %s14 = ssub.s32 1, %s12
  %s15 = scalar_select 0, %s14, %s12
  $region1: #{tpu_custom_call.1} parent=0
    #allocation2 [shape = 'u8[6144]{0}', space=vmem, size = 0x1800, scoped, tag = 'input window, operand 0, single buffered']
    #allocation3 [shape = 's32[1]{0}', space=sflag, size = 0x4, scoped, tag = 'scoped memory for tpu_custom_call.1']
    #allocation4 [shape = 's32[1]{0}', space=sflag, size = 0x4, scoped, tag = 'scoped memory for tpu_custom_call.1']
    #allocation5 [shape = 'u8[196608]{0}', space=vmem, size = 0x30000, scoped, tag = 'input window, operand 1, single buffered']
    #allocation6 [shape = 's32[1]{0}', space=sflag, size = 0x4, scoped, tag = 'scoped memory for tpu_custom_call.1']
    #allocation7 [shape = 'u8[131072]{0}', space=vmem, size = 0x20000, scoped, tag = 'input window, operand 3, single buffered']
    #allocation8 [shape = 'u8[131072]{0}', space=vmem, size = 0x20000, scoped, tag = 'input window, operand 5, single buffered']
    #allocation9 [shape = 's32[1]{0}', space=sflag, size = 0x4, scoped, tag = 'scoped memory for tpu_custom_call.1']
    #allocation10 [shape = 'u8[262144]{0}', space=vmem, size = 0x40000, scoped, tag = 'input window, operand 7, single buffered']
    #allocation11 [shape = 'u8[131072]{0}', space=vmem, size = 0x20000, scoped, tag = 'input window, operand 9, single buffered']
    #allocation12 [shape = 's32[1]{0}', space=sflag, size = 0x4, scoped, tag = 'scoped memory for tpu_custom_call.1']
    #allocation13 [shape = 'u8[2048]{0}', space=vmem, size = 0x800, scoped, tag = 'output window, operand 0, single buffered']
    %16 = vsyncpa [#allocation3], 0
    %17 = vsyncpa [#allocation6], 0
    %18 = vsyncpa [#allocation9], 0
    %19 = vsyncpa [#allocation12], 0
    %20 = vsyncpa [#allocation4], 0
    // Predicated region
    $region2: #{tpu_custom_call.1} parent=1 // pred_check
      _
    $region3: #{tpu_custom_call.1} parent=1 // pred_check_branch
      %22 = sbr.rel (0) target = $region5
    $region4: #{tpu_custom_call.1} parent=1 // pred_region
      %s24 = ssub.s32 192, 192
      %25 = vsyncadd [#allocation3], %s24
      %s27 = sshll.u32 [#allocation2], 4
      %s28 = int_to_ptr.vmem [resolvable:$true] %s27
      %30 = dma.hbm_to_vmem [thread:$0]  %s0, 192, %s28, [#allocation3]
    $region5: #{tpu_custom_call.1} parent=1 // pred_fallthru
      _
    // Predicated region
    $region6: #{tpu_custom_call.1} parent=1 // pred_check
      _
    $region7: #{tpu_custom_call.1} parent=1 // pred_check_branch
      %32 = sbr.rel (0) target = $region9
    $region8: #{tpu_custom_call.1} parent=1 // pred_region
      %s34 = ssub.s32 6144, 6144
      %35 = vsyncadd [#allocation6], %s34
      %s36 = sshll.u32 [#allocation5], 4
      %s37 = int_to_ptr.vmem [resolvable:$true] %s36
      %42 = dma.hbm_to_vmem [thread:$0]  %s1, 6144, %s37, [#allocation6], 128, 128, 8
    $region9: #{tpu_custom_call.1} parent=1 // pred_fallthru
      _
    // Predicated region
    $region10: #{tpu_custom_call.1} parent=1 // pred_check
      _
    $region11: #{tpu_custom_call.1} parent=1 // pred_check_branch
      %44 = sbr.rel (0) target = $region13
    $region12: #{tpu_custom_call.1} parent=1 // pred_region
      _
    $region13: #{tpu_custom_call.1} parent=1 // pred_fallthru
      _
    // Predicated region
    $region14: #{tpu_custom_call.1} parent=1 // pred_check
      _
    $region15: #{tpu_custom_call.1} parent=1 // pred_check_branch
      %46 = sbr.rel (0) target = $region17
    $region16: #{tpu_custom_call.1} parent=1 // pred_region
      %s48 = ssub.s32 4096, 4096
      %49 = vsyncadd [#allocation6], %s48
      %s50 = sshll.u32 [#allocation7], 4
      %s51 = int_to_ptr.vmem [resolvable:$true] %s50
      %56 = dma.hbm_to_vmem [thread:$0]  %s3, 4096, %s51, [#allocation6], 128, 128, 8
    $region17: #{tpu_custom_call.1} parent=1 // pred_fallthru
      _
    // Predicated region
    $region18: #{tpu_custom_call.1} parent=1 // pred_check
      _
    $region19: #{tpu_custom_call.1} parent=1 // pred_check_branch
      %58 = sbr.rel (0) target = $region21
    $region20: #{tpu_custom_call.1} parent=1 // pred_region
      _
    $region21: #{tpu_custom_call.1} parent=1 // pred_fallthru
      _
    // Predicated region
    $region22: #{tpu_custom_call.1} parent=1 // pred_check
      _
    $region23: #{tpu_custom_call.1} parent=1 // pred_check_branch
      %60 = sbr.rel (0) target = $region25
    $region24: #{tpu_custom_call.1} parent=1 // pred_region
      %s62 = ssub.s32 4096, 4096
      %63 = vsyncadd [#allocation9], %s62
      %s64 = sshll.u32 [#allocation8], 4
      %s65 = int_to_ptr.vmem [resolvable:$true] %s64
      %70 = dma.hbm_to_vmem [thread:$0]  %s5, 4096, %s65, [#allocation9], 128, 128, 8
    $region25: #{tpu_custom_call.1} parent=1 // pred_fallthru
      _
    // Predicated region
    $region26: #{tpu_custom_call.1} parent=1 // pred_check
      _
    $region27: #{tpu_custom_call.1} parent=1 // pred_check_branch
      %72 = sbr.rel (0) target = $region29
    $region28: #{tpu_custom_call.1} parent=1 // pred_region
      _
    $region29: #{tpu_custom_call.1} parent=1 // pred_fallthru
      _
    // Predicated region
    $region30: #{tpu_custom_call.1} parent=1 // pred_check
      _
    $region31: #{tpu_custom_call.1} parent=1 // pred_check_branch
      %74 = sbr.rel (0) target = $region33
    $region32: #{tpu_custom_call.1} parent=1 // pred_region
      %s76 = ssub.s32 8192, 8192
      %77 = vsyncadd [#allocation9], %s76
      %s78 = sshll.u32 [#allocation10], 4
      %s79 = int_to_ptr.vmem [resolvable:$true] %s78
      %84 = dma.hbm_to_vmem [thread:$0]  %s7, 8192, %s79, [#allocation9], 256, 256, 16
    $region33: #{tpu_custom_call.1} parent=1 // pred_fallthru
      _
    // Predicated region
    $region34: #{tpu_custom_call.1} parent=1 // pred_check
      _
    $region35: #{tpu_custom_call.1} parent=1 // pred_check_branch
      %86 = sbr.rel (0) target = $region37
    $region36: #{tpu_custom_call.1} parent=1 // pred_region
      _
    $region37: #{tpu_custom_call.1} parent=1 // pred_fallthru
      _
    // Predicated region
    $region38: #{tpu_custom_call.1} parent=1 // pred_check
      _
    $region39: #{tpu_custom_call.1} parent=1 // pred_check_branch
      %88 = sbr.rel (0) target = $region41
    $region40: #{tpu_custom_call.1} parent=1 // pred_region
      %s90 = ssub.s32 4096, 4096
      %91 = vsyncadd [#allocation12], %s90
      %s92 = sshll.u32 [#allocation11], 4
      %s93 = int_to_ptr.vmem [resolvable:$true] %s92
      %98 = dma.hbm_to_vmem [thread:$0]  %s9, 4096, %s93, [#allocation12], 64, 64, 4
    $region41: #{tpu_custom_call.1} parent=1 // pred_fallthru
      _
    // Predicated region
    $region42: #{tpu_custom_call.1} parent=1 // pred_check
      _
    $region43: #{tpu_custom_call.1} parent=1 // pred_check_branch
      %100 = sbr.rel (0) target = $region45
    $region44: #{tpu_custom_call.1} parent=1 // pred_region
      _
    $region45: #{tpu_custom_call.1} parent=1 // pred_fallthru
      _
    // Predicated region
    $region46: #{tpu_custom_call.1} parent=1 // pred_check
      _
    $region47: #{tpu_custom_call.1} parent=1 // pred_check_branch
      %102 = sbr.rel (0) target = $region49
    $region48: #{tpu_custom_call.1} parent=1 // pred_region
      %103 = dma.done [#allocation3], 192
    $region49: #{tpu_custom_call.1} parent=1 // pred_fallthru
      _
    // Predicated region
    $region50: #{tpu_custom_call.1} parent=1 // pred_check
      _
    $region51: #{tpu_custom_call.1} parent=1 // pred_check_branch
      %105 = sbr.rel (0) target = $region53
    $region52: #{tpu_custom_call.1} parent=1 // pred_region
      %106 = dma.done [#allocation6], 6144
    $region53: #{tpu_custom_call.1} parent=1 // pred_fallthru
      _
    // Predicated region
    $region54: #{tpu_custom_call.1} parent=1 // pred_check
      _
    $region55: #{tpu_custom_call.1} parent=1 // pred_check_branch
      %108 = sbr.rel (0) target = $region57
    $region56: #{tpu_custom_call.1} parent=1 // pred_region
      %109 = dma.done [#allocation6], 4096
    $region57: #{tpu_custom_call.1} parent=1 // pred_fallthru
      _
    // Predicated region
    $region58: #{tpu_custom_call.1} parent=1 // pred_check
      _
    $region59: #{tpu_custom_call.1} parent=1 // pred_check_branch
      %111 = sbr.rel (0) target = $region61
    $region60: #{tpu_custom_call.1} parent=1 // pred_region
      %112 = dma.done [#allocation9], 4096
    $region61: #{tpu_custom_call.1} parent=1 // pred_fallthru
      _
    // Predicated region
    $region62: #{tpu_custom_call.1} parent=1 // pred_check
      _
    $region63: #{tpu_custom_call.1} parent=1 // pred_check_branch
      %114 = sbr.rel (0) target = $region65
    $region64: #{tpu_custom_call.1} parent=1 // pred_region
      %115 = dma.done [#allocation9], 8192
    $region65: #{tpu_custom_call.1} parent=1 // pred_fallthru
      _
    // Predicated region
    $region66: #{tpu_custom_call.1} parent=1 // pred_check
      _
    $region67: #{tpu_custom_call.1} parent=1 // pred_check_branch
      %117 = sbr.rel (0) target = $region69
    $region68: #{tpu_custom_call.1} parent=1 // pred_region
      %118 = dma.done [#allocation12], 4096
    $region69: #{tpu_custom_call.1} parent=1 // pred_fallthru
      _
    %v120 = vld [vmem:[#allocation2] sm:$0xff]
    %v121 = vld [vmem:[#allocation2 + $0x8] sm:$0xf]
    %v122 = vld [vmem:[#allocation5] sm:$0xff]
    %v123 = vld [vmem:[#allocation5 + $0x8] sm:$0xff]
    %v124 = vld [vmem:[#allocation5 + $0x10] sm:$0xff]
    %v125 = vld [vmem:[#allocation5 + $0x18] sm:$0xff]
    %v126 = vld [vmem:[#allocation5 + $0x20] sm:$0xff]
    %v127 = vld [vmem:[#allocation5 + $0x28] sm:$0xff]
    %v128 = vld [vmem:[#allocation5 + $0x30] sm:$0xff]
    %v129 = vld [vmem:[#allocation5 + $0x38] sm:$0xff]
    %v130 = vld [vmem:[#allocation5 + $0x40] sm:$0xff]
    %v131 = vld [vmem:[#allocation5 + $0x48] sm:$0xff]
    %v132 = vld [vmem:[#allocation5 + $0x50] sm:$0xff]
    %v133 = vld [vmem:[#allocation5 + $0x58] sm:$0xff]
    %v134 = vld [vmem:[#allocation5 + $0x60] sm:$0xff]
    %v135 = vld [vmem:[#allocation5 + $0x68] sm:$0xff]
    %v136 = vld [vmem:[#allocation5 + $0x70] sm:$0xff]
    %v137 = vld [vmem:[#allocation5 + $0x78] sm:$0xff]
    %v138 = vld [vmem:[#allocation5 + $0x80] sm:$0xff]
    %v139 = vld [vmem:[#allocation5 + $0x88] sm:$0xff]
    %v140 = vld [vmem:[#allocation5 + $0x90] sm:$0xff]
    %v141 = vld [vmem:[#allocation5 + $0x98] sm:$0xff]
    %v142 = vld [vmem:[#allocation5 + $0xa0] sm:$0xff]
    %v143 = vld [vmem:[#allocation5 + $0xa8] sm:$0xff]
    %v144 = vld [vmem:[#allocation5 + $0xb0] sm:$0xff]
    %v145 = vld [vmem:[#allocation5 + $0xb8] sm:$0xff]
    %v146 = vld [vmem:[#allocation5 + $0xc0] sm:$0xff]
    %v147 = vld [vmem:[#allocation5 + $0xc8] sm:$0xff]
    %v148 = vld [vmem:[#allocation5 + $0xd0] sm:$0xff]
    %v149 = vld [vmem:[#allocation5 + $0xd8] sm:$0xff]
    %v150 = vld [vmem:[#allocation5 + $0xe0] sm:$0xff]
    %v151 = vld [vmem:[#allocation5 + $0xe8] sm:$0xff]
    %v152 = vld [vmem:[#allocation5 + $0xf0] sm:$0xff]
    %v153 = vld [vmem:[#allocation5 + $0xf8] sm:$0xff]
    %v154 = vld [vmem:[#allocation5 + $0x100] sm:$0xff]
    %v155 = vld [vmem:[#allocation5 + $0x108] sm:$0xff]
    %v156 = vld [vmem:[#allocation5 + $0x110] sm:$0xff]
    %v157 = vld [vmem:[#allocation5 + $0x118] sm:$0xff]
    %v158 = vld [vmem:[#allocation5 + $0x120] sm:$0xff]
    %v159 = vld [vmem:[#allocation5 + $0x128] sm:$0xff]
    %v160 = vld [vmem:[#allocation5 + $0x130] sm:$0xff]
    %v161 = vld [vmem:[#allocation5 + $0x138] sm:$0xff]
    %v162 = vld [vmem:[#allocation5 + $0x140] sm:$0xff]
    %v163 = vld [vmem:[#allocation5 + $0x148] sm:$0xff]
    %v164 = vld [vmem:[#allocation5 + $0x150] sm:$0xff]
    %v165 = vld [vmem:[#allocation5 + $0x158] sm:$0xff]
    %v166 = vld [vmem:[#allocation5 + $0x160] sm:$0xff]
    %v167 = vld [vmem:[#allocation5 + $0x168] sm:$0xff]
    %v168 = vld [vmem:[#allocation5 + $0x170] sm:$0xff]
    %v169 = vld [vmem:[#allocation5 + $0x178] sm:$0xff]
    %v170 = vld [vmem:[%s2] sm:$0x3]
    %v172 = vlaneseq
    %v173 = vshrl.u32 %v172, 7
    %v174 = vsub.s32 0, %v173
    %v175 = vrot.slane %v170, %v174
    %v176 = vlaneseq
    %v177 = vshrl.u32 %v176, 7
    %v178 = vsub.s32 1, %v177
    %v179 = vrot.slane %v170, %v178
    %v184 = vunpack.c.l.b16 %v120
    %v185 = vunpack.c.h.b16 %v120
    %v186 = vunpack.c.l.b16 %v121
    %v187 = vpack.c.b16 %v184, %v184
    %v188 = vpack.c.b16 %v185, %v185
    %v189 = vpack.c.b16 %v186, %v186
    %v241 = vunpack.c.l.b16 %v122
    %v242 = vunpack.c.h.b16 %v122
    %v243 = vunpack.c.l.b16 %v123
    %v244 = vunpack.c.h.b16 %v123
    %v245 = vunpack.c.l.b16 %v124
    %v246 = vunpack.c.h.b16 %v124
    %v247 = vunpack.c.l.b16 %v125
    %v248 = vunpack.c.h.b16 %v125
    %v249 = vunpack.c.l.b16 %v126
    %v250 = vunpack.c.h.b16 %v126
    %v251 = vunpack.c.l.b16 %v127
    %v252 = vunpack.c.h.b16 %v127
    %v253 = vunpack.c.l.b16 %v128
    %v254 = vunpack.c.h.b16 %v128
    %v255 = vunpack.c.l.b16 %v129
    %v256 = vunpack.c.h.b16 %v129
    %v257 = vunpack.c.l.b16 %v130
    %v258 = vunpack.c.h.b16 %v130
    %v259 = vunpack.c.l.b16 %v131
    %v260 = vunpack.c.h.b16 %v131
    %v261 = vunpack.c.l.b16 %v132
    %v262 = vunpack.c.h.b16 %v132
    %v263 = vunpack.c.l.b16 %v133
    %v264 = vunpack.c.h.b16 %v133
    %v265 = vunpack.c.l.b16 %v134
    %v266 = vunpack.c.h.b16 %v134
    %v267 = vunpack.c.l.b16 %v135
    %v268 = vunpack.c.h.b16 %v135
    %v269 = vunpack.c.l.b16 %v136
    %v270 = vunpack.c.h.b16 %v136
    %v271 = vunpack.c.l.b16 %v137
    %v272 = vunpack.c.h.b16 %v137
    %v273 = vunpack.c.l.b16 %v138
    %v274 = vunpack.c.h.b16 %v138
    %v275 = vunpack.c.l.b16 %v139
    %v276 = vunpack.c.h.b16 %v139
    %v277 = vunpack.c.l.b16 %v140
    %v278 = vunpack.c.h.b16 %v140
    %v279 = vunpack.c.l.b16 %v141
    %v280 = vunpack.c.h.b16 %v141
    %v281 = vunpack.c.l.b16 %v142
    %v282 = vunpack.c.h.b16 %v142
    %v283 = vunpack.c.l.b16 %v143
    %v284 = vunpack.c.h.b16 %v143
    %v285 = vunpack.c.l.b16 %v144
    %v286 = vunpack.c.h.b16 %v144
    %v287 = vunpack.c.l.b16 %v145
    %v288 = vunpack.c.h.b16 %v145
    %v289 = vunpack.c.l.b16 %v146
    %v290 = vunpack.c.h.b16 %v146
    %v291 = vunpack.c.l.b16 %v147
    %v292 = vunpack.c.h.b16 %v147
    %v293 = vunpack.c.l.b16 %v148
    %v294 = vunpack.c.h.b16 %v148
    %v295 = vunpack.c.l.b16 %v149
    %v296 = vunpack.c.h.b16 %v149
    %v297 = vunpack.c.l.b16 %v150
    %v298 = vunpack.c.h.b16 %v150
    %v299 = vunpack.c.l.b16 %v151
    %v300 = vunpack.c.h.b16 %v151
    %v301 = vunpack.c.l.b16 %v152
    %v302 = vunpack.c.h.b16 %v152
    %v303 = vunpack.c.l.b16 %v153
    %v304 = vunpack.c.h.b16 %v153
    %v305 = vunpack.c.l.b16 %v154
    %v306 = vunpack.c.h.b16 %v154
    %v307 = vunpack.c.l.b16 %v155
    %v308 = vunpack.c.h.b16 %v155
    %v309 = vunpack.c.l.b16 %v156
    %v310 = vunpack.c.h.b16 %v156
    %v311 = vunpack.c.l.b16 %v157
    %v312 = vunpack.c.h.b16 %v157
    %v313 = vunpack.c.l.b16 %v158
    %v314 = vunpack.c.h.b16 %v158
    %v315 = vunpack.c.l.b16 %v159
    %v316 = vunpack.c.h.b16 %v159
    %v317 = vunpack.c.l.b16 %v160
    %v318 = vunpack.c.h.b16 %v160
    %v319 = vunpack.c.l.b16 %v161
    %v320 = vunpack.c.h.b16 %v161
    %v321 = vunpack.c.l.b16 %v162
    %v322 = vunpack.c.h.b16 %v162
    %v323 = vunpack.c.l.b16 %v163
    %v324 = vunpack.c.h.b16 %v163
    %v325 = vunpack.c.l.b16 %v164
    %v326 = vunpack.c.h.b16 %v164
    %v327 = vunpack.c.l.b16 %v165
    %v328 = vunpack.c.h.b16 %v165
    %v329 = vunpack.c.l.b16 %v166
    %v330 = vunpack.c.h.b16 %v166
    %v331 = vunpack.c.l.b16 %v167
    %v332 = vunpack.c.h.b16 %v167
    %v333 = vunpack.c.l.b16 %v168
    %v334 = vunpack.c.h.b16 %v168
    %v335 = vunpack.c.l.b16 %v169
    %v336 = vunpack.c.h.b16 %v169
    %v337 = vpack.c.b16 %v243, %v241
    %v338 = vpack.c.b16 %v244, %v242
    %v339 = vpack.c.b16 %v247, %v245
    %v340 = vpack.c.b16 %v248, %v246
    %v341 = vpack.c.b16 %v251, %v249
    %v342 = vpack.c.b16 %v252, %v250
    %v343 = vpack.c.b16 %v255, %v253
    %v344 = vpack.c.b16 %v256, %v254
    %v345 = vpack.c.b16 %v259, %v257
    %v346 = vpack.c.b16 %v260, %v258
    %v347 = vpack.c.b16 %v263, %v261
    %v348 = vpack.c.b16 %v264, %v262
    %v349 = vpack.c.b16 %v267, %v265
    %v350 = vpack.c.b16 %v268, %v266
    %v351 = vpack.c.b16 %v271, %v269
    %v352 = vpack.c.b16 %v272, %v270
    %v353 = vpack.c.b16 %v275, %v273
    %v354 = vpack.c.b16 %v276, %v274
    %v355 = vpack.c.b16 %v279, %v277
    %v356 = vpack.c.b16 %v280, %v278
    %v357 = vpack.c.b16 %v283, %v281
    %v358 = vpack.c.b16 %v284, %v282
    %v359 = vpack.c.b16 %v287, %v285
    %v360 = vpack.c.b16 %v288, %v286
    %v361 = vpack.c.b16 %v291, %v289
    %v362 = vpack.c.b16 %v292, %v290
    %v363 = vpack.c.b16 %v295, %v293
    %v364 = vpack.c.b16 %v296, %v294
    %v365 = vpack.c.b16 %v299, %v297
    %v366 = vpack.c.b16 %v300, %v298
    %v367 = vpack.c.b16 %v303, %v301
    %v368 = vpack.c.b16 %v304, %v302
    %v369 = vpack.c.b16 %v307, %v305
    %v370 = vpack.c.b16 %v308, %v306
    %v371 = vpack.c.b16 %v311, %v309
    %v372 = vpack.c.b16 %v312, %v310
    %v373 = vpack.c.b16 %v315, %v313
    %v374 = vpack.c.b16 %v316, %v314
    %v375 = vpack.c.b16 %v319, %v317
    %v376 = vpack.c.b16 %v320, %v318
    %v377 = vpack.c.b16 %v323, %v321
    %v378 = vpack.c.b16 %v324, %v322
    %v379 = vpack.c.b16 %v327, %v325
    %v380 = vpack.c.b16 %v328, %v326
    %v381 = vpack.c.b16 %v331, %v329
    %v382 = vpack.c.b16 %v332, %v330
    %v383 = vpack.c.b16 %v335, %v333
    %v384 = vpack.c.b16 %v336, %v334
    %433 = vmatprep.subr.bf16.mxu0 %v338
    %434 = vmatpush1.bf16.msra.mxu0 %v337
    %435 = vmatprep.subr.bf16.mxu0 %v340
    %436 = vmatpush1.bf16.msra.mxu0 %v339
    %437 = vmatprep.subr.bf16.mxu0 %v342
    %438 = vmatpush1.bf16.msra.mxu0 %v341
    %439 = vmatprep.subr.bf16.mxu0 %v344
    %440 = vmatpush1.bf16.msra.mxu0 %v343
    %441 = vmatprep.subr.bf16.mxu0 %v346
    %442 = vmatpush1.bf16.msra.mxu0 %v345
    %443 = vmatprep.subr.bf16.mxu0 %v348
    %444 = vmatpush1.bf16.msra.mxu0 %v347
    %445 = vmatprep.subr.bf16.mxu0 %v350
    %446 = vmatpush1.bf16.msra.mxu0 %v349
    %447 = vmatprep.subr.bf16.mxu0 %v352
    %448 = vmatpush1.bf16.msra.mxu0 %v351
    %449 = vmatprep.subr.bf16.mxu0 %v354
    %450 = vmatpush1.bf16.msra.mxu0 %v353
    %451 = vmatprep.subr.bf16.mxu0 %v356
    %452 = vmatpush1.bf16.msra.mxu0 %v355
    %453 = vmatprep.subr.bf16.mxu0 %v358
    %454 = vmatpush1.bf16.msra.mxu0 %v357
    %455 = vmatprep.subr.bf16.mxu0 %v360
    %456 = vmatpush1.bf16.msra.mxu0 %v359
    %457 = vmatprep.subr.bf16.mxu0 %v362
    %458 = vmatpush1.bf16.msra.mxu0 %v361
    %459 = vmatprep.subr.bf16.mxu0 %v364
    %460 = vmatpush1.bf16.msra.mxu0 %v363
    %461 = vmatprep.subr.bf16.mxu0 %v366
    %462 = vmatpush1.bf16.msra.mxu0 %v365
    %463 = vmatprep.subr.bf16.mxu0 %v368
    %464 = vmatpush1.bf16.msra.mxu0 %v367
    %465 = vmatprep.mubr.bf16.mxu0 %v188
    %466 = vmatmul.mubr.bf16.gmra.mrb[0].mxu0 %v187
    %v467 = vpop.f32.mrb[0].mxu0
    %v468 = vadd.f32 %v175, %v467
    %v469 = vpop.f32.mrb[0].mxu0
    %v470 = vadd.f32 %v179, %v469
    %v471 = vpop.f32.mrb[0].mxu0
    %v472 = vpop.f32.mrb[0].mxu0
    %473 = vdwg.mxu0
    %474 = vmatprep.subr.bf16.mxu0 %v370
    %475 = vmatpush1.bf16.msra.mxu0 %v369
    %476 = vmatprep.subr.bf16.mxu0 %v372
    %477 = vmatpush1.bf16.msra.mxu0 %v371
    %478 = vmatprep.subr.bf16.mxu0 %v374
    %479 = vmatpush1.bf16.msra.mxu0 %v373
    %480 = vmatprep.subr.bf16.mxu0 %v376
    %481 = vmatpush1.bf16.msra.mxu0 %v375
    %482 = vmatprep.subr.bf16.mxu0 %v378
    %483 = vmatpush1.bf16.msra.mxu0 %v377
    %484 = vmatprep.subr.bf16.mxu0 %v380
    %485 = vmatpush1.bf16.msra.mxu0 %v379
    %486 = vmatprep.subr.bf16.mxu0 %v382
    %487 = vmatpush1.bf16.msra.mxu0 %v381
    %488 = vmatprep.subr.bf16.mxu0 %v384
    %489 = vmatpush1.bf16.msra.mxu0 %v383
    %490 = vmatprep.subr.bf16.mxu0 0
    %491 = vmatpush1.bf16.msra.mxu0 0
    %492 = vmatprep.subr.bf16.mxu0 0
    %493 = vmatpush1.bf16.msra.mxu0 0
    %494 = vmatprep.subr.bf16.mxu0 0
    %495 = vmatpush1.bf16.msra.mxu0 0
    %496 = vmatprep.subr.bf16.mxu0 0
    %497 = vmatpush1.bf16.msra.mxu0 0
    %498 = vmatprep.subr.bf16.mxu0 0
    %499 = vmatpush1.bf16.msra.mxu0 0
    %500 = vmatprep.subr.bf16.mxu0 0
    %501 = vmatpush1.bf16.msra.mxu0 0
    %502 = vmatprep.subr.bf16.mxu0 0
    %503 = vmatpush1.bf16.msra.mxu0 0
    %504 = vmatprep.subr.bf16.mxu0 0
    %505 = vmatpush1.bf16.msra.mxu0 0
    %506 = vmatprep.mubr.bf16.mxu0 0
    %507 = vmatmul.mubr.bf16.gmra.mrb[0].mxu0 %v189
    %v508 = vpop.f32.mrb[0].mxu0
    %v509 = vadd.f32 %v468, %v508
    %v510 = vpop.f32.mrb[0].mxu0
    %v511 = vadd.f32 %v470, %v510
    %v512 = vpop.f32.mrb[0].mxu0
    %v513 = vpop.f32.mrb[0].mxu0
    %514 = vdwg.mxu0
    %v515 = vmax.f32 %v509, 0.0
    %v516 = vmax.f32 %v511, 0.0
    %v517 = vpack.c.bf16 %v515, %v515
    %v518 = vpack.c.bf16 %v516, %v516
    %v519 = vld [vmem:[#allocation7] sm:$0xff]
    %v520 = vld [vmem:[#allocation7 + $0x8] sm:$0xff]
    %v521 = vld [vmem:[#allocation7 + $0x10] sm:$0xff]
    %v522 = vld [vmem:[#allocation7 + $0x18] sm:$0xff]
    %v523 = vld [vmem:[#allocation7 + $0x20] sm:$0xff]
    %v524 = vld [vmem:[#allocation7 + $0x28] sm:$0xff]
    %v525 = vld [vmem:[#allocation7 + $0x30] sm:$0xff]
    %v526 = vld [vmem:[#allocation7 + $0x38] sm:$0xff]
    %v527 = vld [vmem:[#allocation7 + $0x40] sm:$0xff]
    %v528 = vld [vmem:[#allocation7 + $0x48] sm:$0xff]
    %v529 = vld [vmem:[#allocation7 + $0x50] sm:$0xff]
    %v530 = vld [vmem:[#allocation7 + $0x58] sm:$0xff]
    %v531 = vld [vmem:[#allocation7 + $0x60] sm:$0xff]
    %v532 = vld [vmem:[#allocation7 + $0x68] sm:$0xff]
    %v533 = vld [vmem:[#allocation7 + $0x70] sm:$0xff]
    %v534 = vld [vmem:[#allocation7 + $0x78] sm:$0xff]
    %v535 = vld [vmem:[#allocation7 + $0x80] sm:$0xff]
    %v536 = vld [vmem:[#allocation7 + $0x88] sm:$0xff]
    %v537 = vld [vmem:[#allocation7 + $0x90] sm:$0xff]
    %v538 = vld [vmem:[#allocation7 + $0x98] sm:$0xff]
    %v539 = vld [vmem:[#allocation7 + $0xa0] sm:$0xff]
    %v540 = vld [vmem:[#allocation7 + $0xa8] sm:$0xff]
    %v541 = vld [vmem:[#allocation7 + $0xb0] sm:$0xff]
    %v542 = vld [vmem:[#allocation7 + $0xb8] sm:$0xff]
    %v543 = vld [vmem:[#allocation7 + $0xc0] sm:$0xff]
    %v544 = vld [vmem:[#allocation7 + $0xc8] sm:$0xff]
    %v545 = vld [vmem:[#allocation7 + $0xd0] sm:$0xff]
    %v546 = vld [vmem:[#allocation7 + $0xd8] sm:$0xff]
    %v547 = vld [vmem:[#allocation7 + $0xe0] sm:$0xff]
    %v548 = vld [vmem:[#allocation7 + $0xe8] sm:$0xff]
    %v549 = vld [vmem:[#allocation7 + $0xf0] sm:$0xff]
    %v550 = vld [vmem:[#allocation7 + $0xf8] sm:$0xff]
    %v551 = vld [vmem:[%s4] sm:$0x3]
    %v553 = vlaneseq
    %v554 = vshrl.u32 %v553, 7
    %v555 = vsub.s32 0, %v554
    %v556 = vrot.slane %v551, %v555
    %v557 = vlaneseq
    %v558 = vshrl.u32 %v557, 7
    %v559 = vsub.s32 1, %v558
    %v560 = vrot.slane %v551, %v559
    %v595 = vunpack.c.l.b16 %v519
    %v596 = vunpack.c.h.b16 %v519
    %v597 = vunpack.c.l.b16 %v520
    %v598 = vunpack.c.h.b16 %v520
    %v599 = vunpack.c.l.b16 %v521
    %v600 = vunpack.c.h.b16 %v521
    %v601 = vunpack.c.l.b16 %v522
    %v602 = vunpack.c.h.b16 %v522
    %v603 = vunpack.c.l.b16 %v523
    %v604 = vunpack.c.h.b16 %v523
    %v605 = vunpack.c.l.b16 %v524
    %v606 = vunpack.c.h.b16 %v524
    %v607 = vunpack.c.l.b16 %v525
    %v608 = vunpack.c.h.b16 %v525
    %v609 = vunpack.c.l.b16 %v526
    %v610 = vunpack.c.h.b16 %v526
    %v611 = vunpack.c.l.b16 %v527
    %v612 = vunpack.c.h.b16 %v527
    %v613 = vunpack.c.l.b16 %v528
    %v614 = vunpack.c.h.b16 %v528
    %v615 = vunpack.c.l.b16 %v529
    %v616 = vunpack.c.h.b16 %v529
    %v617 = vunpack.c.l.b16 %v530
    %v618 = vunpack.c.h.b16 %v530
    %v619 = vunpack.c.l.b16 %v531
    %v620 = vunpack.c.h.b16 %v531
    %v621 = vunpack.c.l.b16 %v532
    %v622 = vunpack.c.h.b16 %v532
    %v623 = vunpack.c.l.b16 %v533
    %v624 = vunpack.c.h.b16 %v533
    %v625 = vunpack.c.l.b16 %v534
    %v626 = vunpack.c.h.b16 %v534
    %v627 = vunpack.c.l.b16 %v535
    %v628 = vunpack.c.h.b16 %v535
    %v629 = vunpack.c.l.b16 %v536
    %v630 = vunpack.c.h.b16 %v536
    %v631 = vunpack.c.l.b16 %v537
    %v632 = vunpack.c.h.b16 %v537
    %v633 = vunpack.c.l.b16 %v538
    %v634 = vunpack.c.h.b16 %v538
    %v635 = vunpack.c.l.b16 %v539
    %v636 = vunpack.c.h.b16 %v539
    %v637 = vunpack.c.l.b16 %v540
    %v638 = vunpack.c.h.b16 %v540
    %v639 = vunpack.c.l.b16 %v541
    %v640 = vunpack.c.h.b16 %v541
    %v641 = vunpack.c.l.b16 %v542
    %v642 = vunpack.c.h.b16 %v542
    %v643 = vunpack.c.l.b16 %v543
    %v644 = vunpack.c.h.b16 %v543
    %v645 = vunpack.c.l.b16 %v544
    %v646 = vunpack.c.h.b16 %v544
    %v647 = vunpack.c.l.b16 %v545
    %v648 = vunpack.c.h.b16 %v545
    %v649 = vunpack.c.l.b16 %v546
    %v650 = vunpack.c.h.b16 %v546
    %v651 = vunpack.c.l.b16 %v547
    %v652 = vunpack.c.h.b16 %v547
    %v653 = vunpack.c.l.b16 %v548
    %v654 = vunpack.c.h.b16 %v548
    %v655 = vunpack.c.l.b16 %v549
    %v656 = vunpack.c.h.b16 %v549
    %v657 = vunpack.c.l.b16 %v550
    %v658 = vunpack.c.h.b16 %v550
    %v659 = vpack.c.b16 %v597, %v595
    %v660 = vpack.c.b16 %v598, %v596
    %v661 = vpack.c.b16 %v601, %v599
    %v662 = vpack.c.b16 %v602, %v600
    %v663 = vpack.c.b16 %v605, %v603
    %v664 = vpack.c.b16 %v606, %v604
    %v665 = vpack.c.b16 %v609, %v607
    %v666 = vpack.c.b16 %v610, %v608
    %v667 = vpack.c.b16 %v613, %v611
    %v668 = vpack.c.b16 %v614, %v612
    %v669 = vpack.c.b16 %v617, %v615
    %v670 = vpack.c.b16 %v618, %v616
    %v671 = vpack.c.b16 %v621, %v619
    %v672 = vpack.c.b16 %v622, %v620
    %v673 = vpack.c.b16 %v625, %v623
    %v674 = vpack.c.b16 %v626, %v624
    %v675 = vpack.c.b16 %v629, %v627
    %v676 = vpack.c.b16 %v630, %v628
    %v677 = vpack.c.b16 %v633, %v631
    %v678 = vpack.c.b16 %v634, %v632
    %v679 = vpack.c.b16 %v637, %v635
    %v680 = vpack.c.b16 %v638, %v636
    %v681 = vpack.c.b16 %v641, %v639
    %v682 = vpack.c.b16 %v642, %v640
    %v683 = vpack.c.b16 %v645, %v643
    %v684 = vpack.c.b16 %v646, %v644
    %v685 = vpack.c.b16 %v649, %v647
    %v686 = vpack.c.b16 %v650, %v648
    %v687 = vpack.c.b16 %v653, %v651
    %v688 = vpack.c.b16 %v654, %v652
    %v689 = vpack.c.b16 %v657, %v655
    %v690 = vpack.c.b16 %v658, %v656
    %723 = vmatprep.subr.bf16.mxu0 %v660
    %724 = vmatpush1.bf16.msra.mxu0 %v659
    %725 = vmatprep.subr.bf16.mxu0 %v662
    %726 = vmatpush1.bf16.msra.mxu0 %v661
    %727 = vmatprep.subr.bf16.mxu0 %v664
    %728 = vmatpush1.bf16.msra.mxu0 %v663
    %729 = vmatprep.subr.bf16.mxu0 %v666
    %730 = vmatpush1.bf16.msra.mxu0 %v665
    %731 = vmatprep.subr.bf16.mxu0 %v668
    %732 = vmatpush1.bf16.msra.mxu0 %v667
    %733 = vmatprep.subr.bf16.mxu0 %v670
    %734 = vmatpush1.bf16.msra.mxu0 %v669
    %735 = vmatprep.subr.bf16.mxu0 %v672
    %736 = vmatpush1.bf16.msra.mxu0 %v671
    %737 = vmatprep.subr.bf16.mxu0 %v674
    %738 = vmatpush1.bf16.msra.mxu0 %v673
    %739 = vmatprep.subr.bf16.mxu0 %v676
    %740 = vmatpush1.bf16.msra.mxu0 %v675
    %741 = vmatprep.subr.bf16.mxu0 %v678
    %742 = vmatpush1.bf16.msra.mxu0 %v677
    %743 = vmatprep.subr.bf16.mxu0 %v680
    %744 = vmatpush1.bf16.msra.mxu0 %v679
    %745 = vmatprep.subr.bf16.mxu0 %v682
    %746 = vmatpush1.bf16.msra.mxu0 %v681
    %747 = vmatprep.subr.bf16.mxu0 %v684
    %748 = vmatpush1.bf16.msra.mxu0 %v683
    %749 = vmatprep.subr.bf16.mxu0 %v686
    %750 = vmatpush1.bf16.msra.mxu0 %v685
    %751 = vmatprep.subr.bf16.mxu0 %v688
    %752 = vmatpush1.bf16.msra.mxu0 %v687
    %753 = vmatprep.subr.bf16.mxu0 %v690
    %754 = vmatpush1.bf16.msra.mxu0 %v689
    %755 = vmatprep.mubr.bf16.mxu0 %v518
    %756 = vmatmul.mubr.bf16.gmra.mrb[0].mxu0 %v517
    %v757 = vpop.f32.mrb[0].mxu0
    %v758 = vadd.f32 %v556, %v757
    %v759 = vpop.f32.mrb[0].mxu0
    %v760 = vadd.f32 %v560, %v759
    %v761 = vpop.f32.mrb[0].mxu0
    %v762 = vpop.f32.mrb[0].mxu0
    %763 = vdwg.mxu0
    %v764 = vmax.f32 %v758, 0.0
    %v765 = vmax.f32 %v760, 0.0
    %v766 = vpack.c.bf16 %v764, %v764
    %v767 = vpack.c.bf16 %v765, %v765
    %v768 = vld [vmem:[#allocation8] sm:$0xff]
    %v769 = vld [vmem:[#allocation8 + $0x8] sm:$0xff]
    %v770 = vld [vmem:[#allocation8 + $0x10] sm:$0xff]
    %v771 = vld [vmem:[#allocation8 + $0x18] sm:$0xff]
    %v772 = vld [vmem:[#allocation8 + $0x20] sm:$0xff]
    %v773 = vld [vmem:[#allocation8 + $0x28] sm:$0xff]
    %v774 = vld [vmem:[#allocation8 + $0x30] sm:$0xff]
    %v775 = vld [vmem:[#allocation8 + $0x38] sm:$0xff]
    %v776 = vld [vmem:[#allocation8 + $0x40] sm:$0xff]
    %v777 = vld [vmem:[#allocation8 + $0x48] sm:$0xff]
    %v778 = vld [vmem:[#allocation8 + $0x50] sm:$0xff]
    %v779 = vld [vmem:[#allocation8 + $0x58] sm:$0xff]
    %v780 = vld [vmem:[#allocation8 + $0x60] sm:$0xff]
    %v781 = vld [vmem:[#allocation8 + $0x68] sm:$0xff]
    %v782 = vld [vmem:[#allocation8 + $0x70] sm:$0xff]
    %v783 = vld [vmem:[#allocation8 + $0x78] sm:$0xff]
    %v784 = vld [vmem:[#allocation8 + $0x80] sm:$0xff]
    %v785 = vld [vmem:[#allocation8 + $0x88] sm:$0xff]
    %v786 = vld [vmem:[#allocation8 + $0x90] sm:$0xff]
    %v787 = vld [vmem:[#allocation8 + $0x98] sm:$0xff]
    %v788 = vld [vmem:[#allocation8 + $0xa0] sm:$0xff]
    %v789 = vld [vmem:[#allocation8 + $0xa8] sm:$0xff]
    %v790 = vld [vmem:[#allocation8 + $0xb0] sm:$0xff]
    %v791 = vld [vmem:[#allocation8 + $0xb8] sm:$0xff]
    %v792 = vld [vmem:[#allocation8 + $0xc0] sm:$0xff]
    %v793 = vld [vmem:[#allocation8 + $0xc8] sm:$0xff]
    %v794 = vld [vmem:[#allocation8 + $0xd0] sm:$0xff]
    %v795 = vld [vmem:[#allocation8 + $0xd8] sm:$0xff]
    %v796 = vld [vmem:[#allocation8 + $0xe0] sm:$0xff]
    %v797 = vld [vmem:[#allocation8 + $0xe8] sm:$0xff]
    %v798 = vld [vmem:[#allocation8 + $0xf0] sm:$0xff]
    %v799 = vld [vmem:[#allocation8 + $0xf8] sm:$0xff]
    %v800 = vld [vmem:[%s6] sm:$0x3]
    %v802 = vlaneseq
    %v803 = vshrl.u32 %v802, 7
    %v804 = vsub.s32 0, %v803
    %v805 = vrot.slane %v800, %v804
    %v806 = vlaneseq
    %v807 = vshrl.u32 %v806, 7
    %v808 = vsub.s32 1, %v807
    %v809 = vrot.slane %v800, %v808
    %v844 = vunpack.c.l.b16 %v768
    %v845 = vunpack.c.h.b16 %v768
    %v846 = vunpack.c.l.b16 %v769
    %v847 = vunpack.c.h.b16 %v769
    %v848 = vunpack.c.l.b16 %v770
    %v849 = vunpack.c.h.b16 %v770
    %v850 = vunpack.c.l.b16 %v771
    %v851 = vunpack.c.h.b16 %v771
    %v852 = vunpack.c.l.b16 %v772
    %v853 = vunpack.c.h.b16 %v772
    %v854 = vunpack.c.l.b16 %v773
    %v855 = vunpack.c.h.b16 %v773
    %v856 = vunpack.c.l.b16 %v774
    %v857 = vunpack.c.h.b16 %v774
    %v858 = vunpack.c.l.b16 %v775
    %v859 = vunpack.c.h.b16 %v775
    %v860 = vunpack.c.l.b16 %v776
    %v861 = vunpack.c.h.b16 %v776
    %v862 = vunpack.c.l.b16 %v777
    %v863 = vunpack.c.h.b16 %v777
    %v864 = vunpack.c.l.b16 %v778
    %v865 = vunpack.c.h.b16 %v778
    %v866 = vunpack.c.l.b16 %v779
    %v867 = vunpack.c.h.b16 %v779
    %v868 = vunpack.c.l.b16 %v780
    %v869 = vunpack.c.h.b16 %v780
    %v870 = vunpack.c.l.b16 %v781
    %v871 = vunpack.c.h.b16 %v781
    %v872 = vunpack.c.l.b16 %v782
    %v873 = vunpack.c.h.b16 %v782
    %v874 = vunpack.c.l.b16 %v783
    %v875 = vunpack.c.h.b16 %v783
    %v876 = vunpack.c.l.b16 %v784
    %v877 = vunpack.c.h.b16 %v784
    %v878 = vunpack.c.l.b16 %v785
    %v879 = vunpack.c.h.b16 %v785
    %v880 = vunpack.c.l.b16 %v786
    %v881 = vunpack.c.h.b16 %v786
    %v882 = vunpack.c.l.b16 %v787
    %v883 = vunpack.c.h.b16 %v787
    %v884 = vunpack.c.l.b16 %v788
    %v885 = vunpack.c.h.b16 %v788
    %v886 = vunpack.c.l.b16 %v789
    %v887 = vunpack.c.h.b16 %v789
    %v888 = vunpack.c.l.b16 %v790
    %v889 = vunpack.c.h.b16 %v790
    %v890 = vunpack.c.l.b16 %v791
    %v891 = vunpack.c.h.b16 %v791
    %v892 = vunpack.c.l.b16 %v792
    %v893 = vunpack.c.h.b16 %v792
    %v894 = vunpack.c.l.b16 %v793
    %v895 = vunpack.c.h.b16 %v793
    %v896 = vunpack.c.l.b16 %v794
    %v897 = vunpack.c.h.b16 %v794
    %v898 = vunpack.c.l.b16 %v795
    %v899 = vunpack.c.h.b16 %v795
    %v900 = vunpack.c.l.b16 %v796
    %v901 = vunpack.c.h.b16 %v796
    %v902 = vunpack.c.l.b16 %v797
    %v903 = vunpack.c.h.b16 %v797
    %v904 = vunpack.c.l.b16 %v798
    %v905 = vunpack.c.h.b16 %v798
    %v906 = vunpack.c.l.b16 %v799
    %v907 = vunpack.c.h.b16 %v799
    %v908 = vpack.c.b16 %v846, %v844
    %v909 = vpack.c.b16 %v847, %v845
    %v910 = vpack.c.b16 %v850, %v848
    %v911 = vpack.c.b16 %v851, %v849
    %v912 = vpack.c.b16 %v854, %v852
    %v913 = vpack.c.b16 %v855, %v853
    %v914 = vpack.c.b16 %v858, %v856
    %v915 = vpack.c.b16 %v859, %v857
    %v916 = vpack.c.b16 %v862, %v860
    %v917 = vpack.c.b16 %v863, %v861
    %v918 = vpack.c.b16 %v866, %v864
    %v919 = vpack.c.b16 %v867, %v865
    %v920 = vpack.c.b16 %v870, %v868
    %v921 = vpack.c.b16 %v871, %v869
    %v922 = vpack.c.b16 %v874, %v872
    %v923 = vpack.c.b16 %v875, %v873
    %v924 = vpack.c.b16 %v878, %v876
    %v925 = vpack.c.b16 %v879, %v877
    %v926 = vpack.c.b16 %v882, %v880
    %v927 = vpack.c.b16 %v883, %v881
    %v928 = vpack.c.b16 %v886, %v884
    %v929 = vpack.c.b16 %v887, %v885
    %v930 = vpack.c.b16 %v890, %v888
    %v931 = vpack.c.b16 %v891, %v889
    %v932 = vpack.c.b16 %v894, %v892
    %v933 = vpack.c.b16 %v895, %v893
    %v934 = vpack.c.b16 %v898, %v896
    %v935 = vpack.c.b16 %v899, %v897
    %v936 = vpack.c.b16 %v902, %v900
    %v937 = vpack.c.b16 %v903, %v901
    %v938 = vpack.c.b16 %v906, %v904
    %v939 = vpack.c.b16 %v907, %v905
    %972 = vmatprep.subr.bf16.mxu0 %v909
    %973 = vmatpush1.bf16.msra.mxu0 %v908
    %974 = vmatprep.subr.bf16.mxu0 %v911
    %975 = vmatpush1.bf16.msra.mxu0 %v910
    %976 = vmatprep.subr.bf16.mxu0 %v913
    %977 = vmatpush1.bf16.msra.mxu0 %v912
    %978 = vmatprep.subr.bf16.mxu0 %v915
    %979 = vmatpush1.bf16.msra.mxu0 %v914
    %980 = vmatprep.subr.bf16.mxu0 %v917
    %981 = vmatpush1.bf16.msra.mxu0 %v916
    %982 = vmatprep.subr.bf16.mxu0 %v919
    %983 = vmatpush1.bf16.msra.mxu0 %v918
    %984 = vmatprep.subr.bf16.mxu0 %v921
    %985 = vmatpush1.bf16.msra.mxu0 %v920
    %986 = vmatprep.subr.bf16.mxu0 %v923
    %987 = vmatpush1.bf16.msra.mxu0 %v922
    %988 = vmatprep.subr.bf16.mxu0 %v925
    %989 = vmatpush1.bf16.msra.mxu0 %v924
    %990 = vmatprep.subr.bf16.mxu0 %v927
    %991 = vmatpush1.bf16.msra.mxu0 %v926
    %992 = vmatprep.subr.bf16.mxu0 %v929
    %993 = vmatpush1.bf16.msra.mxu0 %v928
    %994 = vmatprep.subr.bf16.mxu0 %v931
    %995 = vmatpush1.bf16.msra.mxu0 %v930
    %996 = vmatprep.subr.bf16.mxu0 %v933
    %997 = vmatpush1.bf16.msra.mxu0 %v932
    %998 = vmatprep.subr.bf16.mxu0 %v935
    %999 = vmatpush1.bf16.msra.mxu0 %v934
    %1000 = vmatprep.subr.bf16.mxu0 %v937
    %1001 = vmatpush1.bf16.msra.mxu0 %v936
    %1002 = vmatprep.subr.bf16.mxu0 %v939
    %1003 = vmatpush1.bf16.msra.mxu0 %v938
    %1004 = vmatprep.mubr.bf16.mxu0 %v767
    %1005 = vmatmul.mubr.bf16.gmra.mrb[0].mxu0 %v766
    %v1006 = vpop.f32.mrb[0].mxu0
    %v1007 = vadd.f32 %v805, %v1006
    %v1008 = vpop.f32.mrb[0].mxu0
    %v1009 = vadd.f32 %v809, %v1008
    %v1010 = vpop.f32.mrb[0].mxu0
    %v1011 = vpop.f32.mrb[0].mxu0
    %1012 = vdwg.mxu0
    %v1013 = vmax.f32 %v1007, 0.0
    %v1014 = vmax.f32 %v1009, 0.0
    %v1015 = vpack.c.bf16 %v1013, %v1013
    %v1016 = vpack.c.bf16 %v1014, %v1014
    %v1017 = vld [vmem:[#allocation10] sm:$0xff]
    %v1018 = vld [vmem:[#allocation10 + $0x8] sm:$0xff]
    %v1019 = vld [vmem:[#allocation10 + $0x10] sm:$0xff]
    %v1020 = vld [vmem:[#allocation10 + $0x18] sm:$0xff]
    %v1021 = vld [vmem:[#allocation10 + $0x20] sm:$0xff]
    %v1022 = vld [vmem:[#allocation10 + $0x28] sm:$0xff]
    %v1023 = vld [vmem:[#allocation10 + $0x30] sm:$0xff]
    %v1024 = vld [vmem:[#allocation10 + $0x38] sm:$0xff]
    %v1025 = vld [vmem:[#allocation10 + $0x40] sm:$0xff]
    %v1026 = vld [vmem:[#allocation10 + $0x48] sm:$0xff]
    %v1027 = vld [vmem:[#allocation10 + $0x50] sm:$0xff]
    %v1028 = vld [vmem:[#allocation10 + $0x58] sm:$0xff]
    %v1029 = vld [vmem:[#allocation10 + $0x60] sm:$0xff]
    %v1030 = vld [vmem:[#allocation10 + $0x68] sm:$0xff]
    %v1031 = vld [vmem:[#allocation10 + $0x70] sm:$0xff]
    %v1032 = vld [vmem:[#allocation10 + $0x78] sm:$0xff]
    %v1033 = vld [vmem:[#allocation10 + $0x80] sm:$0xff]
    %v1034 = vld [vmem:[#allocation10 + $0x88] sm:$0xff]
    %v1035 = vld [vmem:[#allocation10 + $0x90] sm:$0xff]
    %v1036 = vld [vmem:[#allocation10 + $0x98] sm:$0xff]
    %v1037 = vld [vmem:[#allocation10 + $0xa0] sm:$0xff]
    %v1038 = vld [vmem:[#allocation10 + $0xa8] sm:$0xff]
    %v1039 = vld [vmem:[#allocation10 + $0xb0] sm:$0xff]
    %v1040 = vld [vmem:[#allocation10 + $0xb8] sm:$0xff]
    %v1041 = vld [vmem:[#allocation10 + $0xc0] sm:$0xff]
    %v1042 = vld [vmem:[#allocation10 + $0xc8] sm:$0xff]
    %v1043 = vld [vmem:[#allocation10 + $0xd0] sm:$0xff]
    %v1044 = vld [vmem:[#allocation10 + $0xd8] sm:$0xff]
    %v1045 = vld [vmem:[#allocation10 + $0xe0] sm:$0xff]
    %v1046 = vld [vmem:[#allocation10 + $0xe8] sm:$0xff]
    %v1047 = vld [vmem:[#allocation10 + $0xf0] sm:$0xff]
    %v1048 = vld [vmem:[#allocation10 + $0xf8] sm:$0xff]
    %v1049 = vld [vmem:[#allocation10 + $0x100] sm:$0xff]
    %v1050 = vld [vmem:[#allocation10 + $0x108] sm:$0xff]
    %v1051 = vld [vmem:[#allocation10 + $0x110] sm:$0xff]
    %v1052 = vld [vmem:[#allocation10 + $0x118] sm:$0xff]
    %v1053 = vld [vmem:[#allocation10 + $0x120] sm:$0xff]
    %v1054 = vld [vmem:[#allocation10 + $0x128] sm:$0xff]
    %v1055 = vld [vmem:[#allocation10 + $0x130] sm:$0xff]
    %v1056 = vld [vmem:[#allocation10 + $0x138] sm:$0xff]
    %v1057 = vld [vmem:[#allocation10 + $0x140] sm:$0xff]
    %v1058 = vld [vmem:[#allocation10 + $0x148] sm:$0xff]
    %v1059 = vld [vmem:[#allocation10 + $0x150] sm:$0xff]
    %v1060 = vld [vmem:[#allocation10 + $0x158] sm:$0xff]
    %v1061 = vld [vmem:[#allocation10 + $0x160] sm:$0xff]
    %v1062 = vld [vmem:[#allocation10 + $0x168] sm:$0xff]
    %v1063 = vld [vmem:[#allocation10 + $0x170] sm:$0xff]
    %v1064 = vld [vmem:[#allocation10 + $0x178] sm:$0xff]
    %v1065 = vld [vmem:[#allocation10 + $0x180] sm:$0xff]
    %v1066 = vld [vmem:[#allocation10 + $0x188] sm:$0xff]
    %v1067 = vld [vmem:[#allocation10 + $0x190] sm:$0xff]
    %v1068 = vld [vmem:[#allocation10 + $0x198] sm:$0xff]
    %v1069 = vld [vmem:[#allocation10 + $0x1a0] sm:$0xff]
    %v1070 = vld [vmem:[#allocation10 + $0x1a8] sm:$0xff]
    %v1071 = vld [vmem:[#allocation10 + $0x1b0] sm:$0xff]
    %v1072 = vld [vmem:[#allocation10 + $0x1b8] sm:$0xff]
    %v1073 = vld [vmem:[#allocation10 + $0x1c0] sm:$0xff]
    %v1074 = vld [vmem:[#allocation10 + $0x1c8] sm:$0xff]
    %v1075 = vld [vmem:[#allocation10 + $0x1d0] sm:$0xff]
    %v1076 = vld [vmem:[#allocation10 + $0x1d8] sm:$0xff]
    %v1077 = vld [vmem:[#allocation10 + $0x1e0] sm:$0xff]
    %v1078 = vld [vmem:[#allocation10 + $0x1e8] sm:$0xff]
    %v1079 = vld [vmem:[#allocation10 + $0x1f0] sm:$0xff]
    %v1080 = vld [vmem:[#allocation10 + $0x1f8] sm:$0xff]
    %v1081 = vld [vmem:[%s8] sm:$0xf]
    %v1083 = vlaneseq
    %v1084 = vshrl.u32 %v1083, 7
    %v1085 = vsub.s32 0, %v1084
    %v1086 = vrot.slane %v1081, %v1085
    %v1087 = vlaneseq
    %v1088 = vshrl.u32 %v1087, 7
    %v1089 = vsub.s32 1, %v1088
    %v1090 = vrot.slane %v1081, %v1089
    %v1091 = vlaneseq
    %v1092 = vshrl.u32 %v1091, 7
    %v1093 = vsub.s32 2, %v1092
    %v1094 = vrot.slane %v1081, %v1093
    %v1095 = vlaneseq
    %v1096 = vshrl.u32 %v1095, 7
    %v1097 = vsub.s32 3, %v1096
    %v1098 = vrot.slane %v1081, %v1097
    %v1167 = vunpack.c.l.b16 %v1017
    %v1168 = vunpack.c.h.b16 %v1017
    %v1169 = vunpack.c.l.b16 %v1018
    %v1170 = vunpack.c.h.b16 %v1018
    %v1171 = vunpack.c.l.b16 %v1019
    %v1172 = vunpack.c.h.b16 %v1019
    %v1173 = vunpack.c.l.b16 %v1020
    %v1174 = vunpack.c.h.b16 %v1020
    %v1175 = vunpack.c.l.b16 %v1021
    %v1176 = vunpack.c.h.b16 %v1021
    %v1177 = vunpack.c.l.b16 %v1022
    %v1178 = vunpack.c.h.b16 %v1022
    %v1179 = vunpack.c.l.b16 %v1023
    %v1180 = vunpack.c.h.b16 %v1023
    %v1181 = vunpack.c.l.b16 %v1024
    %v1182 = vunpack.c.h.b16 %v1024
    %v1183 = vunpack.c.l.b16 %v1025
    %v1184 = vunpack.c.h.b16 %v1025
    %v1185 = vunpack.c.l.b16 %v1026
    %v1186 = vunpack.c.h.b16 %v1026
    %v1187 = vunpack.c.l.b16 %v1027
    %v1188 = vunpack.c.h.b16 %v1027
    %v1189 = vunpack.c.l.b16 %v1028
    %v1190 = vunpack.c.h.b16 %v1028
    %v1191 = vunpack.c.l.b16 %v1029
    %v1192 = vunpack.c.h.b16 %v1029
    %v1193 = vunpack.c.l.b16 %v1030
    %v1194 = vunpack.c.h.b16 %v1030
    %v1195 = vunpack.c.l.b16 %v1031
    %v1196 = vunpack.c.h.b16 %v1031
    %v1197 = vunpack.c.l.b16 %v1032
    %v1198 = vunpack.c.h.b16 %v1032
    %v1199 = vunpack.c.l.b16 %v1033
    %v1200 = vunpack.c.h.b16 %v1033
    %v1201 = vunpack.c.l.b16 %v1034
    %v1202 = vunpack.c.h.b16 %v1034
    %v1203 = vunpack.c.l.b16 %v1035
    %v1204 = vunpack.c.h.b16 %v1035
    %v1205 = vunpack.c.l.b16 %v1036
    %v1206 = vunpack.c.h.b16 %v1036
    %v1207 = vunpack.c.l.b16 %v1037
    %v1208 = vunpack.c.h.b16 %v1037
    %v1209 = vunpack.c.l.b16 %v1038
    %v1210 = vunpack.c.h.b16 %v1038
    %v1211 = vunpack.c.l.b16 %v1039
    %v1212 = vunpack.c.h.b16 %v1039
    %v1213 = vunpack.c.l.b16 %v1040
    %v1214 = vunpack.c.h.b16 %v1040
    %v1215 = vunpack.c.l.b16 %v1041
    %v1216 = vunpack.c.h.b16 %v1041
    %v1217 = vunpack.c.l.b16 %v1042
    %v1218 = vunpack.c.h.b16 %v1042
    %v1219 = vunpack.c.l.b16 %v1043
    %v1220 = vunpack.c.h.b16 %v1043
    %v1221 = vunpack.c.l.b16 %v1044
    %v1222 = vunpack.c.h.b16 %v1044
    %v1223 = vunpack.c.l.b16 %v1045
    %v1224 = vunpack.c.h.b16 %v1045
    %v1225 = vunpack.c.l.b16 %v1046
    %v1226 = vunpack.c.h.b16 %v1046
    %v1227 = vunpack.c.l.b16 %v1047
    %v1228 = vunpack.c.h.b16 %v1047
    %v1229 = vunpack.c.l.b16 %v1048
    %v1230 = vunpack.c.h.b16 %v1048
    %v1231 = vunpack.c.l.b16 %v1049
    %v1232 = vunpack.c.h.b16 %v1049
    %v1233 = vunpack.c.l.b16 %v1050
    %v1234 = vunpack.c.h.b16 %v1050
    %v1235 = vunpack.c.l.b16 %v1051
    %v1236 = vunpack.c.h.b16 %v1051
    %v1237 = vunpack.c.l.b16 %v1052
    %v1238 = vunpack.c.h.b16 %v1052
    %v1239 = vunpack.c.l.b16 %v1053
    %v1240 = vunpack.c.h.b16 %v1053
    %v1241 = vunpack.c.l.b16 %v1054
    %v1242 = vunpack.c.h.b16 %v1054
    %v1243 = vunpack.c.l.b16 %v1055
    %v1244 = vunpack.c.h.b16 %v1055
    %v1245 = vunpack.c.l.b16 %v1056
    %v1246 = vunpack.c.h.b16 %v1056
    %v1247 = vunpack.c.l.b16 %v1057
    %v1248 = vunpack.c.h.b16 %v1057
    %v1249 = vunpack.c.l.b16 %v1058
    %v1250 = vunpack.c.h.b16 %v1058
    %v1251 = vunpack.c.l.b16 %v1059
    %v1252 = vunpack.c.h.b16 %v1059
    %v1253 = vunpack.c.l.b16 %v1060
    %v1254 = vunpack.c.h.b16 %v1060
    %v1255 = vunpack.c.l.b16 %v1061
    %v1256 = vunpack.c.h.b16 %v1061
    %v1257 = vunpack.c.l.b16 %v1062
    %v1258 = vunpack.c.h.b16 %v1062
    %v1259 = vunpack.c.l.b16 %v1063
    %v1260 = vunpack.c.h.b16 %v1063
    %v1261 = vunpack.c.l.b16 %v1064
    %v1262 = vunpack.c.h.b16 %v1064
    %v1263 = vunpack.c.l.b16 %v1065
    %v1264 = vunpack.c.h.b16 %v1065
    %v1265 = vunpack.c.l.b16 %v1066
    %v1266 = vunpack.c.h.b16 %v1066
    %v1267 = vunpack.c.l.b16 %v1067
    %v1268 = vunpack.c.h.b16 %v1067
    %v1269 = vunpack.c.l.b16 %v1068
    %v1270 = vunpack.c.h.b16 %v1068
    %v1271 = vunpack.c.l.b16 %v1069
    %v1272 = vunpack.c.h.b16 %v1069
    %v1273 = vunpack.c.l.b16 %v1070
    %v1274 = vunpack.c.h.b16 %v1070
    %v1275 = vunpack.c.l.b16 %v1071
    %v1276 = vunpack.c.h.b16 %v1071
    %v1277 = vunpack.c.l.b16 %v1072
    %v1278 = vunpack.c.h.b16 %v1072
    %v1279 = vunpack.c.l.b16 %v1073
    %v1280 = vunpack.c.h.b16 %v1073
    %v1281 = vunpack.c.l.b16 %v1074
    %v1282 = vunpack.c.h.b16 %v1074
    %v1283 = vunpack.c.l.b16 %v1075
    %v1284 = vunpack.c.h.b16 %v1075
    %v1285 = vunpack.c.l.b16 %v1076
    %v1286 = vunpack.c.h.b16 %v1076
    %v1287 = vunpack.c.l.b16 %v1077
    %v1288 = vunpack.c.h.b16 %v1077
    %v1289 = vunpack.c.l.b16 %v1078
    %v1290 = vunpack.c.h.b16 %v1078
    %v1291 = vunpack.c.l.b16 %v1079
    %v1292 = vunpack.c.h.b16 %v1079
    %v1293 = vunpack.c.l.b16 %v1080
    %v1294 = vunpack.c.h.b16 %v1080
    %v1295 = vpack.c.b16 %v1171, %v1167
    %v1296 = vpack.c.b16 %v1172, %v1168
    %v1297 = vpack.c.b16 %v1173, %v1169
    %v1298 = vpack.c.b16 %v1174, %v1170
    %v1299 = vpack.c.b16 %v1179, %v1175
    %v1300 = vpack.c.b16 %v1180, %v1176
    %v1301 = vpack.c.b16 %v1181, %v1177
    %v1302 = vpack.c.b16 %v1182, %v1178
    %v1303 = vpack.c.b16 %v1187, %v1183
    %v1304 = vpack.c.b16 %v1188, %v1184
    %v1305 = vpack.c.b16 %v1189, %v1185
    %v1306 = vpack.c.b16 %v1190, %v1186
    %v1307 = vpack.c.b16 %v1195, %v1191
    %v1308 = vpack.c.b16 %v1196, %v1192
    %v1309 = vpack.c.b16 %v1197, %v1193
    %v1310 = vpack.c.b16 %v1198, %v1194
    %v1311 = vpack.c.b16 %v1203, %v1199
    %v1312 = vpack.c.b16 %v1204, %v1200
    %v1313 = vpack.c.b16 %v1205, %v1201
    %v1314 = vpack.c.b16 %v1206, %v1202
    %v1315 = vpack.c.b16 %v1211, %v1207
    %v1316 = vpack.c.b16 %v1212, %v1208
    %v1317 = vpack.c.b16 %v1213, %v1209
    %v1318 = vpack.c.b16 %v1214, %v1210
    %v1319 = vpack.c.b16 %v1219, %v1215
    %v1320 = vpack.c.b16 %v1220, %v1216
    %v1321 = vpack.c.b16 %v1221, %v1217
    %v1322 = vpack.c.b16 %v1222, %v1218
    %v1323 = vpack.c.b16 %v1227, %v1223
    %v1324 = vpack.c.b16 %v1228, %v1224
    %v1325 = vpack.c.b16 %v1229, %v1225
    %v1326 = vpack.c.b16 %v1230, %v1226
    %v1327 = vpack.c.b16 %v1235, %v1231
    %v1328 = vpack.c.b16 %v1236, %v1232
    %v1329 = vpack.c.b16 %v1237, %v1233
    %v1330 = vpack.c.b16 %v1238, %v1234
    %v1331 = vpack.c.b16 %v1243, %v1239
    %v1332 = vpack.c.b16 %v1244, %v1240
    %v1333 = vpack.c.b16 %v1245, %v1241
    %v1334 = vpack.c.b16 %v1246, %v1242
    %v1335 = vpack.c.b16 %v1251, %v1247
    %v1336 = vpack.c.b16 %v1252, %v1248
    %v1337 = vpack.c.b16 %v1253, %v1249
    %v1338 = vpack.c.b16 %v1254, %v1250
    %v1339 = vpack.c.b16 %v1259, %v1255
    %v1340 = vpack.c.b16 %v1260, %v1256
    %v1341 = vpack.c.b16 %v1261, %v1257
    %v1342 = vpack.c.b16 %v1262, %v1258
    %v1343 = vpack.c.b16 %v1267, %v1263
    %v1344 = vpack.c.b16 %v1268, %v1264
    %v1345 = vpack.c.b16 %v1269, %v1265
    %v1346 = vpack.c.b16 %v1270, %v1266
    %v1347 = vpack.c.b16 %v1275, %v1271
    %v1348 = vpack.c.b16 %v1276, %v1272
    %v1349 = vpack.c.b16 %v1277, %v1273
    %v1350 = vpack.c.b16 %v1278, %v1274
    %v1351 = vpack.c.b16 %v1283, %v1279
    %v1352 = vpack.c.b16 %v1284, %v1280
    %v1353 = vpack.c.b16 %v1285, %v1281
    %v1354 = vpack.c.b16 %v1286, %v1282
    %v1355 = vpack.c.b16 %v1291, %v1287
    %v1356 = vpack.c.b16 %v1292, %v1288
    %v1357 = vpack.c.b16 %v1293, %v1289
    %v1358 = vpack.c.b16 %v1294, %v1290
    %1423 = vmatprep.subr.bf16.mxu0 %v1296
    %1424 = vmatpush1.bf16.msra.mxu0 %v1295
    %1425 = vmatprep.subr.bf16.mxu0 %v1300
    %1426 = vmatpush1.bf16.msra.mxu0 %v1299
    %1427 = vmatprep.subr.bf16.mxu0 %v1304
    %1428 = vmatpush1.bf16.msra.mxu0 %v1303
    %1429 = vmatprep.subr.bf16.mxu0 %v1308
    %1430 = vmatpush1.bf16.msra.mxu0 %v1307
    %1431 = vmatprep.subr.bf16.mxu0 %v1312
    %1432 = vmatpush1.bf16.msra.mxu0 %v1311
    %1433 = vmatprep.subr.bf16.mxu0 %v1316
    %1434 = vmatpush1.bf16.msra.mxu0 %v1315
    %1435 = vmatprep.subr.bf16.mxu0 %v1320
    %1436 = vmatpush1.bf16.msra.mxu0 %v1319
    %1437 = vmatprep.subr.bf16.mxu0 %v1324
    %1438 = vmatpush1.bf16.msra.mxu0 %v1323
    %1439 = vmatprep.subr.bf16.mxu0 %v1328
    %1440 = vmatpush1.bf16.msra.mxu0 %v1327
    %1441 = vmatprep.subr.bf16.mxu0 %v1332
    %1442 = vmatpush1.bf16.msra.mxu0 %v1331
    %1443 = vmatprep.subr.bf16.mxu0 %v1336
    %1444 = vmatpush1.bf16.msra.mxu0 %v1335
    %1445 = vmatprep.subr.bf16.mxu0 %v1340
    %1446 = vmatpush1.bf16.msra.mxu0 %v1339
    %1447 = vmatprep.subr.bf16.mxu0 %v1344
    %1448 = vmatpush1.bf16.msra.mxu0 %v1343
    %1449 = vmatprep.subr.bf16.mxu0 %v1348
    %1450 = vmatpush1.bf16.msra.mxu0 %v1347
    %1451 = vmatprep.subr.bf16.mxu0 %v1352
    %1452 = vmatpush1.bf16.msra.mxu0 %v1351
    %1453 = vmatprep.subr.bf16.mxu0 %v1356
    %1454 = vmatpush1.bf16.msra.mxu0 %v1355
    %1455 = vmatprep.mubr.bf16.mxu0 %v1016
    %1456 = vmatmul.mubr.bf16.gmra.mrb[0].mxu0 %v1015
    %v1457 = vpop.f32.mrb[0].mxu0
    %v1458 = vadd.f32 %v1086, %v1457
    %v1459 = vpop.f32.mrb[0].mxu0
    %v1460 = vadd.f32 %v1090, %v1459
    %v1461 = vpop.f32.mrb[0].mxu0
    %v1462 = vpop.f32.mrb[0].mxu0
    %1463 = vdwg.mxu0
    %1464 = vmatprep.subr.bf16.mxu0 %v1298
    %1465 = vmatpush1.bf16.msra.mxu0 %v1297
    %1466 = vmatprep.subr.bf16.mxu0 %v1302
    %1467 = vmatpush1.bf16.msra.mxu0 %v1301
    %1468 = vmatprep.subr.bf16.mxu0 %v1306
    %1469 = vmatpush1.bf16.msra.mxu0 %v1305
    %1470 = vmatprep.subr.bf16.mxu0 %v1310
    %1471 = vmatpush1.bf16.msra.mxu0 %v1309
    %1472 = vmatprep.subr.bf16.mxu0 %v1314
    %1473 = vmatpush1.bf16.msra.mxu0 %v1313
    %1474 = vmatprep.subr.bf16.mxu0 %v1318
    %1475 = vmatpush1.bf16.msra.mxu0 %v1317
    %1476 = vmatprep.subr.bf16.mxu0 %v1322
    %1477 = vmatpush1.bf16.msra.mxu0 %v1321
    %1478 = vmatprep.subr.bf16.mxu0 %v1326
    %1479 = vmatpush1.bf16.msra.mxu0 %v1325
    %1480 = vmatprep.subr.bf16.mxu0 %v1330
    %1481 = vmatpush1.bf16.msra.mxu0 %v1329
    %1482 = vmatprep.subr.bf16.mxu0 %v1334
    %1483 = vmatpush1.bf16.msra.mxu0 %v1333
    %1484 = vmatprep.subr.bf16.mxu0 %v1338
    %1485 = vmatpush1.bf16.msra.mxu0 %v1337
    %1486 = vmatprep.subr.bf16.mxu0 %v1342
    %1487 = vmatpush1.bf16.msra.mxu0 %v1341
    %1488 = vmatprep.subr.bf16.mxu0 %v1346
    %1489 = vmatpush1.bf16.msra.mxu0 %v1345
    %1490 = vmatprep.subr.bf16.mxu0 %v1350
    %1491 = vmatpush1.bf16.msra.mxu0 %v1349
    %1492 = vmatprep.subr.bf16.mxu0 %v1354
    %1493 = vmatpush1.bf16.msra.mxu0 %v1353
    %1494 = vmatprep.subr.bf16.mxu0 %v1358
    %1495 = vmatpush1.bf16.msra.mxu0 %v1357
    %1496 = vmatprep.mubr.bf16.mxu0 %v1016
    %1497 = vmatmul.mubr.bf16.gmra.mrb[0].mxu0 %v1015
    %v1498 = vpop.f32.mrb[0].mxu0
    %v1499 = vadd.f32 %v1094, %v1498
    %v1500 = vpop.f32.mrb[0].mxu0
    %v1501 = vadd.f32 %v1098, %v1500
    %v1502 = vpop.f32.mrb[0].mxu0
    %v1503 = vpop.f32.mrb[0].mxu0
    %1504 = vdwg.mxu0
    %v1505 = vmax.f32 %v1458, 0.0
    %v1506 = vmax.f32 %v1460, 0.0
    %v1507 = vmax.f32 %v1499, 0.0
    %v1508 = vmax.f32 %v1501, 0.0
    %v1509 = vpack.c.bf16 %v1505, %v1505
    %v1510 = vpack.c.bf16 %v1506, %v1506
    %v1511 = vpack.c.bf16 %v1507, %v1507
    %v1512 = vpack.c.bf16 %v1508, %v1508
    %v1513 = vld [vmem:[#allocation11] sm:$0xf]
    %v1514 = vld [vmem:[#allocation11 + $0x4] sm:$0xf]
    %v1515 = vld [vmem:[#allocation11 + $0x8] sm:$0xf]
    %v1516 = vld [vmem:[#allocation11 + $0xc] sm:$0xf]
    %v1517 = vld [vmem:[#allocation11 + $0x10] sm:$0xf]
    %v1518 = vld [vmem:[#allocation11 + $0x14] sm:$0xf]
    %v1519 = vld [vmem:[#allocation11 + $0x18] sm:$0xf]
    %v1520 = vld [vmem:[#allocation11 + $0x1c] sm:$0xf]
    %v1521 = vld [vmem:[#allocation11 + $0x20] sm:$0xf]
    %v1522 = vld [vmem:[#allocation11 + $0x24] sm:$0xf]
    %v1523 = vld [vmem:[#allocation11 + $0x28] sm:$0xf]
    %v1524 = vld [vmem:[#allocation11 + $0x2c] sm:$0xf]
    %v1525 = vld [vmem:[#allocation11 + $0x30] sm:$0xf]
    %v1526 = vld [vmem:[#allocation11 + $0x34] sm:$0xf]
    %v1527 = vld [vmem:[#allocation11 + $0x38] sm:$0xf]
    %v1528 = vld [vmem:[#allocation11 + $0x3c] sm:$0xf]
    %v1529 = vld [vmem:[#allocation11 + $0x40] sm:$0xf]
    %v1530 = vld [vmem:[#allocation11 + $0x44] sm:$0xf]
    %v1531 = vld [vmem:[#allocation11 + $0x48] sm:$0xf]
    %v1532 = vld [vmem:[#allocation11 + $0x4c] sm:$0xf]
    %v1533 = vld [vmem:[#allocation11 + $0x50] sm:$0xf]
    %v1534 = vld [vmem:[#allocation11 + $0x54] sm:$0xf]
    %v1535 = vld [vmem:[#allocation11 + $0x58] sm:$0xf]
    %v1536 = vld [vmem:[#allocation11 + $0x5c] sm:$0xf]
    %v1537 = vld [vmem:[#allocation11 + $0x60] sm:$0xf]
    %v1538 = vld [vmem:[#allocation11 + $0x64] sm:$0xf]
    %v1539 = vld [vmem:[#allocation11 + $0x68] sm:$0xf]
    %v1540 = vld [vmem:[#allocation11 + $0x6c] sm:$0xf]
    %v1541 = vld [vmem:[#allocation11 + $0x70] sm:$0xf]
    %v1542 = vld [vmem:[#allocation11 + $0x74] sm:$0xf]
    %v1543 = vld [vmem:[#allocation11 + $0x78] sm:$0xf]
    %v1544 = vld [vmem:[#allocation11 + $0x7c] sm:$0xf]
    %v1545 = vld [vmem:[#allocation11 + $0x80] sm:$0xf]
    %v1546 = vld [vmem:[#allocation11 + $0x84] sm:$0xf]
    %v1547 = vld [vmem:[#allocation11 + $0x88] sm:$0xf]
    %v1548 = vld [vmem:[#allocation11 + $0x8c] sm:$0xf]
    %v1549 = vld [vmem:[#allocation11 + $0x90] sm:$0xf]
    %v1550 = vld [vmem:[#allocation11 + $0x94] sm:$0xf]
    %v1551 = vld [vmem:[#allocation11 + $0x98] sm:$0xf]
    %v1552 = vld [vmem:[#allocation11 + $0x9c] sm:$0xf]
    %v1553 = vld [vmem:[#allocation11 + $0xa0] sm:$0xf]
    %v1554 = vld [vmem:[#allocation11 + $0xa4] sm:$0xf]
    %v1555 = vld [vmem:[#allocation11 + $0xa8] sm:$0xf]
    %v1556 = vld [vmem:[#allocation11 + $0xac] sm:$0xf]
    %v1557 = vld [vmem:[#allocation11 + $0xb0] sm:$0xf]
    %v1558 = vld [vmem:[#allocation11 + $0xb4] sm:$0xf]
    %v1559 = vld [vmem:[#allocation11 + $0xb8] sm:$0xf]
    %v1560 = vld [vmem:[#allocation11 + $0xbc] sm:$0xf]
    %v1561 = vld [vmem:[#allocation11 + $0xc0] sm:$0xf]
    %v1562 = vld [vmem:[#allocation11 + $0xc4] sm:$0xf]
    %v1563 = vld [vmem:[#allocation11 + $0xc8] sm:$0xf]
    %v1564 = vld [vmem:[#allocation11 + $0xcc] sm:$0xf]
    %v1565 = vld [vmem:[#allocation11 + $0xd0] sm:$0xf]
    %v1566 = vld [vmem:[#allocation11 + $0xd4] sm:$0xf]
    %v1567 = vld [vmem:[#allocation11 + $0xd8] sm:$0xf]
    %v1568 = vld [vmem:[#allocation11 + $0xdc] sm:$0xf]
    %v1569 = vld [vmem:[#allocation11 + $0xe0] sm:$0xf]
    %v1570 = vld [vmem:[#allocation11 + $0xe4] sm:$0xf]
    %v1571 = vld [vmem:[#allocation11 + $0xe8] sm:$0xf]
    %v1572 = vld [vmem:[#allocation11 + $0xec] sm:$0xf]
    %v1573 = vld [vmem:[#allocation11 + $0xf0] sm:$0xf]
    %v1574 = vld [vmem:[#allocation11 + $0xf4] sm:$0xf]
    %v1575 = vld [vmem:[#allocation11 + $0xf8] sm:$0xf]
    %v1576 = vld [vmem:[#allocation11 + $0xfc] sm:$0xf]
    %v1577 = vld [vmem:[%s10] sm:$0x1]
    %v1579 = vlaneseq
    %v1580 = vshrl.u32 %v1579, 7
    %v1581 = vsub.s32 0, %v1580
    %v1582 = vrot.slane %v1577, %v1581
    %v1648 = vunpack.c.l.b16 %v1513
    %v1649 = vunpack.c.l.b16 %v1514
    %v1650 = vunpack.c.l.b16 %v1515
    %v1651 = vunpack.c.l.b16 %v1516
    %v1652 = vunpack.c.l.b16 %v1517
    %v1653 = vunpack.c.l.b16 %v1518
    %v1654 = vunpack.c.l.b16 %v1519
    %v1655 = vunpack.c.l.b16 %v1520
    %v1656 = vunpack.c.l.b16 %v1521
    %v1657 = vunpack.c.l.b16 %v1522
    %v1658 = vunpack.c.l.b16 %v1523
    %v1659 = vunpack.c.l.b16 %v1524
    %v1660 = vunpack.c.l.b16 %v1525
    %v1661 = vunpack.c.l.b16 %v1526
    %v1662 = vunpack.c.l.b16 %v1527
    %v1663 = vunpack.c.l.b16 %v1528
    %v1664 = vunpack.c.l.b16 %v1529
    %v1665 = vunpack.c.l.b16 %v1530
    %v1666 = vunpack.c.l.b16 %v1531
    %v1667 = vunpack.c.l.b16 %v1532
    %v1668 = vunpack.c.l.b16 %v1533
    %v1669 = vunpack.c.l.b16 %v1534
    %v1670 = vunpack.c.l.b16 %v1535
    %v1671 = vunpack.c.l.b16 %v1536
    %v1672 = vunpack.c.l.b16 %v1537
    %v1673 = vunpack.c.l.b16 %v1538
    %v1674 = vunpack.c.l.b16 %v1539
    %v1675 = vunpack.c.l.b16 %v1540
    %v1676 = vunpack.c.l.b16 %v1541
    %v1677 = vunpack.c.l.b16 %v1542
    %v1678 = vunpack.c.l.b16 %v1543
    %v1679 = vunpack.c.l.b16 %v1544
    %v1680 = vunpack.c.l.b16 %v1545
    %v1681 = vunpack.c.l.b16 %v1546
    %v1682 = vunpack.c.l.b16 %v1547
    %v1683 = vunpack.c.l.b16 %v1548
    %v1684 = vunpack.c.l.b16 %v1549
    %v1685 = vunpack.c.l.b16 %v1550
    %v1686 = vunpack.c.l.b16 %v1551
    %v1687 = vunpack.c.l.b16 %v1552
    %v1688 = vunpack.c.l.b16 %v1553
    %v1689 = vunpack.c.l.b16 %v1554
    %v1690 = vunpack.c.l.b16 %v1555
    %v1691 = vunpack.c.l.b16 %v1556
    %v1692 = vunpack.c.l.b16 %v1557
    %v1693 = vunpack.c.l.b16 %v1558
    %v1694 = vunpack.c.l.b16 %v1559
    %v1695 = vunpack.c.l.b16 %v1560
    %v1696 = vunpack.c.l.b16 %v1561
    %v1697 = vunpack.c.l.b16 %v1562
    %v1698 = vunpack.c.l.b16 %v1563
    %v1699 = vunpack.c.l.b16 %v1564
    %v1700 = vunpack.c.l.b16 %v1565
    %v1701 = vunpack.c.l.b16 %v1566
    %v1702 = vunpack.c.l.b16 %v1567
    %v1703 = vunpack.c.l.b16 %v1568
    %v1704 = vunpack.c.l.b16 %v1569
    %v1705 = vunpack.c.l.b16 %v1570
    %v1706 = vunpack.c.l.b16 %v1571
    %v1707 = vunpack.c.l.b16 %v1572
    %v1708 = vunpack.c.l.b16 %v1573
    %v1709 = vunpack.c.l.b16 %v1574
    %v1710 = vunpack.c.l.b16 %v1575
    %v1711 = vunpack.c.l.b16 %v1576
    %v1712 = vpack.c.b16 %v1649, %v1648
    %v1713 = vpack.c.b16 %v1651, %v1650
    %v1714 = vpack.c.b16 %v1653, %v1652
    %v1715 = vpack.c.b16 %v1655, %v1654
    %v1716 = vpack.c.b16 %v1657, %v1656
    %v1717 = vpack.c.b16 %v1659, %v1658
    %v1718 = vpack.c.b16 %v1661, %v1660
    %v1719 = vpack.c.b16 %v1663, %v1662
    %v1720 = vpack.c.b16 %v1665, %v1664
    %v1721 = vpack.c.b16 %v1667, %v1666
    %v1722 = vpack.c.b16 %v1669, %v1668
    %v1723 = vpack.c.b16 %v1671, %v1670
    %v1724 = vpack.c.b16 %v1673, %v1672
    %v1725 = vpack.c.b16 %v1675, %v1674
    %v1726 = vpack.c.b16 %v1677, %v1676
    %v1727 = vpack.c.b16 %v1679, %v1678
    %v1728 = vpack.c.b16 %v1681, %v1680
    %v1729 = vpack.c.b16 %v1683, %v1682
    %v1730 = vpack.c.b16 %v1685, %v1684
    %v1731 = vpack.c.b16 %v1687, %v1686
    %v1732 = vpack.c.b16 %v1689, %v1688
    %v1733 = vpack.c.b16 %v1691, %v1690
    %v1734 = vpack.c.b16 %v1693, %v1692
    %v1735 = vpack.c.b16 %v1695, %v1694
    %v1736 = vpack.c.b16 %v1697, %v1696
    %v1737 = vpack.c.b16 %v1699, %v1698
    %v1738 = vpack.c.b16 %v1701, %v1700
    %v1739 = vpack.c.b16 %v1703, %v1702
    %v1740 = vpack.c.b16 %v1705, %v1704
    %v1741 = vpack.c.b16 %v1707, %v1706
    %v1742 = vpack.c.b16 %v1709, %v1708
    %v1743 = vpack.c.b16 %v1711, %v1710
    %1776 = vmatprep.subr.bf16.mxu0 0
    %1777 = vmatpush1.bf16.msra.mxu0 %v1712
    %1778 = vmatprep.subr.bf16.mxu0 0
    %1779 = vmatpush1.bf16.msra.mxu0 %v1713
    %1780 = vmatprep.subr.bf16.mxu0 0
    %1781 = vmatpush1.bf16.msra.mxu0 %v1714
    %1782 = vmatprep.subr.bf16.mxu0 0
    %1783 = vmatpush1.bf16.msra.mxu0 %v1715
    %1784 = vmatprep.subr.bf16.mxu0 0
    %1785 = vmatpush1.bf16.msra.mxu0 %v1716
    %1786 = vmatprep.subr.bf16.mxu0 0
    %1787 = vmatpush1.bf16.msra.mxu0 %v1717
    %1788 = vmatprep.subr.bf16.mxu0 0
    %1789 = vmatpush1.bf16.msra.mxu0 %v1718
    %1790 = vmatprep.subr.bf16.mxu0 0
    %1791 = vmatpush1.bf16.msra.mxu0 %v1719
    %1792 = vmatprep.subr.bf16.mxu0 0
    %1793 = vmatpush1.bf16.msra.mxu0 %v1720
    %1794 = vmatprep.subr.bf16.mxu0 0
    %1795 = vmatpush1.bf16.msra.mxu0 %v1721
    %1796 = vmatprep.subr.bf16.mxu0 0
    %1797 = vmatpush1.bf16.msra.mxu0 %v1722
    %1798 = vmatprep.subr.bf16.mxu0 0
    %1799 = vmatpush1.bf16.msra.mxu0 %v1723
    %1800 = vmatprep.subr.bf16.mxu0 0
    %1801 = vmatpush1.bf16.msra.mxu0 %v1724
    %1802 = vmatprep.subr.bf16.mxu0 0
    %1803 = vmatpush1.bf16.msra.mxu0 %v1725
    %1804 = vmatprep.subr.bf16.mxu0 0
    %1805 = vmatpush1.bf16.msra.mxu0 %v1726
    %1806 = vmatprep.subr.bf16.mxu0 0
    %1807 = vmatpush1.bf16.msra.mxu0 %v1727
    %1808 = vmatprep.mubr.bf16.mxu0 %v1510
    %1809 = vmatmul.mubr.bf16.gmra.mrb[0].mxu0 %v1509
    %v1810 = vpop.f32.mrb[0].mxu0
    %v1811 = vadd.f32 %v1582, %v1810
    %v1812 = vpop.f32.mrb[0].mxu0
    %v1813 = vpop.f32.mrb[0].mxu0
    %v1814 = vpop.f32.mrb[0].mxu0
    %1815 = vdwg.mxu0
    %1816 = vmatprep.subr.bf16.mxu0 0
    %1817 = vmatpush1.bf16.msra.mxu0 %v1728
    %1818 = vmatprep.subr.bf16.mxu0 0
    %1819 = vmatpush1.bf16.msra.mxu0 %v1729
    %1820 = vmatprep.subr.bf16.mxu0 0
    %1821 = vmatpush1.bf16.msra.mxu0 %v1730
    %1822 = vmatprep.subr.bf16.mxu0 0
    %1823 = vmatpush1.bf16.msra.mxu0 %v1731
    %1824 = vmatprep.subr.bf16.mxu0 0
    %1825 = vmatpush1.bf16.msra.mxu0 %v1732
    %1826 = vmatprep.subr.bf16.mxu0 0
    %1827 = vmatpush1.bf16.msra.mxu0 %v1733
    %1828 = vmatprep.subr.bf16.mxu0 0
    %1829 = vmatpush1.bf16.msra.mxu0 %v1734
    %1830 = vmatprep.subr.bf16.mxu0 0
    %1831 = vmatpush1.bf16.msra.mxu0 %v1735
    %1832 = vmatprep.subr.bf16.mxu0 0
    %1833 = vmatpush1.bf16.msra.mxu0 %v1736
    %1834 = vmatprep.subr.bf16.mxu0 0
    %1835 = vmatpush1.bf16.msra.mxu0 %v1737
    %1836 = vmatprep.subr.bf16.mxu0 0
    %1837 = vmatpush1.bf16.msra.mxu0 %v1738
    %1838 = vmatprep.subr.bf16.mxu0 0
    %1839 = vmatpush1.bf16.msra.mxu0 %v1739
    %1840 = vmatprep.subr.bf16.mxu0 0
    %1841 = vmatpush1.bf16.msra.mxu0 %v1740
    %1842 = vmatprep.subr.bf16.mxu0 0
    %1843 = vmatpush1.bf16.msra.mxu0 %v1741
    %1844 = vmatprep.subr.bf16.mxu0 0
    %1845 = vmatpush1.bf16.msra.mxu0 %v1742
    %1846 = vmatprep.subr.bf16.mxu0 0
    %1847 = vmatpush1.bf16.msra.mxu0 %v1743
    %1848 = vmatprep.mubr.bf16.mxu0 %v1512
    %1849 = vmatmul.mubr.bf16.gmra.mrb[0].mxu0 %v1511
    %v1850 = vpop.f32.mrb[0].mxu0
    %v1851 = vadd.f32 %v1811, %v1850
    %v1852 = vpop.f32.mrb[0].mxu0
    %v1853 = vpop.f32.mrb[0].mxu0
    %v1854 = vpop.f32.mrb[0].mxu0
    %1855 = vdwg.mxu0
    %v1856 = vpack.c.bf16 %v1851, %v1851
    %1857 = vst [vmem:[#allocation13] sm:$0xf] %v1856
    // Predicated region
    $region70: #{tpu_custom_call.1} parent=1 // pred_check
      _
    $region71: #{tpu_custom_call.1} parent=1 // pred_check_branch
      %1859 = sbr.rel (0) target = $region73
    $region72: #{tpu_custom_call.1} parent=1 // pred_region
      %s1861 = ssub.s32 64, 64
      %1862 = vsyncadd [#allocation4], %s1861
      %s1864 = sshll.u32 [#allocation13], 4
      %s1865 = int_to_ptr.vmem [resolvable:$true] %s1864
      %1867 = dma.vmem_to_hbm [thread:$0]  %s1865, 64, %s11, [#allocation4]
    $region73: #{tpu_custom_call.1} parent=1 // pred_fallthru
      _
    // Predicated region
    $region74: #{tpu_custom_call.1} parent=1 // pred_check
      _
    $region75: #{tpu_custom_call.1} parent=1 // pred_check_branch
      %1869 = sbr.rel (0) target = $region77
    $region76: #{tpu_custom_call.1} parent=1 // pred_region
      %1870 = dma.done [#allocation4], 64
    $region77: #{tpu_custom_call.1} parent=1 // pred_fallthru
      _
    %1871 = vsyncpa [#allocation3], 1
    %1872 = vsyncpa [#allocation6], 1
    %1873 = vsyncpa [#allocation9], 1
    %1874 = vsyncpa [#allocation12], 1
    %1875 = vsyncpa [#allocation4], 1

</llo_original>
